<compile_context>
chip_gen: v6e
topology: v6e:2x2x1
jax: 0.10.0
libtpu: 0.0.40
codegen_flags: <defaults>
</compile_context>

<pallas_src>
import jax
import jax.numpy as jnp
from jax.experimental import pallas as pl
from jax.experimental.pallas import tpu as pltpu

_LN_EPS = 1e-5  # PyTorch nn.LayerNorm default eps


def _row_tile(m, target):
    return m if m <= target else target


def _cp(n_parallel):
    return pltpu.CompilerParams(dimension_semantics=("parallel",) * n_parallel)


# ---------------------------------------------------------------------------
# Row-tiled dense / LayerNorm / SwiGLU kernels (sequence track)
# ---------------------------------------------------------------------------

def _linear_kernel(x_ref, w_ref, b_ref, o_ref):
    acc = jnp.dot(x_ref[...], w_ref[...], preferred_element_type=jnp.float32)
    o_ref[...] = (acc + b_ref[...]).astype(o_ref.dtype)


def _linear_residual_kernel(x_ref, w_ref, b_ref, r_ref, o_ref):
    acc = jnp.dot(x_ref[...], w_ref[...], preferred_element_type=jnp.float32)
    o_ref[...] = (acc + b_ref[...] + r_ref[...]).astype(o_ref.dtype)


def _layernorm_kernel(x_ref, g_ref, b_ref, o_ref):
    x = x_ref[...].astype(jnp.float32)
    mu = jnp.mean(x, axis=-1, keepdims=True)
    var = jnp.mean(jnp.square(x - mu), axis=-1, keepdims=True)
    o_ref[...] = ((x - mu) * jax.lax.rsqrt(var + _LN_EPS) * g_ref[...]
                  + b_ref[...]).astype(o_ref.dtype)


def _add_layernorm_kernel(x_ref, y_ref, g_ref, b_ref, s_ref, n_ref):
    # s = x + y (residual), n = LayerNorm(s)   -- one pass, two outputs
    s = x_ref[...].astype(jnp.float32) + y_ref[...].astype(jnp.float32)
    s_ref[...] = s.astype(s_ref.dtype)
    mu = jnp.mean(s, axis=-1, keepdims=True)
    var = jnp.mean(jnp.square(s - mu), axis=-1, keepdims=True)
    n_ref[...] = ((s - mu) * jax.lax.rsqrt(var + _LN_EPS) * g_ref[...]
                  + b_ref[...]).astype(n_ref.dtype)


def _swiglu_kernel(x_ref, w1_ref, b1_ref, wg_ref, bg_ref, beta_ref, o_ref):
    # matmuls feed the MXU in bf16; gating / sigmoid stays in f32
    x = x_ref[...]
    lin = jnp.dot(x, w1_ref[...], preferred_element_type=jnp.float32) + b1_ref[...]
    gate = jnp.dot(x, wg_ref[...], preferred_element_type=jnp.float32) + bg_ref[...]
    beta = beta_ref[0]
    o_ref[...] = (lin * jax.nn.sigmoid(beta * lin) * gate).astype(o_ref.dtype)


def linear(x2d, w, b, *, tm=512):
    """y = x @ w + b.  x2d:(M,K), w:(K,N), b:(1,N).  Row-tiled, bf16 MXU operands."""
    M, K = x2d.shape
    N = w.shape[1]
    tm = _row_tile(M, tm)
    return pl.pallas_call(
        _linear_kernel,
        grid=(pl.cdiv(M, tm),),
        in_specs=[pl.BlockSpec((tm, K), lambda i: (i, 0)),
                  pl.BlockSpec((K, N), lambda i: (0, 0)),   # constant block -> fetched once
                  pl.BlockSpec((1, N), lambda i: (0, 0))],
        out_specs=pl.BlockSpec((tm, N), lambda i: (i, 0)),
        out_shape=jax.ShapeDtypeStruct((M, N), jnp.float32),
        compiler_params=_cp(1),
    )(x2d.astype(jnp.bfloat16), w.astype(jnp.bfloat16), b)


def linear_residual(x2d, w, b, r2d, *, tm=512):
    """y = r + x @ w + b  (residual add fused into the projection epilogue)."""
    M, K = x2d.shape
    N = w.shape[1]
    tm = _row_tile(M, tm)
    return pl.pallas_call(
        _linear_residual_kernel,
        grid=(pl.cdiv(M, tm),),
        in_specs=[pl.BlockSpec((tm, K), lambda i: (i, 0)),
                  pl.BlockSpec((K, N), lambda i: (0, 0)),
                  pl.BlockSpec((1, N), lambda i: (0, 0)),
                  pl.BlockSpec((tm, N), lambda i: (i, 0))],
        out_specs=pl.BlockSpec((tm, N), lambda i: (i, 0)),
        out_shape=jax.ShapeDtypeStruct((M, N), jnp.float32),
        compiler_params=_cp(1),
    )(x2d.astype(jnp.bfloat16), w.astype(jnp.bfloat16), b, r2d)


def layernorm(x2d, g, b, *, tm=1024):
    M, D = x2d.shape
    tm = _row_tile(M, tm)
    return pl.pallas_call(
        _layernorm_kernel,
        grid=(pl.cdiv(M, tm),),
        in_specs=[pl.BlockSpec((tm, D), lambda i: (i, 0)),
                  pl.BlockSpec((1, D), lambda i: (0, 0)),
                  pl.BlockSpec((1, D), lambda i: (0, 0))],
        out_specs=pl.BlockSpec((tm, D), lambda i: (i, 0)),
        out_shape=jax.ShapeDtypeStruct((M, D), jnp.float32),
        compiler_params=_cp(1),
    )(x2d, g, b)


def add_layernorm(x2d, y2d, g, b, *, tm=1024):
    """Returns (x + y, LayerNorm(x + y)) in one pass."""
    M, D = x2d.shape
    tm = _row_tile(M, tm)
    return pl.pallas_call(
        _add_layernorm_kernel,
        grid=(pl.cdiv(M, tm),),
        in_specs=[pl.BlockSpec((tm, D), lambda i: (i, 0)),
                  pl.BlockSpec((tm, D), lambda i: (i, 0)),
                  pl.BlockSpec((1, D), lambda i: (0, 0)),
                  pl.BlockSpec((1, D), lambda i: (0, 0))],
        out_specs=[pl.BlockSpec((tm, D), lambda i: (i, 0)),
                   pl.BlockSpec((tm, D), lambda i: (i, 0))],
        out_shape=(jax.ShapeDtypeStruct((M, D), jnp.float32),
                   jax.ShapeDtypeStruct((M, D), jnp.float32)),
        compiler_params=_cp(1),
    )(x2d, y2d, g, b)


def swiglu(x2d, w1, b1, wg, bg, beta, *, tm=512):
    M, K = x2d.shape
    N = w1.shape[1]
    tm = _row_tile(M, tm)
    return pl.pallas_call(
        _swiglu_kernel,
        grid=(pl.cdiv(M, tm),),
        in_specs=[pl.BlockSpec((tm, K), lambda i: (i, 0)),
                  pl.BlockSpec((K, N), lambda i: (0, 0)),
                  pl.BlockSpec((1, N), lambda i: (0, 0)),
                  pl.BlockSpec((K, N), lambda i: (0, 0)),
                  pl.BlockSpec((1, N), lambda i: (0, 0)),
                  pl.BlockSpec(memory_space=pltpu.MemorySpace.SMEM)],
        out_specs=pl.BlockSpec((tm, N), lambda i: (i, 0)),
        out_shape=jax.ShapeDtypeStruct((M, N), jnp.bfloat16),
        compiler_params=_cp(1),
    )(x2d.astype(jnp.bfloat16), w1.astype(jnp.bfloat16), b1,
      wg.astype(jnp.bfloat16), bg, beta)


# ---------------------------------------------------------------------------
# Fused pair-biased attention + pair-track update
# ---------------------------------------------------------------------------

def attention_pair_fused(q, k, v, se_t, wpb, wpo, bpo, ln_g, ln_b,
                         mask=None, need_attn=False):
    """Fused multi-head attention with pair bias + fused pair-track update.

    q/k/v : (B, H, L, Dh) bf16 (RoPE already applied to q/k)
    se_t  : (B, P, L, L)  f32 pair representation, channel-major
    wpb   : (H, P) f32  pair -> per-head logit-bias weight (transposed nn.Linear weight)
    wpo   : (H, P) f32  attention heads -> pair-update weight
    bpo   : (1, P) f32  pair-update bias
    ln_g/ln_b : (1, P) f32 pair LayerNorm weight / bias
    mask  : optional (B, L, L) additive f32 logit mask

    Returns:
      ctx      (B, H, L, Dh) bf16
      se_t_new (B, P, L, L)  f32  = s + LN(s),  s = se + (attn @ wpo + bpo)  (channel-major)
      attn     (B, H, L, L)  f32  (only when need_attn)
    """
    B, H, L, Dh = q.shape
    P = se_t.shape[1]
    TQ = L if L <= 128 else 128
    scale = 1.0 / float(Dh) ** 0.5
    has_mask = mask is not None

    def kern(*refs):
        (q_ref, k_ref, v_ref, se_ref, wpb_ref, wpo_ref, bpo_ref,
         g_ref, b_ref) = refs[:9]
        pos = 9
        mask_ref = None
        if has_mask:
            mask_ref = refs[pos]
            pos += 1
        ctx_ref = refs[pos]
        se_out_ref = refs[pos + 1]
        attn_ref = refs[pos + 2] if need_attn else None

        maskb = mask_ref[0] if has_mask else None          # (TQ, L) f32

        # Pair-track channels for this (batch, q-tile): P slices of (TQ, L) f32.
        se_p = [se_ref[0, p] for p in range(P)]
        # s = se + b_pair_out  (accumulates the per-head contributions below)
        s_pair = [se_p[p] + bpo_ref[0, p] for p in range(P)]

        for h in range(H):
            # pair embedding -> additive logit bias for head h (scalar x 2-D MACs).
            # NOTE: the per-head constant bias b_pair_bias shifts every logit of a
            # (head, query) row equally and is softmax-invariant -> omitted on purpose.
            bias_h = se_p[0] * wpb_ref[h, 0]
            for p in range(1, P):
                bias_h = bias_h + se_p[p] * wpb_ref[h, p]

            s_h = jax.lax.dot_general(
                q_ref[0, h], k_ref[0, h], (((1,), (1,)), ((), ())),
                preferred_element_type=jnp.float32) * scale + bias_h       # (TQ, L) f32
            if has_mask:
                s_h = s_h + maskb
            s_h = s_h - jnp.max(s_h, axis=-1, keepdims=True)
            e_h = jnp.exp(s_h)
            p_h = e_h / jnp.sum(e_h, axis=-1, keepdims=True)               # f32 softmax

            ctx_h = jnp.dot(p_h.astype(jnp.bfloat16), v_ref[0, h],
                            preferred_element_type=jnp.float32)            # (TQ, Dh)
            ctx_ref[0, h] = ctx_h.astype(ctx_ref.dtype)
            if need_attn:
                attn_ref[0, h] = p_h.astype(attn_ref.dtype)

            # attn heads -> pair channels (struct_out), scalar x 2-D MACs per channel.
            for p in range(P):
                s_pair[p] = s_pair[p] + p_h * wpo_ref[h, p]

        # pair LayerNorm over the channel dim + double residual:  out = s + LN(s)
        inv_p = 1.0 / float(P)
        mu = s_pair[0]
        for p in range(1, P):
            mu = mu + s_pair[p]
        mu = mu * inv_p
        var = jnp.square(s_pair[0] - mu)
        for p in range(1, P):
            var = var + jnp.square(s_pair[p] - mu)
        rstd = jax.lax.rsqrt(var * inv_p + _LN_EPS)
        for p in range(P):
            ln_p = (s_pair[p] - mu) * rstd * g_ref[0, p] + b_ref[0, p]
            se_out_ref[0, p] = (s_pair[p] + ln_p).astype(se_out_ref.dtype)

    in_specs = [
        pl.BlockSpec((1, H, TQ, Dh), lambda b, i: (b, 0, i, 0)),
        pl.BlockSpec((1, H, L, Dh), lambda b, i: (b, 0, 0, 0)),
        pl.BlockSpec((1, H, L, Dh), lambda b, i: (b, 0, 0, 0)),
        pl.BlockSpec((1, P, TQ, L), lambda b, i: (b, 0, i, 0)),
        pl.BlockSpec(memory_space=pltpu.MemorySpace.SMEM),   # wpb
        pl.BlockSpec(memory_space=pltpu.MemorySpace.SMEM),   # wpo
        pl.BlockSpec(memory_space=pltpu.MemorySpace.SMEM),   # bpo
        pl.BlockSpec(memory_space=pltpu.MemorySpace.SMEM),   # pair LN gamma
        pl.BlockSpec(memory_space=pltpu.MemorySpace.SMEM),   # pair LN beta
    ]
    args = [q, k, v, se_t, wpb, wpo, bpo, ln_g, ln_b]
    if has_mask:
        in_specs.append(pl.BlockSpec((1, TQ, L), lambda b, i: (b, i, 0)))
        args.append(mask)

    out_specs = [pl.BlockSpec((1, H, TQ, Dh), lambda b, i: (b, 0, i, 0)),
                 pl.BlockSpec((1, P, TQ, L), lambda b, i: (b, 0, i, 0))]
    out_shape = [jax.ShapeDtypeStruct((B, H, L, Dh), jnp.bfloat16),
                 jax.ShapeDtypeStruct((B, P, L, L), jnp.float32)]
    if need_attn:
        out_specs.append(pl.BlockSpec((1, H, TQ, L), lambda b, i: (b, 0, i, 0)))
        out_shape.append(jax.ShapeDtypeStruct((B, H, L, L), jnp.float32))

    outs = pl.pallas_call(
        kern,
        grid=(B, pl.cdiv(L, TQ)),
        in_specs=in_specs,
        out_specs=out_specs,
        out_shape=tuple(out_shape),
        compiler_params=pltpu.CompilerParams(
            dimension_semantics=("parallel", "parallel")),
    )(*args)

    if need_attn:
        ctx, se_t_new, attn = outs
    else:
        (ctx, se_t_new), attn = outs, None
    return ctx, se_t_new, attn


# ---------------------------------------------------------------------------
# JAX glue (RoPE / reshapes / block wiring)
# ---------------------------------------------------------------------------

def apply_rope(x):
    """Standard rotate-half RoPE.  x: (B, H, L, Dh), Dh even."""
    B, H, L, Dh = x.shape
    half = Dh // 2
    inv_freq = 1.0 / (10000.0 ** (jnp.arange(half, dtype=jnp.float32) / half))
    ang = jnp.arange(L, dtype=jnp.float32)[:, None] * inv_freq[None, :]     # (L, half)
    cos = jnp.cos(ang)[None, None]
    sin = jnp.sin(ang)[None, None]
    x1, x2 = x[..., :half], x[..., half:]
    return jnp.concatenate([x1 * cos - x2 * sin, x1 * sin + x2 * cos], axis=-1)


def transformer_block(p, x, se_t, num_heads, key_padding_mask=None, attn_mask=None,
                      need_attn=False):
    B, L, E = x.shape
    H = num_heads
    Dh = E // H

    # sequence track: x_ln = attn_layer_norm(x)
    x_ln = layernorm(x.reshape(B * L, E), p["attn_ln_g"], p["attn_ln_b"]).reshape(B, L, E)

    # QKV projection + RoPE (head split / rotate left to XLA; tiny vs. the L^2 work)
    qkv = linear(x_ln.reshape(B * L, E), p["wqkv"], p["bqkv"]).reshape(B, L, 3, H, Dh)
    q = apply_rope(qkv[:, :, 0].transpose(0, 2, 1, 3)).astype(jnp.bfloat16)
    k = apply_rope(qkv[:, :, 1].transpose(0, 2, 1, 3)).astype(jnp.bfloat16)
    v = qkv[:, :, 2].transpose(0, 2, 1, 3).astype(jnp.bfloat16)

    mask = None
    if attn_mask is not None or key_padding_mask is not None:
        mask = jnp.zeros((B, L, L), jnp.float32)
        if attn_mask is not None:
            mask = mask + jnp.broadcast_to(attn_mask.astype(jnp.float32), (B, L, L))
        if key_padding_mask is not None:
            mask = mask + jnp.where(key_padding_mask[:, None, :], -1e9, 0.0)

    ctx, se_t_new, attn = attention_pair_fused(
        q, k, v, se_t, p["w_pair_bias"].T, p["w_pair_out"], p["b_pair_out"],
        p["pair_ln_g"], p["pair_ln_b"], mask, need_attn)

    # attention output projection
    ctx2 = ctx.transpose(0, 2, 1, 3).reshape(B * L, E)
    mh_out = linear(ctx2, p["wo"], p["bo"])                       # (B*L, E) f32

    # residual = x_ln + mh_out ; x_n = out_layer_norm(residual)   (fused)
    residual, x_n = add_layernorm(x_ln.reshape(B * L, E), mh_out,
                                  p["out_ln_g"], p["out_ln_b"])

    # transition (SwiGLU -> Linear) with the second residual fused into the projection
    h = swiglu(x_n, p["w1"], p["b1"], p["wg"], p["bg"], p["beta"])
    x_out = linear_residual(h, p["w2"], p["b2"], residual).reshape(B, L, E)
    return x_out, se_t_new, (attn if need_attn else None)


def cformer_forward(params, x, struct_embed, num_heads, key_padding_mask=None,
                    need_attn_weights=False, attn_mask=None):
    B, L, E = x.shape
    P = struct_embed.shape[-1]
    # pair track lives channel-major (B, P, L, L) for the whole stack (one transpose in/out)
    se_t = jnp.transpose(struct_embed, (0, 3, 1, 2))

    attn_weights = [] if need_attn_weights else None
    for blk in params["blocks"]:
        x, se_t, attn = transformer_block(blk, x, se_t, num_heads, key_padding_mask,
                                          attn_mask, need_attn_weights)
        if need_attn_weights:
            attn_weights.append(attn)

    x = layernorm(x.reshape(B * L, E), params["final_ln_g"],
                  params["final_ln_b"]).reshape(B, L, E)
    se = jnp.transpose(se_t, (0, 2, 3, 1)).reshape(B * L * L, P)
    se = layernorm(se, params["pair_final_ln_g"],
                   params["pair_final_ln_b"]).reshape(B, L, L, P)
    return x, se, attn_weights


# ---------------------------------------------------------------------------
# Deterministic parameter initialization (synthetic weights)
# ---------------------------------------------------------------------------

def init_params(key, embed_dim, pair_dim, num_blocks, num_heads,
                transition_factor=4, attn_qkv_bias=False):
    hidden = int(2 / 3 * transition_factor * embed_dim)   # same expr as PyTorch module

    def nrm(k, shape, scale=0.02):
        return scale * jax.random.normal(k, shape, dtype=jnp.float32)

    params = {"blocks": []}
    bkeys = jax.random.split(key, num_blocks + 1)
    for bkey in bkeys[:num_blocks]:
        ks = jax.random.split(bkey, 12)
        blk = {
            "attn_ln_g": jnp.ones((1, embed_dim), jnp.float32),
            "attn_ln_b": jnp.zeros((1, embed_dim), jnp.float32),
            "wqkv": nrm(ks[0], (embed_dim, 3 * embed_dim)),
            "bqkv": (nrm(ks[1], (1, 3 * embed_dim)) if attn_qkv_bias
                     else jnp.zeros((1, 3 * embed_dim), jnp.float32)),
            "w_pair_bias": nrm(ks[2], (pair_dim, num_heads)),
            # b_pair_bias is a per-head constant logit shift -> softmax-invariant (kept
            # only for parameter-interface parity; the kernels do not need it).
            "b_pair_bias": jnp.zeros((1, num_heads), jnp.float32),
            "wo": nrm(ks[3], (embed_dim, embed_dim)),
            "bo": nrm(ks[4], (1, embed_dim)),
            "w_pair_out": nrm(ks[5], (num_heads, pair_dim)),
            "b_pair_out": nrm(ks[6], (1, pair_dim)),
            "out_ln_g": jnp.ones((1, embed_dim), jnp.float32),
            "out_ln_b": jnp.zeros((1, embed_dim), jnp.float32),
            "pair_ln_g": jnp.ones((1, pair_dim), jnp.float32),
            "pair_ln_b": jnp.zeros((1, pair_dim), jnp.float32),
            # transition = SwiGLU(E -> hidden) -> Linear(hidden -> E)
            "w1": nrm(ks[7], (embed_dim, hidden)),
            "b1": nrm(ks[8], (1, hidden)),
            "wg": nrm(ks[9], (embed_dim, hidden)),
            "bg": nrm(ks[10], (1, hidden)),
            "beta": jnp.ones((1,), jnp.float32),       # learnable SwiGLU beta
            "w2": nrm(ks[11], (hidden, embed_dim)),
            "b2": jnp.zeros((1, embed_dim), jnp.float32),
        }
        params["blocks"].append(blk)
    params["final_ln_g"] = jnp.ones((1, embed_dim), jnp.float32)
    params["final_ln_b"] = jnp.zeros((1, embed_dim), jnp.float32)
    params["pair_final_ln_g"] = jnp.ones((1, pair_dim), jnp.float32)
    params["pair_final_ln_b"] = jnp.zeros((1, pair_dim), jnp.float32)
    return params


# ---------------------------------------------------------------------------

if __name__ == "__main__":
    B, L = 2, 8
    embed_dim, pair_dim, num_blocks, num_heads = 48, 16, 2, 4

    key = jax.random.PRNGKey(0)
    kp, kx, ks = jax.random.split(key, 3)
    params = init_params(kp, embed_dim, pair_dim, num_blocks, num_heads)

    x = jax.random.normal(kx, (B, L, embed_dim), dtype=jnp.float32)
    struct_embed = jax.random.normal(ks, (B, L, L, pair_dim), dtype=jnp.float32)

    fwd = jax.jit(cformer_forward, static_argnames=("num_heads", "need_attn_weights"))
    x_out, se_out, attn_w = fwd(params, x, struct_embed, num_heads=num_heads)
    jax.block_until_ready((x_out, se_out))

    assert x_out.shape == (B, L, embed_dim)
    assert se_out.shape == (B, L, L, pair_dim)
    assert bool(jnp.all(jnp.isfinite(x_out))) and bool(jnp.all(jnp.isfinite(se_out)))
    assert attn_w is None
    print("KERNEL_OK")
</pallas_src>

<mosaic_0001>
module attributes {stable_mosaic.version = 11 : i64} {
  func.func @_layernorm_kernel(%arg0: i32, %arg1: memref<16x48xf32, #tpu.memory_space<vmem>>, %arg2: memref<1x48xf32, #tpu.memory_space<vmem>>, %arg3: memref<1x48xf32, #tpu.memory_space<vmem>>, %arg4: memref<16x48xf32, #tpu.memory_space<vmem>>) attributes {dimension_semantics = [#tpu.dimension_semantics<parallel>], iteration_bounds = array<i64: 1>, scalar_prefetch = 0 : i64, scratch_operands = 0 : i64, tpu.core_type = #tpu.core_type<tc>, window_params = [{transform_indices = @transform_0, window_bounds = array<i64: 16, 48>}, {pipeline_mode = #tpu.pipeline_mode<synchronous>, transform_indices = @transform_1, window_bounds = array<i64: 1, 48>}, {pipeline_mode = #tpu.pipeline_mode<synchronous>, transform_indices = @transform_2, window_bounds = array<i64: 1, 48>}, {transform_indices = @transform_3, window_bounds = array<i64: 16, 48>}]} {
    %c0 = arith.constant 0 : index
    %c0_0 = arith.constant 0 : index
    %0 = vector.load %arg1[%c0, %c0_0] : memref<16x48xf32, #tpu.memory_space<vmem>>, vector<16x48xf32>
    %cst = arith.constant dense<0.000000e+00> : vector<16xf32>
    %1 = vector.multi_reduction <add>, %0, %cst [1] : vector<16x48xf32> to vector<16xf32>
    %2 = vector.shape_cast %1 : vector<16xf32> to vector<16x1xf32>
    %cst_1 = arith.constant 4.800000e+01 : f32
    %3 = vector.broadcast %cst_1 : f32 to vector<16x1xf32>
    %4 = arith.divf %2, %3 : vector<16x1xf32>
    %5 = vector.broadcast %4 : vector<16x1xf32> to vector<16x48xf32>
    %6 = arith.subf %0, %5 : vector<16x48xf32>
    %7 = arith.mulf %6, %6 : vector<16x48xf32>
    %cst_2 = arith.constant dense<0.000000e+00> : vector<16xf32>
    %8 = vector.multi_reduction <add>, %7, %cst_2 [1] : vector<16x48xf32> to vector<16xf32>
    %9 = vector.shape_cast %8 : vector<16xf32> to vector<16x1xf32>
    %cst_3 = arith.constant 4.800000e+01 : f32
    %10 = vector.broadcast %cst_3 : f32 to vector<16x1xf32>
    %11 = arith.divf %9, %10 : vector<16x1xf32>
    %12 = vector.broadcast %4 : vector<16x1xf32> to vector<16x48xf32>
    %13 = arith.subf %0, %12 : vector<16x48xf32>
    %cst_4 = arith.constant 9.99999974E-6 : f32
    %14 = vector.broadcast %cst_4 : f32 to vector<16x1xf32>
    %15 = arith.addf %11, %14 : vector<16x1xf32>
    %16 = math.rsqrt %15 : vector<16x1xf32>
    %17 = vector.broadcast %16 : vector<16x1xf32> to vector<16x48xf32>
    %18 = arith.mulf %13, %17 : vector<16x48xf32>
    %c0_5 = arith.constant 0 : index
    %c0_6 = arith.constant 0 : index
    %19 = vector.load %arg2[%c0_5, %c0_6] : memref<1x48xf32, #tpu.memory_space<vmem>>, vector<1x48xf32>
    %20 = vector.broadcast %19 : vector<1x48xf32> to vector<16x48xf32>
    %21 = arith.mulf %18, %20 : vector<16x48xf32>
    %c0_7 = arith.constant 0 : index
    %c0_8 = arith.constant 0 : index
    %22 = vector.load %arg3[%c0_7, %c0_8] : memref<1x48xf32, #tpu.memory_space<vmem>>, vector<1x48xf32>
    %23 = vector.broadcast %22 : vector<1x48xf32> to vector<16x48xf32>
    %24 = arith.addf %21, %23 : vector<16x48xf32>
    %c0_9 = arith.constant 0 : index
    %c0_10 = arith.constant 0 : index
    %25 = vector.load %arg4[%c0_9, %c0_10] : memref<16x48xf32, #tpu.memory_space<vmem>>, vector<16x48xf32>
    tpu.vector_store %arg4[%c0_9, %c0_10], %24 {strides = array<i32>} : memref<16x48xf32, #tpu.memory_space<vmem>>, vector<16x48xf32>,
    return
  }
  func.func @transform_0(%arg0: i32) -> (i32, i32) {
    %c0_i32 = arith.constant 0 : i32
    %c0_i32_0 = arith.constant 0 : i32
    return %arg0, %c0_i32 : i32, i32
  }
  func.func @transform_1(%arg0: i32) -> (i32, i32) {
    %c0_i32 = arith.constant 0 : i32
    %c0_i32_0 = arith.constant 0 : i32
    %c0_i32_1 = arith.constant 0 : i32
    return %c0_i32, %c0_i32_0 : i32, i32
  }
  func.func @transform_2(%arg0: i32) -> (i32, i32) {
    %c0_i32 = arith.constant 0 : i32
    %c0_i32_0 = arith.constant 0 : i32
    %c0_i32_1 = arith.constant 0 : i32
    return %c0_i32, %c0_i32_0 : i32, i32
  }
  func.func @transform_3(%arg0: i32) -> (i32, i32) {
    %c0_i32 = arith.constant 0 : i32
    %c0_i32_0 = arith.constant 0 : i32
    return %arg0, %c0_i32 : i32, i32
  }
}

module attributes {stable_mosaic.version = 11 : i64} {
  func.func @_linear_kernel(%arg0: i32, %arg1: memref<16x48xbf16, #tpu.memory_space<vmem>>, %arg2: memref<48x144xbf16, #tpu.memory_space<vmem>>, %arg3: memref<1x144xf32, #tpu.memory_space<vmem>>, %arg4: memref<16x144xf32, #tpu.memory_space<vmem>>) attributes {dimension_semantics = [#tpu.dimension_semantics<parallel>], iteration_bounds = array<i64: 1>, scalar_prefetch = 0 : i64, scratch_operands = 0 : i64, tpu.core_type = #tpu.core_type<tc>, window_params = [{transform_indices = @transform_0, window_bounds = array<i64: 16, 48>}, {pipeline_mode = #tpu.pipeline_mode<synchronous>, transform_indices = @transform_1, window_bounds = array<i64: 48, 144>}, {pipeline_mode = #tpu.pipeline_mode<synchronous>, transform_indices = @transform_2, window_bounds = array<i64: 1, 144>}, {transform_indices = @transform_3, window_bounds = array<i64: 16, 144>}]} {
    %c0 = arith.constant 0 : index
    %c0_0 = arith.constant 0 : index
    %0 = vector.load %arg1[%c0, %c0_0] : memref<16x48xbf16, #tpu.memory_space<vmem>>, vector<16x48xbf16>
    %c0_1 = arith.constant 0 : index
    %c0_2 = arith.constant 0 : index
    %1 = vector.load %arg2[%c0_1, %c0_2] : memref<48x144xbf16, #tpu.memory_space<vmem>>, vector<48x144xbf16>
    %cst = arith.constant dense<0.000000e+00> : vector<16x144xf32>
    %2 = tpu.matmul %0, %1, %cst {dimension_numbers = #tpu.dot_dimension_numbers<[1], [0], [0], [1], [0, 0, 1, 1], [], []>} : vector<16x48xbf16>, vector<48x144xbf16>, vector<16x144xf32> -> vector<16x144xf32>
    %c0_3 = arith.constant 0 : index
    %c0_4 = arith.constant 0 : index
    %3 = vector.load %arg3[%c0_3, %c0_4] : memref<1x144xf32, #tpu.memory_space<vmem>>, vector<1x144xf32>
    %4 = vector.broadcast %3 : vector<1x144xf32> to vector<16x144xf32>
    %5 = arith.addf %2, %4 : vector<16x144xf32>
    %c0_5 = arith.constant 0 : index
    %c0_6 = arith.constant 0 : index
    %6 = vector.load %arg4[%c0_5, %c0_6] : memref<16x144xf32, #tpu.memory_space<vmem>>, vector<16x144xf32>
    tpu.vector_store %arg4[%c0_5, %c0_6], %5 {strides = array<i32>} : memref<16x144xf32, #tpu.memory_space<vmem>>, vector<16x144xf32>,
    return
  }
  func.func @transform_0(%arg0: i32) -> (i32, i32) {
    %c0_i32 = arith.constant 0 : i32
    %c0_i32_0 = arith.constant 0 : i32
    return %arg0, %c0_i32 : i32, i32
  }
  func.func @transform_1(%arg0: i32) -> (i32, i32) {
    %c0_i32 = arith.constant 0 : i32
    %c0_i32_0 = arith.constant 0 : i32
    %c0_i32_1 = arith.constant 0 : i32
    return %c0_i32, %c0_i32_0 : i32, i32
  }
  func.func @transform_2(%arg0: i32) -> (i32, i32) {
    %c0_i32 = arith.constant 0 : i32
    %c0_i32_0 = arith.constant 0 : i32
    %c0_i32_1 = arith.constant 0 : i32
    return %c0_i32, %c0_i32_0 : i32, i32
  }
  func.func @transform_3(%arg0: i32) -> (i32, i32) {
    %c0_i32 = arith.constant 0 : i32
    %c0_i32_0 = arith.constant 0 : i32
    return %arg0, %c0_i32 : i32, i32
  }
}

module attributes {stable_mosaic.version = 11 : i64} {
  func.func @_linear_kernel(%arg0: i32, %arg1: memref<16x48xbf16, #tpu.memory_space<vmem>>, %arg2: memref<48x48xbf16, #tpu.memory_space<vmem>>, %arg3: memref<1x48xf32, #tpu.memory_space<vmem>>, %arg4: memref<16x48xf32, #tpu.memory_space<vmem>>) attributes {dimension_semantics = [#tpu.dimension_semantics<parallel>], iteration_bounds = array<i64: 1>, scalar_prefetch = 0 : i64, scratch_operands = 0 : i64, tpu.core_type = #tpu.core_type<tc>, window_params = [{transform_indices = @transform_0, window_bounds = array<i64: 16, 48>}, {pipeline_mode = #tpu.pipeline_mode<synchronous>, transform_indices = @transform_1, window_bounds = array<i64: 48, 48>}, {pipeline_mode = #tpu.pipeline_mode<synchronous>, transform_indices = @transform_2, window_bounds = array<i64: 1, 48>}, {transform_indices = @transform_3, window_bounds = array<i64: 16, 48>}]} {
    %c0 = arith.constant 0 : index
    %c0_0 = arith.constant 0 : index
    %0 = vector.load %arg1[%c0, %c0_0] : memref<16x48xbf16, #tpu.memory_space<vmem>>, vector<16x48xbf16>
    %c0_1 = arith.constant 0 : index
    %c0_2 = arith.constant 0 : index
    %1 = vector.load %arg2[%c0_1, %c0_2] : memref<48x48xbf16, #tpu.memory_space<vmem>>, vector<48x48xbf16>
    %cst = arith.constant dense<0.000000e+00> : vector<16x48xf32>
    %2 = tpu.matmul %0, %1, %cst {dimension_numbers = #tpu.dot_dimension_numbers<[1], [0], [0], [1], [0, 0, 1, 1], [], []>} : vector<16x48xbf16>, vector<48x48xbf16>, vector<16x48xf32> -> vector<16x48xf32>
    %c0_3 = arith.constant 0 : index
    %c0_4 = arith.constant 0 : index
    %3 = vector.load %arg3[%c0_3, %c0_4] : memref<1x48xf32, #tpu.memory_space<vmem>>, vector<1x48xf32>
    %4 = vector.broadcast %3 : vector<1x48xf32> to vector<16x48xf32>
    %5 = arith.addf %2, %4 : vector<16x48xf32>
    %c0_5 = arith.constant 0 : index
    %c0_6 = arith.constant 0 : index
    %6 = vector.load %arg4[%c0_5, %c0_6] : memref<16x48xf32, #tpu.memory_space<vmem>>, vector<16x48xf32>
    tpu.vector_store %arg4[%c0_5, %c0_6], %5 {strides = array<i32>} : memref<16x48xf32, #tpu.memory_space<vmem>>, vector<16x48xf32>,
    return
  }
  func.func @transform_0(%arg0: i32) -> (i32, i32) {
    %c0_i32 = arith.constant 0 : i32
    %c0_i32_0 = arith.constant 0 : i32
    return %arg0, %c0_i32 : i32, i32
  }
  func.func @transform_1(%arg0: i32) -> (i32, i32) {
    %c0_i32 = arith.constant 0 : i32
    %c0_i32_0 = arith.constant 0 : i32
    %c0_i32_1 = arith.constant 0 : i32
    return %c0_i32, %c0_i32_0 : i32, i32
  }
  func.func @transform_2(%arg0: i32) -> (i32, i32) {
    %c0_i32 = arith.constant 0 : i32
    %c0_i32_0 = arith.constant 0 : i32
    %c0_i32_1 = arith.constant 0 : i32
    return %c0_i32, %c0_i32_0 : i32, i32
  }
  func.func @transform_3(%arg0: i32) -> (i32, i32) {
    %c0_i32 = arith.constant 0 : i32
    %c0_i32_0 = arith.constant 0 : i32
    return %arg0, %c0_i32 : i32, i32
  }
}

module attributes {stable_mosaic.version = 11 : i64} {
  func.func @_add_layernorm_kernel(%arg0: i32, %arg1: memref<16x48xf32, #tpu.memory_space<vmem>>, %arg2: memref<16x48xf32, #tpu.memory_space<vmem>>, %arg3: memref<1x48xf32, #tpu.memory_space<vmem>>, %arg4: memref<1x48xf32, #tpu.memory_space<vmem>>, %arg5: memref<16x48xf32, #tpu.memory_space<vmem>>, %arg6: memref<16x48xf32, #tpu.memory_space<vmem>>) attributes {dimension_semantics = [#tpu.dimension_semantics<parallel>], iteration_bounds = array<i64: 1>, scalar_prefetch = 0 : i64, scratch_operands = 0 : i64, tpu.core_type = #tpu.core_type<tc>, window_params = [{transform_indices = @transform_0, window_bounds = array<i64: 16, 48>}, {transform_indices = @transform_1, window_bounds = array<i64: 16, 48>}, {pipeline_mode = #tpu.pipeline_mode<synchronous>, transform_indices = @transform_2, window_bounds = array<i64: 1, 48>}, {pipeline_mode = #tpu.pipeline_mode<synchronous>, transform_indices = @transform_3, window_bounds = array<i64: 1, 48>}, {transform_indices = @transform_4, window_bounds = array<i64: 16, 48>}, {transform_indices = @transform_5, window_bounds = array<i64: 16, 48>}]} {
    %c0 = arith.constant 0 : index
    %c0_0 = arith.constant 0 : index
    %0 = vector.load %arg1[%c0, %c0_0] : memref<16x48xf32, #tpu.memory_space<vmem>>, vector<16x48xf32>
    %c0_1 = arith.constant 0 : index
    %c0_2 = arith.constant 0 : index
    %1 = vector.load %arg2[%c0_1, %c0_2] : memref<16x48xf32, #tpu.memory_space<vmem>>, vector<16x48xf32>
    %2 = arith.addf %0, %1 : vector<16x48xf32>
    %c0_3 = arith.constant 0 : index
    %c0_4 = arith.constant 0 : index
    %3 = vector.load %arg5[%c0_3, %c0_4] : memref<16x48xf32, #tpu.memory_space<vmem>>, vector<16x48xf32>
    tpu.vector_store %arg5[%c0_3, %c0_4], %2 {strides = array<i32>} : memref<16x48xf32, #tpu.memory_space<vmem>>, vector<16x48xf32>,
    %cst = arith.constant dense<0.000000e+00> : vector<16xf32>
    %4 = vector.multi_reduction <add>, %2, %cst [1] : vector<16x48xf32> to vector<16xf32>
    %5 = vector.shape_cast %4 : vector<16xf32> to vector<16x1xf32>
    %cst_5 = arith.constant 4.800000e+01 : f32
    %6 = vector.broadcast %cst_5 : f32 to vector<16x1xf32>
    %7 = arith.divf %5, %6 : vector<16x1xf32>
    %8 = vector.broadcast %7 : vector<16x1xf32> to vector<16x48xf32>
    %9 = arith.subf %2, %8 : vector<16x48xf32>
    %10 = arith.mulf %9, %9 : vector<16x48xf32>
    %cst_6 = arith.constant dense<0.000000e+00> : vector<16xf32>
    %11 = vector.multi_reduction <add>, %10, %cst_6 [1] : vector<16x48xf32> to vector<16xf32>
    %12 = vector.shape_cast %11 : vector<16xf32> to vector<16x1xf32>
    %cst_7 = arith.constant 4.800000e+01 : f32
    %13 = vector.broadcast %cst_7 : f32 to vector<16x1xf32>
    %14 = arith.divf %12, %13 : vector<16x1xf32>
    %15 = vector.broadcast %7 : vector<16x1xf32> to vector<16x48xf32>
    %16 = arith.subf %2, %15 : vector<16x48xf32>
    %cst_8 = arith.constant 9.99999974E-6 : f32
    %17 = vector.broadcast %cst_8 : f32 to vector<16x1xf32>
    %18 = arith.addf %14, %17 : vector<16x1xf32>
    %19 = math.rsqrt %18 : vector<16x1xf32>
    %20 = vector.broadcast %19 : vector<16x1xf32> to vector<16x48xf32>
    %21 = arith.mulf %16, %20 : vector<16x48xf32>
    %c0_9 = arith.constant 0 : index
    %c0_10 = arith.constant 0 : index
    %22 = vector.load %arg3[%c0_9, %c0_10] : memref<1x48xf32, #tpu.memory_space<vmem>>, vector<1x48xf32>
    %23 = vector.broadcast %22 : vector<1x48xf32> to vector<16x48xf32>
    %24 = arith.mulf %21, %23 : vector<16x48xf32>
    %c0_11 = arith.constant 0 : index
    %c0_12 = arith.constant 0 : index
    %25 = vector.load %arg4[%c0_11, %c0_12] : memref<1x48xf32, #tpu.memory_space<vmem>>, vector<1x48xf32>
    %26 = vector.broadcast %25 : vector<1x48xf32> to vector<16x48xf32>
    %27 = arith.addf %24, %26 : vector<16x48xf32>
    %c0_13 = arith.constant 0 : index
    %c0_14 = arith.constant 0 : index
    %28 = vector.load %arg6[%c0_13, %c0_14] : memref<16x48xf32, #tpu.memory_space<vmem>>, vector<16x48xf32>
    tpu.vector_store %arg6[%c0_13, %c0_14], %27 {strides = array<i32>} : memref<16x48xf32, #tpu.memory_space<vmem>>, vector<16x48xf32>,
    return
  }
  func.func @transform_0(%arg0: i32) -> (i32, i32) {
    %c0_i32 = arith.constant 0 : i32
    %c0_i32_0 = arith.constant 0 : i32
    return %arg0, %c0_i32 : i32, i32
  }
  func.func @transform_1(%arg0: i32) -> (i32, i32) {
    %c0_i32 = arith.constant 0 : i32
    %c0_i32_0 = arith.constant 0 : i32
    return %arg0, %c0_i32 : i32, i32
  }
  func.func @transform_2(%arg0: i32) -> (i32, i32) {
    %c0_i32 = arith.constant 0 : i32
    %c0_i32_0 = arith.constant 0 : i32
    %c0_i32_1 = arith.constant 0 : i32
    return %c0_i32, %c0_i32_0 : i32, i32
  }
  func.func @transform_3(%arg0: i32) -> (i32, i32) {
    %c0_i32 = arith.constant 0 : i32
    %c0_i32_0 = arith.constant 0 : i32
    %c0_i32_1 = arith.constant 0 : i32
    return %c0_i32, %c0_i32_0 : i32, i32
  }
  func.func @transform_4(%arg0: i32) -> (i32, i32) {
    %c0_i32 = arith.constant 0 : i32
    %c0_i32_0 = arith.constant 0 : i32
    return %arg0, %c0_i32 : i32, i32
  }
  func.func @transform_5(%arg0: i32) -> (i32, i32) {
    %c0_i32 = arith.constant 0 : i32
    %c0_i32_0 = arith.constant 0 : i32
    return %arg0, %c0_i32 : i32, i32
  }
}

module attributes {stable_mosaic.version = 11 : i64} {
  func.func @_swiglu_kernel(%arg0: i32, %arg1: memref<16x48xbf16, #tpu.memory_space<vmem>>, %arg2: memref<48x128xbf16, #tpu.memory_space<vmem>>, %arg3: memref<1x128xf32, #tpu.memory_space<vmem>>, %arg4: memref<48x128xbf16, #tpu.memory_space<vmem>>, %arg5: memref<1x128xf32, #tpu.memory_space<vmem>>, %arg6: memref<1xf32, #tpu.memory_space<smem>>, %arg7: memref<16x128xbf16, #tpu.memory_space<vmem>>) attributes {dimension_semantics = [#tpu.dimension_semantics<parallel>], iteration_bounds = array<i64: 1>, scalar_prefetch = 0 : i64, scratch_operands = 0 : i64, tpu.core_type = #tpu.core_type<tc>, window_params = [{transform_indices = @transform_0, window_bounds = array<i64: 16, 48>}, {pipeline_mode = #tpu.pipeline_mode<synchronous>, transform_indices = @transform_1, window_bounds = array<i64: 48, 128>}, {pipeline_mode = #tpu.pipeline_mode<synchronous>, transform_indices = @transform_2, window_bounds = array<i64: 1, 128>}, {pipeline_mode = #tpu.pipeline_mode<synchronous>, transform_indices = @transform_3, window_bounds = array<i64: 48, 128>}, {pipeline_mode = #tpu.pipeline_mode<synchronous>, transform_indices = @transform_4, window_bounds = array<i64: 1, 128>}, {transform_indices = @transform_5, window_bounds = array<i64: 1>}, {transform_indices = @transform_6, window_bounds = array<i64: 16, 128>}]} {
    %c0 = arith.constant 0 : index
    %c0_0 = arith.constant 0 : index
    %0 = vector.load %arg1[%c0, %c0_0] : memref<16x48xbf16, #tpu.memory_space<vmem>>, vector<16x48xbf16>
    %c0_1 = arith.constant 0 : index
    %c0_2 = arith.constant 0 : index
    %1 = vector.load %arg2[%c0_1, %c0_2] : memref<48x128xbf16, #tpu.memory_space<vmem>>, vector<48x128xbf16>
    %cst = arith.constant dense<0.000000e+00> : vector<16x128xf32>
    %2 = tpu.matmul %0, %1, %cst {dimension_numbers = #tpu.dot_dimension_numbers<[1], [0], [0], [1], [0, 0, 1, 1], [], []>} : vector<16x48xbf16>, vector<48x128xbf16>, vector<16x128xf32> -> vector<16x128xf32>
    %c0_3 = arith.constant 0 : index
    %c0_4 = arith.constant 0 : index
    %3 = vector.load %arg3[%c0_3, %c0_4] : memref<1x128xf32, #tpu.memory_space<vmem>>, vector<1x128xf32>
    %4 = vector.broadcast %3 : vector<1x128xf32> to vector<16x128xf32>
    %5 = arith.addf %2, %4 : vector<16x128xf32>
    %c0_5 = arith.constant 0 : index
    %c0_6 = arith.constant 0 : index
    %6 = vector.load %arg4[%c0_5, %c0_6] : memref<48x128xbf16, #tpu.memory_space<vmem>>, vector<48x128xbf16>
    %cst_7 = arith.constant dense<0.000000e+00> : vector<16x128xf32>
    %7 = tpu.matmul %0, %6, %cst_7 {dimension_numbers = #tpu.dot_dimension_numbers<[1], [0], [0], [1], [0, 0, 1, 1], [], []>} : vector<16x48xbf16>, vector<48x128xbf16>, vector<16x128xf32> -> vector<16x128xf32>
    %c0_8 = arith.constant 0 : index
    %c0_9 = arith.constant 0 : index
    %8 = vector.load %arg5[%c0_8, %c0_9] : memref<1x128xf32, #tpu.memory_space<vmem>>, vector<1x128xf32>
    %9 = vector.broadcast %8 : vector<1x128xf32> to vector<16x128xf32>
    %10 = arith.addf %7, %9 : vector<16x128xf32>
    %c0_10 = arith.constant 0 : index
    %11 = memref.load %arg6[%c0_10] : memref<1xf32, #tpu.memory_space<smem>>
    %12 = vector.broadcast %11 : f32 to vector<16x128xf32>
    %13 = arith.mulf %12, %5 : vector<16x128xf32>
    %14 = arith.negf %13 : vector<16x128xf32>
    %15 = math.exp %14 : vector<16x128xf32>
    %cst_11 = arith.constant 1.000000e+00 : f32
    %16 = vector.broadcast %cst_11 : f32 to vector<16x128xf32>
    %17 = arith.addf %16, %15 : vector<16x128xf32>
    %18 = arith.divf %16, %17 : vector<16x128xf32>
    %19 = arith.mulf %5, %18 : vector<16x128xf32>
    %20 = arith.mulf %19, %10 : vector<16x128xf32>
    %21 = arith.truncf %20 : vector<16x128xf32> to vector<16x128xbf16>
    %c0_12 = arith.constant 0 : index
    %c0_13 = arith.constant 0 : index
    %22 = vector.load %arg7[%c0_12, %c0_13] : memref<16x128xbf16, #tpu.memory_space<vmem>>, vector<16x128xbf16>
    tpu.vector_store %arg7[%c0_12, %c0_13], %21 {strides = array<i32>} : memref<16x128xbf16, #tpu.memory_space<vmem>>, vector<16x128xbf16>,
    return
  }
  func.func @transform_0(%arg0: i32) -> (i32, i32) {
    %c0_i32 = arith.constant 0 : i32
    %c0_i32_0 = arith.constant 0 : i32
    return %arg0, %c0_i32 : i32, i32
  }
  func.func @transform_1(%arg0: i32) -> (i32, i32) {
    %c0_i32 = arith.constant 0 : i32
    %c0_i32_0 = arith.constant 0 : i32
    %c0_i32_1 = arith.constant 0 : i32
    return %c0_i32, %c0_i32_0 : i32, i32
  }
  func.func @transform_2(%arg0: i32) -> (i32, i32) {
    %c0_i32 = arith.constant 0 : i32
    %c0_i32_0 = arith.constant 0 : i32
    %c0_i32_1 = arith.constant 0 : i32
    return %c0_i32, %c0_i32_0 : i32, i32
  }
  func.func @transform_3(%arg0: i32) -> (i32, i32) {
    %c0_i32 = arith.constant 0 : i32
    %c0_i32_0 = arith.constant 0 : i32
    %c0_i32_1 = arith.constant 0 : i32
    return %c0_i32, %c0_i32_0 : i32, i32
  }
  func.func @transform_4(%arg0: i32) -> (i32, i32) {
    %c0_i32 = arith.constant 0 : i32
    %c0_i32_0 = arith.constant 0 : i32
    %c0_i32_1 = arith.constant 0 : i32
    return %c0_i32, %c0_i32_0 : i32, i32
  }
  func.func @transform_5(%arg0: i32) -> i32 {
    %c0_i32 = arith.constant 0 : i32
    %c0_i32_0 = arith.constant 0 : i32
    return %c0_i32 : i32
  }
  func.func @transform_6(%arg0: i32) -> (i32, i32) {
    %c0_i32 = arith.constant 0 : i32
    %c0_i32_0 = arith.constant 0 : i32
    return %arg0, %c0_i32 : i32, i32
  }
}

module attributes {stable_mosaic.version = 11 : i64} {
  func.func @kern(%arg0: i32, %arg1: i32, %arg2: memref<1x4x8x12xbf16, #tpu.memory_space<vmem>>, %arg3: memref<1x4x8x12xbf16, #tpu.memory_space<vmem>>, %arg4: memref<1x4x8x12xbf16, #tpu.memory_space<vmem>>, %arg5: memref<1x16x8x8xf32, #tpu.memory_space<vmem>>, %arg6: memref<4x16xf32, #tpu.memory_space<smem>>, %arg7: memref<4x16xf32, #tpu.memory_space<smem>>, %arg8: memref<1x16xf32, #tpu.memory_space<smem>>, %arg9: memref<1x16xf32, #tpu.memory_space<smem>>, %arg10: memref<1x16xf32, #tpu.memory_space<smem>>, %arg11: memref<1x4x8x12xbf16, #tpu.memory_space<vmem>>, %arg12: memref<1x16x8x8xf32, #tpu.memory_space<vmem>>) attributes {dimension_semantics = [#tpu.dimension_semantics<parallel>, #tpu.dimension_semantics<parallel>], iteration_bounds = array<i64: 2, 1>, scalar_prefetch = 0 : i64, scratch_operands = 0 : i64, tpu.core_type = #tpu.core_type<tc>, window_params = [{transform_indices = @transform_0, window_bounds = array<i64: 1, 4, 8, 12>}, {transform_indices = @transform_1, window_bounds = array<i64: 1, 4, 8, 12>}, {transform_indices = @transform_2, window_bounds = array<i64: 1, 4, 8, 12>}, {transform_indices = @transform_3, window_bounds = array<i64: 1, 16, 8, 8>}, {transform_indices = @transform_4, window_bounds = array<i64: 4, 16>}, {transform_indices = @transform_5, window_bounds = array<i64: 4, 16>}, {transform_indices = @transform_6, window_bounds = array<i64: 1, 16>}, {transform_indices = @transform_7, window_bounds = array<i64: 1, 16>}, {transform_indices = @transform_8, window_bounds = array<i64: 1, 16>}, {transform_indices = @transform_9, window_bounds = array<i64: 1, 4, 8, 12>}, {transform_indices = @transform_10, window_bounds = array<i64: 1, 16, 8, 8>}]} {
    %c0 = arith.constant 0 : index
    %c0_0 = arith.constant 0 : index
    %c0_1 = arith.constant 0 : index
    %c0_2 = arith.constant 0 : index
    %0 = vector.load %arg5[%c0, %c0_0, %c0_1, %c0_2] : memref<1x16x8x8xf32, #tpu.memory_space<vmem>>, vector<1x1x8x8xf32>
    %1 = vector.shape_cast %0 : vector<1x1x8x8xf32> to vector<8x8xf32>
    %c0_3 = arith.constant 0 : index
    %c1 = arith.constant 1 : index
    %c0_4 = arith.constant 0 : index
    %c0_5 = arith.constant 0 : index
    %2 = vector.load %arg5[%c0_3, %c1, %c0_4, %c0_5] : memref<1x16x8x8xf32, #tpu.memory_space<vmem>>, vector<1x1x8x8xf32>
    %3 = vector.shape_cast %2 : vector<1x1x8x8xf32> to vector<8x8xf32>
    %c0_6 = arith.constant 0 : index
    %c2 = arith.constant 2 : index
    %c0_7 = arith.constant 0 : index
    %c0_8 = arith.constant 0 : index
    %4 = vector.load %arg5[%c0_6, %c2, %c0_7, %c0_8] : memref<1x16x8x8xf32, #tpu.memory_space<vmem>>, vector<1x1x8x8xf32>
    %5 = vector.shape_cast %4 : vector<1x1x8x8xf32> to vector<8x8xf32>
    %c0_9 = arith.constant 0 : index
    %c3 = arith.constant 3 : index
    %c0_10 = arith.constant 0 : index
    %c0_11 = arith.constant 0 : index
    %6 = vector.load %arg5[%c0_9, %c3, %c0_10, %c0_11] : memref<1x16x8x8xf32, #tpu.memory_space<vmem>>, vector<1x1x8x8xf32>
    %7 = vector.shape_cast %6 : vector<1x1x8x8xf32> to vector<8x8xf32>
    %c0_12 = arith.constant 0 : index
    %c4 = arith.constant 4 : index
    %c0_13 = arith.constant 0 : index
    %c0_14 = arith.constant 0 : index
    %8 = vector.load %arg5[%c0_12, %c4, %c0_13, %c0_14] : memref<1x16x8x8xf32, #tpu.memory_space<vmem>>, vector<1x1x8x8xf32>
    %9 = vector.shape_cast %8 : vector<1x1x8x8xf32> to vector<8x8xf32>
    %c0_15 = arith.constant 0 : index
    %c5 = arith.constant 5 : index
    %c0_16 = arith.constant 0 : index
    %c0_17 = arith.constant 0 : index
    %10 = vector.load %arg5[%c0_15, %c5, %c0_16, %c0_17] : memref<1x16x8x8xf32, #tpu.memory_space<vmem>>, vector<1x1x8x8xf32>
    %11 = vector.shape_cast %10 : vector<1x1x8x8xf32> to vector<8x8xf32>
    %c0_18 = arith.constant 0 : index
    %c6 = arith.constant 6 : index
    %c0_19 = arith.constant 0 : index
    %c0_20 = arith.constant 0 : index
    %12 = vector.load %arg5[%c0_18, %c6, %c0_19, %c0_20] : memref<1x16x8x8xf32, #tpu.memory_space<vmem>>, vector<1x1x8x8xf32>
    %13 = vector.shape_cast %12 : vector<1x1x8x8xf32> to vector<8x8xf32>
    %c0_21 = arith.constant 0 : index
    %c7 = arith.constant 7 : index
    %c0_22 = arith.constant 0 : index
    %c0_23 = arith.constant 0 : index
    %14 = vector.load %arg5[%c0_21, %c7, %c0_22, %c0_23] : memref<1x16x8x8xf32, #tpu.memory_space<vmem>>, vector<1x1x8x8xf32>
    %15 = vector.shape_cast %14 : vector<1x1x8x8xf32> to vector<8x8xf32>
    %c0_24 = arith.constant 0 : index
    %c8 = arith.constant 8 : index
    %c0_25 = arith.constant 0 : index
    %c0_26 = arith.constant 0 : index
    %16 = vector.load %arg5[%c0_24, %c8, %c0_25, %c0_26] : memref<1x16x8x8xf32, #tpu.memory_space<vmem>>, vector<1x1x8x8xf32>
    %17 = vector.shape_cast %16 : vector<1x1x8x8xf32> to vector<8x8xf32>
    %c0_27 = arith.constant 0 : index
    %c9 = arith.constant 9 : index
    %c0_28 = arith.constant 0 : index
    %c0_29 = arith.constant 0 : index
    %18 = vector.load %arg5[%c0_27, %c9, %c0_28, %c0_29] : memref<1x16x8x8xf32, #tpu.memory_space<vmem>>, vector<1x1x8x8xf32>
    %19 = vector.shape_cast %18 : vector<1x1x8x8xf32> to vector<8x8xf32>
    %c0_30 = arith.constant 0 : index
    %c10 = arith.constant 10 : index
    %c0_31 = arith.constant 0 : index
    %c0_32 = arith.constant 0 : index
    %20 = vector.load %arg5[%c0_30, %c10, %c0_31, %c0_32] : memref<1x16x8x8xf32, #tpu.memory_space<vmem>>, vector<1x1x8x8xf32>
    %21 = vector.shape_cast %20 : vector<1x1x8x8xf32> to vector<8x8xf32>
    %c0_33 = arith.constant 0 : index
    %c11 = arith.constant 11 : index
    %c0_34 = arith.constant 0 : index
    %c0_35 = arith.constant 0 : index
    %22 = vector.load %arg5[%c0_33, %c11, %c0_34, %c0_35] : memref<1x16x8x8xf32, #tpu.memory_space<vmem>>, vector<1x1x8x8xf32>
    %23 = vector.shape_cast %22 : vector<1x1x8x8xf32> to vector<8x8xf32>
    %c0_36 = arith.constant 0 : index
    %c12 = arith.constant 12 : index
    %c0_37 = arith.constant 0 : index
    %c0_38 = arith.constant 0 : index
    %24 = vector.load %arg5[%c0_36, %c12, %c0_37, %c0_38] : memref<1x16x8x8xf32, #tpu.memory_space<vmem>>, vector<1x1x8x8xf32>
    %25 = vector.shape_cast %24 : vector<1x1x8x8xf32> to vector<8x8xf32>
    %c0_39 = arith.constant 0 : index
    %c13 = arith.constant 13 : index
    %c0_40 = arith.constant 0 : index
    %c0_41 = arith.constant 0 : index
    %26 = vector.load %arg5[%c0_39, %c13, %c0_40, %c0_41] : memref<1x16x8x8xf32, #tpu.memory_space<vmem>>, vector<1x1x8x8xf32>
    %27 = vector.shape_cast %26 : vector<1x1x8x8xf32> to vector<8x8xf32>
    %c0_42 = arith.constant 0 : index
    %c14 = arith.constant 14 : index
    %c0_43 = arith.constant 0 : index
    %c0_44 = arith.constant 0 : index
    %28 = vector.load %arg5[%c0_42, %c14, %c0_43, %c0_44] : memref<1x16x8x8xf32, #tpu.memory_space<vmem>>, vector<1x1x8x8xf32>
    %29 = vector.shape_cast %28 : vector<1x1x8x8xf32> to vector<8x8xf32>
    %c0_45 = arith.constant 0 : index
    %c15 = arith.constant 15 : index
    %c0_46 = arith.constant 0 : index
    %c0_47 = arith.constant 0 : index
    %30 = vector.load %arg5[%c0_45, %c15, %c0_46, %c0_47] : memref<1x16x8x8xf32, #tpu.memory_space<vmem>>, vector<1x1x8x8xf32>
    %31 = vector.shape_cast %30 : vector<1x1x8x8xf32> to vector<8x8xf32>
    %c0_48 = arith.constant 0 : index
    %c0_49 = arith.constant 0 : index
    %32 = memref.load %arg8[%c0_48, %c0_49] : memref<1x16xf32, #tpu.memory_space<smem>>
    %33 = vector.broadcast %32 : f32 to vector<8x8xf32>
    %34 = arith.addf %1, %33 : vector<8x8xf32>
    %c0_50 = arith.constant 0 : index
    %c1_51 = arith.constant 1 : index
    %35 = memref.load %arg8[%c0_50, %c1_51] : memref<1x16xf32, #tpu.memory_space<smem>>
    %36 = vector.broadcast %35 : f32 to vector<8x8xf32>
    %37 = arith.addf %3, %36 : vector<8x8xf32>
    %c0_52 = arith.constant 0 : index
    %c2_53 = arith.constant 2 : index
    %38 = memref.load %arg8[%c0_52, %c2_53] : memref<1x16xf32, #tpu.memory_space<smem>>
    %39 = vector.broadcast %38 : f32 to vector<8x8xf32>
    %40 = arith.addf %5, %39 : vector<8x8xf32>
    %c0_54 = arith.constant 0 : index
    %c3_55 = arith.constant 3 : index
    %41 = memref.load %arg8[%c0_54, %c3_55] : memref<1x16xf32, #tpu.memory_space<smem>>
    %42 = vector.broadcast %41 : f32 to vector<8x8xf32>
    %43 = arith.addf %7, %42 : vector<8x8xf32>
    %c0_56 = arith.constant 0 : index
    %c4_57 = arith.constant 4 : index
    %44 = memref.load %arg8[%c0_56, %c4_57] : memref<1x16xf32, #tpu.memory_space<smem>>
    %45 = vector.broadcast %44 : f32 to vector<8x8xf32>
    %46 = arith.addf %9, %45 : vector<8x8xf32>
    %c0_58 = arith.constant 0 : index
    %c5_59 = arith.constant 5 : index
    %47 = memref.load %arg8[%c0_58, %c5_59] : memref<1x16xf32, #tpu.memory_space<smem>>
    %48 = vector.broadcast %47 : f32 to vector<8x8xf32>
    %49 = arith.addf %11, %48 : vector<8x8xf32>
    %c0_60 = arith.constant 0 : index
    %c6_61 = arith.constant 6 : index
    %50 = memref.load %arg8[%c0_60, %c6_61] : memref<1x16xf32, #tpu.memory_space<smem>>
    %51 = vector.broadcast %50 : f32 to vector<8x8xf32>
    %52 = arith.addf %13, %51 : vector<8x8xf32>
    %c0_62 = arith.constant 0 : index
    %c7_63 = arith.constant 7 : index
    %53 = memref.load %arg8[%c0_62, %c7_63] : memref<1x16xf32, #tpu.memory_space<smem>>
    %54 = vector.broadcast %53 : f32 to vector<8x8xf32>
    %55 = arith.addf %15, %54 : vector<8x8xf32>
    %c0_64 = arith.constant 0 : index
    %c8_65 = arith.constant 8 : index
    %56 = memref.load %arg8[%c0_64, %c8_65] : memref<1x16xf32, #tpu.memory_space<smem>>
    %57 = vector.broadcast %56 : f32 to vector<8x8xf32>
    %58 = arith.addf %17, %57 : vector<8x8xf32>
    %c0_66 = arith.constant 0 : index
    %c9_67 = arith.constant 9 : index
    %59 = memref.load %arg8[%c0_66, %c9_67] : memref<1x16xf32, #tpu.memory_space<smem>>
    %60 = vector.broadcast %59 : f32 to vector<8x8xf32>
    %61 = arith.addf %19, %60 : vector<8x8xf32>
    %c0_68 = arith.constant 0 : index
    %c10_69 = arith.constant 10 : index
    %62 = memref.load %arg8[%c0_68, %c10_69] : memref<1x16xf32, #tpu.memory_space<smem>>
    %63 = vector.broadcast %62 : f32 to vector<8x8xf32>
    %64 = arith.addf %21, %63 : vector<8x8xf32>
    %c0_70 = arith.constant 0 : index
    %c11_71 = arith.constant 11 : index
    %65 = memref.load %arg8[%c0_70, %c11_71] : memref<1x16xf32, #tpu.memory_space<smem>>
    %66 = vector.broadcast %65 : f32 to vector<8x8xf32>
    %67 = arith.addf %23, %66 : vector<8x8xf32>
    %c0_72 = arith.constant 0 : index
    %c12_73 = arith.constant 12 : index
    %68 = memref.load %arg8[%c0_72, %c12_73] : memref<1x16xf32, #tpu.memory_space<smem>>
    %69 = vector.broadcast %68 : f32 to vector<8x8xf32>
    %70 = arith.addf %25, %69 : vector<8x8xf32>
    %c0_74 = arith.constant 0 : index
    %c13_75 = arith.constant 13 : index
    %71 = memref.load %arg8[%c0_74, %c13_75] : memref<1x16xf32, #tpu.memory_space<smem>>
    %72 = vector.broadcast %71 : f32 to vector<8x8xf32>
    %73 = arith.addf %27, %72 : vector<8x8xf32>
    %c0_76 = arith.constant 0 : index
    %c14_77 = arith.constant 14 : index
    %74 = memref.load %arg8[%c0_76, %c14_77] : memref<1x16xf32, #tpu.memory_space<smem>>
    %75 = vector.broadcast %74 : f32 to vector<8x8xf32>
    %76 = arith.addf %29, %75 : vector<8x8xf32>
    %c0_78 = arith.constant 0 : index
    %c15_79 = arith.constant 15 : index
    %77 = memref.load %arg8[%c0_78, %c15_79] : memref<1x16xf32, #tpu.memory_space<smem>>
    %78 = vector.broadcast %77 : f32 to vector<8x8xf32>
    %79 = arith.addf %31, %78 : vector<8x8xf32>
    %c0_80 = arith.constant 0 : index
    %c0_81 = arith.constant 0 : index
    %80 = memref.load %arg6[%c0_80, %c0_81] : memref<4x16xf32, #tpu.memory_space<smem>>
    %81 = vector.broadcast %80 : f32 to vector<8x8xf32>
    %82 = arith.mulf %1, %81 : vector<8x8xf32>
    %c0_82 = arith.constant 0 : index
    %c1_83 = arith.constant 1 : index
    %83 = memref.load %arg6[%c0_82, %c1_83] : memref<4x16xf32, #tpu.memory_space<smem>>
    %84 = vector.broadcast %83 : f32 to vector<8x8xf32>
    %85 = arith.mulf %3, %84 : vector<8x8xf32>
    %86 = arith.addf %82, %85 : vector<8x8xf32>
    %c0_84 = arith.constant 0 : index
    %c2_85 = arith.constant 2 : index
    %87 = memref.load %arg6[%c0_84, %c2_85] : memref<4x16xf32, #tpu.memory_space<smem>>
    %88 = vector.broadcast %87 : f32 to vector<8x8xf32>
    %89 = arith.mulf %5, %88 : vector<8x8xf32>
    %90 = arith.addf %86, %89 : vector<8x8xf32>
    %c0_86 = arith.constant 0 : index
    %c3_87 = arith.constant 3 : index
    %91 = memref.load %arg6[%c0_86, %c3_87] : memref<4x16xf32, #tpu.memory_space<smem>>
    %92 = vector.broadcast %91 : f32 to vector<8x8xf32>
    %93 = arith.mulf %7, %92 : vector<8x8xf32>
    %94 = arith.addf %90, %93 : vector<8x8xf32>
    %c0_88 = arith.constant 0 : index
    %c4_89 = arith.constant 4 : index
    %95 = memref.load %arg6[%c0_88, %c4_89] : memref<4x16xf32, #tpu.memory_space<smem>>
    %96 = vector.broadcast %95 : f32 to vector<8x8xf32>
    %97 = arith.mulf %9, %96 : vector<8x8xf32>
    %98 = arith.addf %94, %97 : vector<8x8xf32>
    %c0_90 = arith.constant 0 : index
    %c5_91 = arith.constant 5 : index
    %99 = memref.load %arg6[%c0_90, %c5_91] : memref<4x16xf32, #tpu.memory_space<smem>>
    %100 = vector.broadcast %99 : f32 to vector<8x8xf32>
    %101 = arith.mulf %11, %100 : vector<8x8xf32>
    %102 = arith.addf %98, %101 : vector<8x8xf32>
    %c0_92 = arith.constant 0 : index
    %c6_93 = arith.constant 6 : index
    %103 = memref.load %arg6[%c0_92, %c6_93] : memref<4x16xf32, #tpu.memory_space<smem>>
    %104 = vector.broadcast %103 : f32 to vector<8x8xf32>
    %105 = arith.mulf %13, %104 : vector<8x8xf32>
    %106 = arith.addf %102, %105 : vector<8x8xf32>
    %c0_94 = arith.constant 0 : index
    %c7_95 = arith.constant 7 : index
    %107 = memref.load %arg6[%c0_94, %c7_95] : memref<4x16xf32, #tpu.memory_space<smem>>
    %108 = vector.broadcast %107 : f32 to vector<8x8xf32>
    %109 = arith.mulf %15, %108 : vector<8x8xf32>
    %110 = arith.addf %106, %109 : vector<8x8xf32>
    %c0_96 = arith.constant 0 : index
    %c8_97 = arith.constant 8 : index
    %111 = memref.load %arg6[%c0_96, %c8_97] : memref<4x16xf32, #tpu.memory_space<smem>>
    %112 = vector.broadcast %111 : f32 to vector<8x8xf32>
    %113 = arith.mulf %17, %112 : vector<8x8xf32>
    %114 = arith.addf %110, %113 : vector<8x8xf32>
    %c0_98 = arith.constant 0 : index
    %c9_99 = arith.constant 9 : index
    %115 = memref.load %arg6[%c0_98, %c9_99] : memref<4x16xf32, #tpu.memory_space<smem>>
    %116 = vector.broadcast %115 : f32 to vector<8x8xf32>
    %117 = arith.mulf %19, %116 : vector<8x8xf32>
    %118 = arith.addf %114, %117 : vector<8x8xf32>
    %c0_100 = arith.constant 0 : index
    %c10_101 = arith.constant 10 : index
    %119 = memref.load %arg6[%c0_100, %c10_101] : memref<4x16xf32, #tpu.memory_space<smem>>
    %120 = vector.broadcast %119 : f32 to vector<8x8xf32>
    %121 = arith.mulf %21, %120 : vector<8x8xf32>
    %122 = arith.addf %118, %121 : vector<8x8xf32>
    %c0_102 = arith.constant 0 : index
    %c11_103 = arith.constant 11 : index
    %123 = memref.load %arg6[%c0_102, %c11_103] : memref<4x16xf32, #tpu.memory_space<smem>>
    %124 = vector.broadcast %123 : f32 to vector<8x8xf32>
    %125 = arith.mulf %23, %124 : vector<8x8xf32>
    %126 = arith.addf %122, %125 : vector<8x8xf32>
    %c0_104 = arith.constant 0 : index
    %c12_105 = arith.constant 12 : index
    %127 = memref.load %arg6[%c0_104, %c12_105] : memref<4x16xf32, #tpu.memory_space<smem>>
    %128 = vector.broadcast %127 : f32 to vector<8x8xf32>
    %129 = arith.mulf %25, %128 : vector<8x8xf32>
    %130 = arith.addf %126, %129 : vector<8x8xf32>
    %c0_106 = arith.constant 0 : index
    %c13_107 = arith.constant 13 : index
    %131 = memref.load %arg6[%c0_106, %c13_107] : memref<4x16xf32, #tpu.memory_space<smem>>
    %132 = vector.broadcast %131 : f32 to vector<8x8xf32>
    %133 = arith.mulf %27, %132 : vector<8x8xf32>
    %134 = arith.addf %130, %133 : vector<8x8xf32>
    %c0_108 = arith.constant 0 : index
    %c14_109 = arith.constant 14 : index
    %135 = memref.load %arg6[%c0_108, %c14_109] : memref<4x16xf32, #tpu.memory_space<smem>>
    %136 = vector.broadcast %135 : f32 to vector<8x8xf32>
    %137 = arith.mulf %29, %136 : vector<8x8xf32>
    %138 = arith.addf %134, %137 : vector<8x8xf32>
    %c0_110 = arith.constant 0 : index
    %c15_111 = arith.constant 15 : index
    %139 = memref.load %arg6[%c0_110, %c15_111] : memref<4x16xf32, #tpu.memory_space<smem>>
    %140 = vector.broadcast %139 : f32 to vector<8x8xf32>
    %141 = arith.mulf %31, %140 : vector<8x8xf32>
    %142 = arith.addf %138, %141 : vector<8x8xf32>
    %c0_112 = arith.constant 0 : index
    %c0_113 = arith.constant 0 : index
    %c0_114 = arith.constant 0 : index
    %c0_115 = arith.constant 0 : index
    %143 = vector.load %arg2[%c0_112, %c0_113, %c0_114, %c0_115] : memref<1x4x8x12xbf16, #tpu.memory_space<vmem>>, vector<1x1x8x12xbf16>
    %144 = vector.shape_cast %143 : vector<1x1x8x12xbf16> to vector<8x12xbf16>
    %c0_116 = arith.constant 0 : index
    %c0_117 = arith.constant 0 : index
    %c0_118 = arith.constant 0 : index
    %c0_119 = arith.constant 0 : index
    %145 = vector.load %arg3[%c0_116, %c0_117, %c0_118, %c0_119] : memref<1x4x8x12xbf16, #tpu.memory_space<vmem>>, vector<1x1x8x12xbf16>
    %146 = vector.shape_cast %145 : vector<1x1x8x12xbf16> to vector<8x12xbf16>
    %cst = arith.constant dense<0.000000e+00> : vector<8x8xf32>
    %147 = tpu.matmul %144, %146, %cst {dimension_numbers = #tpu.dot_dimension_numbers<[1], [1], [0], [0], [0, 0, 1, 0], [], []>} : vector<8x12xbf16>, vector<8x12xbf16>, vector<8x8xf32> -> vector<8x8xf32>
    %cst_120 = arith.constant 0.288675129 : f32
    %148 = vector.broadcast %cst_120 : f32 to vector<8x8xf32>
    %149 = arith.mulf %147, %148 : vector<8x8xf32>
    %150 = arith.addf %149, %142 : vector<8x8xf32>
    %cst_121 = arith.constant dense<0xFF800000> : vector<8xf32>
    %151 = vector.multi_reduction <maximumf>, %150, %cst_121 [1] : vector<8x8xf32> to vector<8xf32>
    %152 = vector.shape_cast %151 : vector<8xf32> to vector<8x1xf32>
    %153 = vector.broadcast %152 : vector<8x1xf32> to vector<8x8xf32>
    %154 = arith.subf %150, %153 : vector<8x8xf32>
    %155 = math.exp %154 : vector<8x8xf32>
    %cst_122 = arith.constant dense<0.000000e+00> : vector<8xf32>
    %156 = vector.multi_reduction <add>, %155, %cst_122 [1] : vector<8x8xf32> to vector<8xf32>
    %157 = vector.shape_cast %156 : vector<8xf32> to vector<8x1xf32>
    %158 = vector.broadcast %157 : vector<8x1xf32> to vector<8x8xf32>
    %159 = arith.divf %155, %158 : vector<8x8xf32>
    %160 = arith.truncf %159 : vector<8x8xf32> to vector<8x8xbf16>
    %c0_123 = arith.constant 0 : index
    %c0_124 = arith.constant 0 : index
    %c0_125 = arith.constant 0 : index
    %c0_126 = arith.constant 0 : index
    %161 = vector.load %arg4[%c0_123, %c0_124, %c0_125, %c0_126] : memref<1x4x8x12xbf16, #tpu.memory_space<vmem>>, vector<1x1x8x12xbf16>
    %162 = vector.shape_cast %161 : vector<1x1x8x12xbf16> to vector<8x12xbf16>
    %cst_127 = arith.constant dense<0.000000e+00> : vector<8x12xf32>
    %163 = tpu.matmul %160, %162, %cst_127 {dimension_numbers = #tpu.dot_dimension_numbers<[1], [0], [0], [1], [0, 0, 1, 1], [], []>} : vector<8x8xbf16>, vector<8x12xbf16>, vector<8x12xf32> -> vector<8x12xf32>
    %164 = arith.truncf %163 : vector<8x12xf32> to vector<8x12xbf16>
    %c0_128 = arith.constant 0 : index
    %c0_129 = arith.constant 0 : index
    %c0_130 = arith.constant 0 : index
    %c0_131 = arith.constant 0 : index
    %165 = vector.load %arg11[%c0_128, %c0_129, %c0_130, %c0_131] : memref<1x4x8x12xbf16, #tpu.memory_space<vmem>>, vector<1x1x8x12xbf16>
    %166 = vector.shape_cast %165 : vector<1x1x8x12xbf16> to vector<8x12xbf16>
    %167 = vector.shape_cast %164 : vector<8x12xbf16> to vector<1x1x8x12xbf16>
    tpu.vector_store %arg11[%c0_128, %c0_129, %c0_130, %c0_131], %167 {strides = array<i32>} : memref<1x4x8x12xbf16, #tpu.memory_space<vmem>>, vector<1x1x8x12xbf16>,
    %c0_132 = arith.constant 0 : index
    %c0_133 = arith.constant 0 : index
    %168 = memref.load %arg7[%c0_132, %c0_133] : memref<4x16xf32, #tpu.memory_space<smem>>
    %169 = vector.broadcast %168 : f32 to vector<8x8xf32>
    %170 = arith.mulf %159, %169 : vector<8x8xf32>
    %171 = arith.addf %34, %170 : vector<8x8xf32>
    %c0_134 = arith.constant 0 : index
    %c1_135 = arith.constant 1 : index
    %172 = memref.load %arg7[%c0_134, %c1_135] : memref<4x16xf32, #tpu.memory_space<smem>>
    %173 = vector.broadcast %172 : f32 to vector<8x8xf32>
    %174 = arith.mulf %159, %173 : vector<8x8xf32>
    %175 = arith.addf %37, %174 : vector<8x8xf32>
    %c0_136 = arith.constant 0 : index
    %c2_137 = arith.constant 2 : index
    %176 = memref.load %arg7[%c0_136, %c2_137] : memref<4x16xf32, #tpu.memory_space<smem>>
    %177 = vector.broadcast %176 : f32 to vector<8x8xf32>
    %178 = arith.mulf %159, %177 : vector<8x8xf32>
    %179 = arith.addf %40, %178 : vector<8x8xf32>
    %c0_138 = arith.constant 0 : index
    %c3_139 = arith.constant 3 : index
    %180 = memref.load %arg7[%c0_138, %c3_139] : memref<4x16xf32, #tpu.memory_space<smem>>
    %181 = vector.broadcast %180 : f32 to vector<8x8xf32>
    %182 = arith.mulf %159, %181 : vector<8x8xf32>
    %183 = arith.addf %43, %182 : vector<8x8xf32>
    %c0_140 = arith.constant 0 : index
    %c4_141 = arith.constant 4 : index
    %184 = memref.load %arg7[%c0_140, %c4_141] : memref<4x16xf32, #tpu.memory_space<smem>>
    %185 = vector.broadcast %184 : f32 to vector<8x8xf32>
    %186 = arith.mulf %159, %185 : vector<8x8xf32>
    %187 = arith.addf %46, %186 : vector<8x8xf32>
    %c0_142 = arith.constant 0 : index
    %c5_143 = arith.constant 5 : index
    %188 = memref.load %arg7[%c0_142, %c5_143] : memref<4x16xf32, #tpu.memory_space<smem>>
    %189 = vector.broadcast %188 : f32 to vector<8x8xf32>
    %190 = arith.mulf %159, %189 : vector<8x8xf32>
    %191 = arith.addf %49, %190 : vector<8x8xf32>
    %c0_144 = arith.constant 0 : index
    %c6_145 = arith.constant 6 : index
    %192 = memref.load %arg7[%c0_144, %c6_145] : memref<4x16xf32, #tpu.memory_space<smem>>
    %193 = vector.broadcast %192 : f32 to vector<8x8xf32>
    %194 = arith.mulf %159, %193 : vector<8x8xf32>
    %195 = arith.addf %52, %194 : vector<8x8xf32>
    %c0_146 = arith.constant 0 : index
    %c7_147 = arith.constant 7 : index
    %196 = memref.load %arg7[%c0_146, %c7_147] : memref<4x16xf32, #tpu.memory_space<smem>>
    %197 = vector.broadcast %196 : f32 to vector<8x8xf32>
    %198 = arith.mulf %159, %197 : vector<8x8xf32>
    %199 = arith.addf %55, %198 : vector<8x8xf32>
    %c0_148 = arith.constant 0 : index
    %c8_149 = arith.constant 8 : index
    %200 = memref.load %arg7[%c0_148, %c8_149] : memref<4x16xf32, #tpu.memory_space<smem>>
    %201 = vector.broadcast %200 : f32 to vector<8x8xf32>
    %202 = arith.mulf %159, %201 : vector<8x8xf32>
    %203 = arith.addf %58, %202 : vector<8x8xf32>
    %c0_150 = arith.constant 0 : index
    %c9_151 = arith.constant 9 : index
    %204 = memref.load %arg7[%c0_150, %c9_151] : memref<4x16xf32, #tpu.memory_space<smem>>
    %205 = vector.broadcast %204 : f32 to vector<8x8xf32>
    %206 = arith.mulf %159, %205 : vector<8x8xf32>
    %207 = arith.addf %61, %206 : vector<8x8xf32>
    %c0_152 = arith.constant 0 : index
    %c10_153 = arith.constant 10 : index
    %208 = memref.load %arg7[%c0_152, %c10_153] : memref<4x16xf32, #tpu.memory_space<smem>>
    %209 = vector.broadcast %208 : f32 to vector<8x8xf32>
    %210 = arith.mulf %159, %209 : vector<8x8xf32>
    %211 = arith.addf %64, %210 : vector<8x8xf32>
    %c0_154 = arith.constant 0 : index
    %c11_155 = arith.constant 11 : index
    %212 = memref.load %arg7[%c0_154, %c11_155] : memref<4x16xf32, #tpu.memory_space<smem>>
    %213 = vector.broadcast %212 : f32 to vector<8x8xf32>
    %214 = arith.mulf %159, %213 : vector<8x8xf32>
    %215 = arith.addf %67, %214 : vector<8x8xf32>
    %c0_156 = arith.constant 0 : index
    %c12_157 = arith.constant 12 : index
    %216 = memref.load %arg7[%c0_156, %c12_157] : memref<4x16xf32, #tpu.memory_space<smem>>
    %217 = vector.broadcast %216 : f32 to vector<8x8xf32>
    %218 = arith.mulf %159, %217 : vector<8x8xf32>
    %219 = arith.addf %70, %218 : vector<8x8xf32>
    %c0_158 = arith.constant 0 : index
    %c13_159 = arith.constant 13 : index
    %220 = memref.load %arg7[%c0_158, %c13_159] : memref<4x16xf32, #tpu.memory_space<smem>>
    %221 = vector.broadcast %220 : f32 to vector<8x8xf32>
    %222 = arith.mulf %159, %221 : vector<8x8xf32>
    %223 = arith.addf %73, %222 : vector<8x8xf32>
    %c0_160 = arith.constant 0 : index
    %c14_161 = arith.constant 14 : index
    %224 = memref.load %arg7[%c0_160, %c14_161] : memref<4x16xf32, #tpu.memory_space<smem>>
    %225 = vector.broadcast %224 : f32 to vector<8x8xf32>
    %226 = arith.mulf %159, %225 : vector<8x8xf32>
    %227 = arith.addf %76, %226 : vector<8x8xf32>
    %c0_162 = arith.constant 0 : index
    %c15_163 = arith.constant 15 : index
    %228 = memref.load %arg7[%c0_162, %c15_163] : memref<4x16xf32, #tpu.memory_space<smem>>
    %229 = vector.broadcast %228 : f32 to vector<8x8xf32>
    %230 = arith.mulf %159, %229 : vector<8x8xf32>
    %231 = arith.addf %79, %230 : vector<8x8xf32>
    %c1_164 = arith.constant 1 : index
    %c0_165 = arith.constant 0 : index
    %232 = memref.load %arg6[%c1_164, %c0_165] : memref<4x16xf32, #tpu.memory_space<smem>>
    %233 = vector.broadcast %232 : f32 to vector<8x8xf32>
    %234 = arith.mulf %1, %233 : vector<8x8xf32>
    %c1_166 = arith.constant 1 : index
    %c1_167 = arith.constant 1 : index
    %235 = memref.load %arg6[%c1_166, %c1_167] : memref<4x16xf32, #tpu.memory_space<smem>>
    %236 = vector.broadcast %235 : f32 to vector<8x8xf32>
    %237 = arith.mulf %3, %236 : vector<8x8xf32>
    %238 = arith.addf %234, %237 : vector<8x8xf32>
    %c1_168 = arith.constant 1 : index
    %c2_169 = arith.constant 2 : index
    %239 = memref.load %arg6[%c1_168, %c2_169] : memref<4x16xf32, #tpu.memory_space<smem>>
    %240 = vector.broadcast %239 : f32 to vector<8x8xf32>
    %241 = arith.mulf %5, %240 : vector<8x8xf32>
    %242 = arith.addf %238, %241 : vector<8x8xf32>
    %c1_170 = arith.constant 1 : index
    %c3_171 = arith.constant 3 : index
    %243 = memref.load %arg6[%c1_170, %c3_171] : memref<4x16xf32, #tpu.memory_space<smem>>
    %244 = vector.broadcast %243 : f32 to vector<8x8xf32>
    %245 = arith.mulf %7, %244 : vector<8x8xf32>
    %246 = arith.addf %242, %245 : vector<8x8xf32>
    %c1_172 = arith.constant 1 : index
    %c4_173 = arith.constant 4 : index
    %247 = memref.load %arg6[%c1_172, %c4_173] : memref<4x16xf32, #tpu.memory_space<smem>>
    %248 = vector.broadcast %247 : f32 to vector<8x8xf32>
    %249 = arith.mulf %9, %248 : vector<8x8xf32>
    %250 = arith.addf %246, %249 : vector<8x8xf32>
    %c1_174 = arith.constant 1 : index
    %c5_175 = arith.constant 5 : index
    %251 = memref.load %arg6[%c1_174, %c5_175] : memref<4x16xf32, #tpu.memory_space<smem>>
    %252 = vector.broadcast %251 : f32 to vector<8x8xf32>
    %253 = arith.mulf %11, %252 : vector<8x8xf32>
    %254 = arith.addf %250, %253 : vector<8x8xf32>
    %c1_176 = arith.constant 1 : index
    %c6_177 = arith.constant 6 : index
    %255 = memref.load %arg6[%c1_176, %c6_177] : memref<4x16xf32, #tpu.memory_space<smem>>
    %256 = vector.broadcast %255 : f32 to vector<8x8xf32>
    %257 = arith.mulf %13, %256 : vector<8x8xf32>
    %258 = arith.addf %254, %257 : vector<8x8xf32>
    %c1_178 = arith.constant 1 : index
    %c7_179 = arith.constant 7 : index
    %259 = memref.load %arg6[%c1_178, %c7_179] : memref<4x16xf32, #tpu.memory_space<smem>>
    %260 = vector.broadcast %259 : f32 to vector<8x8xf32>
    %261 = arith.mulf %15, %260 : vector<8x8xf32>
    %262 = arith.addf %258, %261 : vector<8x8xf32>
    %c1_180 = arith.constant 1 : index
    %c8_181 = arith.constant 8 : index
    %263 = memref.load %arg6[%c1_180, %c8_181] : memref<4x16xf32, #tpu.memory_space<smem>>
    %264 = vector.broadcast %263 : f32 to vector<8x8xf32>
    %265 = arith.mulf %17, %264 : vector<8x8xf32>
    %266 = arith.addf %262, %265 : vector<8x8xf32>
    %c1_182 = arith.constant 1 : index
    %c9_183 = arith.constant 9 : index
    %267 = memref.load %arg6[%c1_182, %c9_183] : memref<4x16xf32, #tpu.memory_space<smem>>
    %268 = vector.broadcast %267 : f32 to vector<8x8xf32>
    %269 = arith.mulf %19, %268 : vector<8x8xf32>
    %270 = arith.addf %266, %269 : vector<8x8xf32>
    %c1_184 = arith.constant 1 : index
    %c10_185 = arith.constant 10 : index
    %271 = memref.load %arg6[%c1_184, %c10_185] : memref<4x16xf32, #tpu.memory_space<smem>>
    %272 = vector.broadcast %271 : f32 to vector<8x8xf32>
    %273 = arith.mulf %21, %272 : vector<8x8xf32>
    %274 = arith.addf %270, %273 : vector<8x8xf32>
    %c1_186 = arith.constant 1 : index
    %c11_187 = arith.constant 11 : index
    %275 = memref.load %arg6[%c1_186, %c11_187] : memref<4x16xf32, #tpu.memory_space<smem>>
    %276 = vector.broadcast %275 : f32 to vector<8x8xf32>
    %277 = arith.mulf %23, %276 : vector<8x8xf32>
    %278 = arith.addf %274, %277 : vector<8x8xf32>
    %c1_188 = arith.constant 1 : index
    %c12_189 = arith.constant 12 : index
    %279 = memref.load %arg6[%c1_188, %c12_189] : memref<4x16xf32, #tpu.memory_space<smem>>
    %280 = vector.broadcast %279 : f32 to vector<8x8xf32>
    %281 = arith.mulf %25, %280 : vector<8x8xf32>
    %282 = arith.addf %278, %281 : vector<8x8xf32>
    %c1_190 = arith.constant 1 : index
    %c13_191 = arith.constant 13 : index
    %283 = memref.load %arg6[%c1_190, %c13_191] : memref<4x16xf32, #tpu.memory_space<smem>>
    %284 = vector.broadcast %283 : f32 to vector<8x8xf32>
    %285 = arith.mulf %27, %284 : vector<8x8xf32>
    %286 = arith.addf %282, %285 : vector<8x8xf32>
    %c1_192 = arith.constant 1 : index
    %c14_193 = arith.constant 14 : index
    %287 = memref.load %arg6[%c1_192, %c14_193] : memref<4x16xf32, #tpu.memory_space<smem>>
    %288 = vector.broadcast %287 : f32 to vector<8x8xf32>
    %289 = arith.mulf %29, %288 : vector<8x8xf32>
    %290 = arith.addf %286, %289 : vector<8x8xf32>
    %c1_194 = arith.constant 1 : index
    %c15_195 = arith.constant 15 : index
    %291 = memref.load %arg6[%c1_194, %c15_195] : memref<4x16xf32, #tpu.memory_space<smem>>
    %292 = vector.broadcast %291 : f32 to vector<8x8xf32>
    %293 = arith.mulf %31, %292 : vector<8x8xf32>
    %294 = arith.addf %290, %293 : vector<8x8xf32>
    %c0_196 = arith.constant 0 : index
    %c1_197 = arith.constant 1 : index
    %c0_198 = arith.constant 0 : index
    %c0_199 = arith.constant 0 : index
    %295 = vector.load %arg2[%c0_196, %c1_197, %c0_198, %c0_199] : memref<1x4x8x12xbf16, #tpu.memory_space<vmem>>, vector<1x1x8x12xbf16>
    %296 = vector.shape_cast %295 : vector<1x1x8x12xbf16> to vector<8x12xbf16>
    %c0_200 = arith.constant 0 : index
    %c1_201 = arith.constant 1 : index
    %c0_202 = arith.constant 0 : index
    %c0_203 = arith.constant 0 : index
    %297 = vector.load %arg3[%c0_200, %c1_201, %c0_202, %c0_203] : memref<1x4x8x12xbf16, #tpu.memory_space<vmem>>, vector<1x1x8x12xbf16>
    %298 = vector.shape_cast %297 : vector<1x1x8x12xbf16> to vector<8x12xbf16>
    %cst_204 = arith.constant dense<0.000000e+00> : vector<8x8xf32>
    %299 = tpu.matmul %296, %298, %cst_204 {dimension_numbers = #tpu.dot_dimension_numbers<[1], [1], [0], [0], [0, 0, 1, 0], [], []>} : vector<8x12xbf16>, vector<8x12xbf16>, vector<8x8xf32> -> vector<8x8xf32>
    %cst_205 = arith.constant 0.288675129 : f32
    %300 = vector.broadcast %cst_205 : f32 to vector<8x8xf32>
    %301 = arith.mulf %299, %300 : vector<8x8xf32>
    %302 = arith.addf %301, %294 : vector<8x8xf32>
    %cst_206 = arith.constant dense<0xFF800000> : vector<8xf32>
    %303 = vector.multi_reduction <maximumf>, %302, %cst_206 [1] : vector<8x8xf32> to vector<8xf32>
    %304 = vector.shape_cast %303 : vector<8xf32> to vector<8x1xf32>
    %305 = vector.broadcast %304 : vector<8x1xf32> to vector<8x8xf32>
    %306 = arith.subf %302, %305 : vector<8x8xf32>
    %307 = math.exp %306 : vector<8x8xf32>
    %cst_207 = arith.constant dense<0.000000e+00> : vector<8xf32>
    %308 = vector.multi_reduction <add>, %307, %cst_207 [1] : vector<8x8xf32> to vector<8xf32>
    %309 = vector.shape_cast %308 : vector<8xf32> to vector<8x1xf32>
    %310 = vector.broadcast %309 : vector<8x1xf32> to vector<8x8xf32>
    %311 = arith.divf %307, %310 : vector<8x8xf32>
    %312 = arith.truncf %311 : vector<8x8xf32> to vector<8x8xbf16>
    %c0_208 = arith.constant 0 : index
    %c1_209 = arith.constant 1 : index
    %c0_210 = arith.constant 0 : index
    %c0_211 = arith.constant 0 : index
    %313 = vector.load %arg4[%c0_208, %c1_209, %c0_210, %c0_211] : memref<1x4x8x12xbf16, #tpu.memory_space<vmem>>, vector<1x1x8x12xbf16>
    %314 = vector.shape_cast %313 : vector<1x1x8x12xbf16> to vector<8x12xbf16>
    %cst_212 = arith.constant dense<0.000000e+00> : vector<8x12xf32>
    %315 = tpu.matmul %312, %314, %cst_212 {dimension_numbers = #tpu.dot_dimension_numbers<[1], [0], [0], [1], [0, 0, 1, 1], [], []>} : vector<8x8xbf16>, vector<8x12xbf16>, vector<8x12xf32> -> vector<8x12xf32>
    %316 = arith.truncf %315 : vector<8x12xf32> to vector<8x12xbf16>
    %c0_213 = arith.constant 0 : index
    %c1_214 = arith.constant 1 : index
    %c0_215 = arith.constant 0 : index
    %c0_216 = arith.constant 0 : index
    %317 = vector.load %arg11[%c0_213, %c1_214, %c0_215, %c0_216] : memref<1x4x8x12xbf16, #tpu.memory_space<vmem>>, vector<1x1x8x12xbf16>
    %318 = vector.shape_cast %317 : vector<1x1x8x12xbf16> to vector<8x12xbf16>
    %319 = vector.shape_cast %316 : vector<8x12xbf16> to vector<1x1x8x12xbf16>
    tpu.vector_store %arg11[%c0_213, %c1_214, %c0_215, %c0_216], %319 {strides = array<i32>} : memref<1x4x8x12xbf16, #tpu.memory_space<vmem>>, vector<1x1x8x12xbf16>,
    %c1_217 = arith.constant 1 : index
    %c0_218 = arith.constant 0 : index
    %320 = memref.load %arg7[%c1_217, %c0_218] : memref<4x16xf32, #tpu.memory_space<smem>>
    %321 = vector.broadcast %320 : f32 to vector<8x8xf32>
    %322 = arith.mulf %311, %321 : vector<8x8xf32>
    %323 = arith.addf %171, %322 : vector<8x8xf32>
    %c1_219 = arith.constant 1 : index
    %c1_220 = arith.constant 1 : index
    %324 = memref.load %arg7[%c1_219, %c1_220] : memref<4x16xf32, #tpu.memory_space<smem>>
    %325 = vector.broadcast %324 : f32 to vector<8x8xf32>
    %326 = arith.mulf %311, %325 : vector<8x8xf32>
    %327 = arith.addf %175, %326 : vector<8x8xf32>
    %c1_221 = arith.constant 1 : index
    %c2_222 = arith.constant 2 : index
    %328 = memref.load %arg7[%c1_221, %c2_222] : memref<4x16xf32, #tpu.memory_space<smem>>
    %329 = vector.broadcast %328 : f32 to vector<8x8xf32>
    %330 = arith.mulf %311, %329 : vector<8x8xf32>
    %331 = arith.addf %179, %330 : vector<8x8xf32>
    %c1_223 = arith.constant 1 : index
    %c3_224 = arith.constant 3 : index
    %332 = memref.load %arg7[%c1_223, %c3_224] : memref<4x16xf32, #tpu.memory_space<smem>>
    %333 = vector.broadcast %332 : f32 to vector<8x8xf32>
    %334 = arith.mulf %311, %333 : vector<8x8xf32>
    %335 = arith.addf %183, %334 : vector<8x8xf32>
    %c1_225 = arith.constant 1 : index
    %c4_226 = arith.constant 4 : index
    %336 = memref.load %arg7[%c1_225, %c4_226] : memref<4x16xf32, #tpu.memory_space<smem>>
    %337 = vector.broadcast %336 : f32 to vector<8x8xf32>
    %338 = arith.mulf %311, %337 : vector<8x8xf32>
    %339 = arith.addf %187, %338 : vector<8x8xf32>
    %c1_227 = arith.constant 1 : index
    %c5_228 = arith.constant 5 : index
    %340 = memref.load %arg7[%c1_227, %c5_228] : memref<4x16xf32, #tpu.memory_space<smem>>
    %341 = vector.broadcast %340 : f32 to vector<8x8xf32>
    %342 = arith.mulf %311, %341 : vector<8x8xf32>
    %343 = arith.addf %191, %342 : vector<8x8xf32>
    %c1_229 = arith.constant 1 : index
    %c6_230 = arith.constant 6 : index
    %344 = memref.load %arg7[%c1_229, %c6_230] : memref<4x16xf32, #tpu.memory_space<smem>>
    %345 = vector.broadcast %344 : f32 to vector<8x8xf32>
    %346 = arith.mulf %311, %345 : vector<8x8xf32>
    %347 = arith.addf %195, %346 : vector<8x8xf32>
    %c1_231 = arith.constant 1 : index
    %c7_232 = arith.constant 7 : index
    %348 = memref.load %arg7[%c1_231, %c7_232] : memref<4x16xf32, #tpu.memory_space<smem>>
    %349 = vector.broadcast %348 : f32 to vector<8x8xf32>
    %350 = arith.mulf %311, %349 : vector<8x8xf32>
    %351 = arith.addf %199, %350 : vector<8x8xf32>
    %c1_233 = arith.constant 1 : index
    %c8_234 = arith.constant 8 : index
    %352 = memref.load %arg7[%c1_233, %c8_234] : memref<4x16xf32, #tpu.memory_space<smem>>
    %353 = vector.broadcast %352 : f32 to vector<8x8xf32>
    %354 = arith.mulf %311, %353 : vector<8x8xf32>
    %355 = arith.addf %203, %354 : vector<8x8xf32>
    %c1_235 = arith.constant 1 : index
    %c9_236 = arith.constant 9 : index
    %356 = memref.load %arg7[%c1_235, %c9_236] : memref<4x16xf32, #tpu.memory_space<smem>>
    %357 = vector.broadcast %356 : f32 to vector<8x8xf32>
    %358 = arith.mulf %311, %357 : vector<8x8xf32>
    %359 = arith.addf %207, %358 : vector<8x8xf32>
    %c1_237 = arith.constant 1 : index
    %c10_238 = arith.constant 10 : index
    %360 = memref.load %arg7[%c1_237, %c10_238] : memref<4x16xf32, #tpu.memory_space<smem>>
    %361 = vector.broadcast %360 : f32 to vector<8x8xf32>
    %362 = arith.mulf %311, %361 : vector<8x8xf32>
    %363 = arith.addf %211, %362 : vector<8x8xf32>
    %c1_239 = arith.constant 1 : index
    %c11_240 = arith.constant 11 : index
    %364 = memref.load %arg7[%c1_239, %c11_240] : memref<4x16xf32, #tpu.memory_space<smem>>
    %365 = vector.broadcast %364 : f32 to vector<8x8xf32>
    %366 = arith.mulf %311, %365 : vector<8x8xf32>
    %367 = arith.addf %215, %366 : vector<8x8xf32>
    %c1_241 = arith.constant 1 : index
    %c12_242 = arith.constant 12 : index
    %368 = memref.load %arg7[%c1_241, %c12_242] : memref<4x16xf32, #tpu.memory_space<smem>>
    %369 = vector.broadcast %368 : f32 to vector<8x8xf32>
    %370 = arith.mulf %311, %369 : vector<8x8xf32>
    %371 = arith.addf %219, %370 : vector<8x8xf32>
    %c1_243 = arith.constant 1 : index
    %c13_244 = arith.constant 13 : index
    %372 = memref.load %arg7[%c1_243, %c13_244] : memref<4x16xf32, #tpu.memory_space<smem>>
    %373 = vector.broadcast %372 : f32 to vector<8x8xf32>
    %374 = arith.mulf %311, %373 : vector<8x8xf32>
    %375 = arith.addf %223, %374 : vector<8x8xf32>
    %c1_245 = arith.constant 1 : index
    %c14_246 = arith.constant 14 : index
    %376 = memref.load %arg7[%c1_245, %c14_246] : memref<4x16xf32, #tpu.memory_space<smem>>
    %377 = vector.broadcast %376 : f32 to vector<8x8xf32>
    %378 = arith.mulf %311, %377 : vector<8x8xf32>
    %379 = arith.addf %227, %378 : vector<8x8xf32>
    %c1_247 = arith.constant 1 : index
    %c15_248 = arith.constant 15 : index
    %380 = memref.load %arg7[%c1_247, %c15_248] : memref<4x16xf32, #tpu.memory_space<smem>>
    %381 = vector.broadcast %380 : f32 to vector<8x8xf32>
    %382 = arith.mulf %311, %381 : vector<8x8xf32>
    %383 = arith.addf %231, %382 : vector<8x8xf32>
    %c2_249 = arith.constant 2 : index
    %c0_250 = arith.constant 0 : index
    %384 = memref.load %arg6[%c2_249, %c0_250] : memref<4x16xf32, #tpu.memory_space<smem>>
    %385 = vector.broadcast %384 : f32 to vector<8x8xf32>
    %386 = arith.mulf %1, %385 : vector<8x8xf32>
    %c2_251 = arith.constant 2 : index
    %c1_252 = arith.constant 1 : index
    %387 = memref.load %arg6[%c2_251, %c1_252] : memref<4x16xf32, #tpu.memory_space<smem>>
    %388 = vector.broadcast %387 : f32 to vector<8x8xf32>
    %389 = arith.mulf %3, %388 : vector<8x8xf32>
    %390 = arith.addf %386, %389 : vector<8x8xf32>
    %c2_253 = arith.constant 2 : index
    %c2_254 = arith.constant 2 : index
    %391 = memref.load %arg6[%c2_253, %c2_254] : memref<4x16xf32, #tpu.memory_space<smem>>
    %392 = vector.broadcast %391 : f32 to vector<8x8xf32>
    %393 = arith.mulf %5, %392 : vector<8x8xf32>
    %394 = arith.addf %390, %393 : vector<8x8xf32>
    %c2_255 = arith.constant 2 : index
    %c3_256 = arith.constant 3 : index
    %395 = memref.load %arg6[%c2_255, %c3_256] : memref<4x16xf32, #tpu.memory_space<smem>>
    %396 = vector.broadcast %395 : f32 to vector<8x8xf32>
    %397 = arith.mulf %7, %396 : vector<8x8xf32>
    %398 = arith.addf %394, %397 : vector<8x8xf32>
    %c2_257 = arith.constant 2 : index
    %c4_258 = arith.constant 4 : index
    %399 = memref.load %arg6[%c2_257, %c4_258] : memref<4x16xf32, #tpu.memory_space<smem>>
    %400 = vector.broadcast %399 : f32 to vector<8x8xf32>
    %401 = arith.mulf %9, %400 : vector<8x8xf32>
    %402 = arith.addf %398, %401 : vector<8x8xf32>
    %c2_259 = arith.constant 2 : index
    %c5_260 = arith.constant 5 : index
    %403 = memref.load %arg6[%c2_259, %c5_260] : memref<4x16xf32, #tpu.memory_space<smem>>
    %404 = vector.broadcast %403 : f32 to vector<8x8xf32>
    %405 = arith.mulf %11, %404 : vector<8x8xf32>
    %406 = arith.addf %402, %405 : vector<8x8xf32>
    %c2_261 = arith.constant 2 : index
    %c6_262 = arith.constant 6 : index
    %407 = memref.load %arg6[%c2_261, %c6_262] : memref<4x16xf32, #tpu.memory_space<smem>>
    %408 = vector.broadcast %407 : f32 to vector<8x8xf32>
    %409 = arith.mulf %13, %408 : vector<8x8xf32>
    %410 = arith.addf %406, %409 : vector<8x8xf32>
    %c2_263 = arith.constant 2 : index
    %c7_264 = arith.constant 7 : index
    %411 = memref.load %arg6[%c2_263, %c7_264] : memref<4x16xf32, #tpu.memory_space<smem>>
    %412 = vector.broadcast %411 : f32 to vector<8x8xf32>
    %413 = arith.mulf %15, %412 : vector<8x8xf32>
    %414 = arith.addf %410, %413 : vector<8x8xf32>
    %c2_265 = arith.constant 2 : index
    %c8_266 = arith.constant 8 : index
    %415 = memref.load %arg6[%c2_265, %c8_266] : memref<4x16xf32, #tpu.memory_space<smem>>
    %416 = vector.broadcast %415 : f32 to vector<8x8xf32>
    %417 = arith.mulf %17, %416 : vector<8x8xf32>
    %418 = arith.addf %414, %417 : vector<8x8xf32>
    %c2_267 = arith.constant 2 : index
    %c9_268 = arith.constant 9 : index
    %419 = memref.load %arg6[%c2_267, %c9_268] : memref<4x16xf32, #tpu.memory_space<smem>>
    %420 = vector.broadcast %419 : f32 to vector<8x8xf32>
    %421 = arith.mulf %19, %420 : vector<8x8xf32>
    %422 = arith.addf %418, %421 : vector<8x8xf32>
    %c2_269 = arith.constant 2 : index
    %c10_270 = arith.constant 10 : index
    %423 = memref.load %arg6[%c2_269, %c10_270] : memref<4x16xf32, #tpu.memory_space<smem>>
    %424 = vector.broadcast %423 : f32 to vector<8x8xf32>
    %425 = arith.mulf %21, %424 : vector<8x8xf32>
    %426 = arith.addf %422, %425 : vector<8x8xf32>
    %c2_271 = arith.constant 2 : index
    %c11_272 = arith.constant 11 : index
    %427 = memref.load %arg6[%c2_271, %c11_272] : memref<4x16xf32, #tpu.memory_space<smem>>
    %428 = vector.broadcast %427 : f32 to vector<8x8xf32>
    %429 = arith.mulf %23, %428 : vector<8x8xf32>
    %430 = arith.addf %426, %429 : vector<8x8xf32>
    %c2_273 = arith.constant 2 : index
    %c12_274 = arith.constant 12 : index
    %431 = memref.load %arg6[%c2_273, %c12_274] : memref<4x16xf32, #tpu.memory_space<smem>>
    %432 = vector.broadcast %431 : f32 to vector<8x8xf32>
    %433 = arith.mulf %25, %432 : vector<8x8xf32>
    %434 = arith.addf %430, %433 : vector<8x8xf32>
    %c2_275 = arith.constant 2 : index
    %c13_276 = arith.constant 13 : index
    %435 = memref.load %arg6[%c2_275, %c13_276] : memref<4x16xf32, #tpu.memory_space<smem>>
    %436 = vector.broadcast %435 : f32 to vector<8x8xf32>
    %437 = arith.mulf %27, %436 : vector<8x8xf32>
    %438 = arith.addf %434, %437 : vector<8x8xf32>
    %c2_277 = arith.constant 2 : index
    %c14_278 = arith.constant 14 : index
    %439 = memref.load %arg6[%c2_277, %c14_278] : memref<4x16xf32, #tpu.memory_space<smem>>
    %440 = vector.broadcast %439 : f32 to vector<8x8xf32>
    %441 = arith.mulf %29, %440 : vector<8x8xf32>
    %442 = arith.addf %438, %441 : vector<8x8xf32>
    %c2_279 = arith.constant 2 : index
    %c15_280 = arith.constant 15 : index
    %443 = memref.load %arg6[%c2_279, %c15_280] : memref<4x16xf32, #tpu.memory_space<smem>>
    %444 = vector.broadcast %443 : f32 to vector<8x8xf32>
    %445 = arith.mulf %31, %444 : vector<8x8xf32>
    %446 = arith.addf %442, %445 : vector<8x8xf32>
    %c0_281 = arith.constant 0 : index
    %c2_282 = arith.constant 2 : index
    %c0_283 = arith.constant 0 : index
    %c0_284 = arith.constant 0 : index
    %447 = vector.load %arg2[%c0_281, %c2_282, %c0_283, %c0_284] : memref<1x4x8x12xbf16, #tpu.memory_space<vmem>>, vector<1x1x8x12xbf16>
    %448 = vector.shape_cast %447 : vector<1x1x8x12xbf16> to vector<8x12xbf16>
    %c0_285 = arith.constant 0 : index
    %c2_286 = arith.constant 2 : index
    %c0_287 = arith.constant 0 : index
    %c0_288 = arith.constant 0 : index
    %449 = vector.load %arg3[%c0_285, %c2_286, %c0_287, %c0_288] : memref<1x4x8x12xbf16, #tpu.memory_space<vmem>>, vector<1x1x8x12xbf16>
    %450 = vector.shape_cast %449 : vector<1x1x8x12xbf16> to vector<8x12xbf16>
    %cst_289 = arith.constant dense<0.000000e+00> : vector<8x8xf32>
    %451 = tpu.matmul %448, %450, %cst_289 {dimension_numbers = #tpu.dot_dimension_numbers<[1], [1], [0], [0], [0, 0, 1, 0], [], []>} : vector<8x12xbf16>, vector<8x12xbf16>, vector<8x8xf32> -> vector<8x8xf32>
    %cst_290 = arith.constant 0.288675129 : f32
    %452 = vector.broadcast %cst_290 : f32 to vector<8x8xf32>
    %453 = arith.mulf %451, %452 : vector<8x8xf32>
    %454 = arith.addf %453, %446 : vector<8x8xf32>
    %cst_291 = arith.constant dense<0xFF800000> : vector<8xf32>
    %455 = vector.multi_reduction <maximumf>, %454, %cst_291 [1] : vector<8x8xf32> to vector<8xf32>
    %456 = vector.shape_cast %455 : vector<8xf32> to vector<8x1xf32>
    %457 = vector.broadcast %456 : vector<8x1xf32> to vector<8x8xf32>
    %458 = arith.subf %454, %457 : vector<8x8xf32>
    %459 = math.exp %458 : vector<8x8xf32>
    %cst_292 = arith.constant dense<0.000000e+00> : vector<8xf32>
    %460 = vector.multi_reduction <add>, %459, %cst_292 [1] : vector<8x8xf32> to vector<8xf32>
    %461 = vector.shape_cast %460 : vector<8xf32> to vector<8x1xf32>
    %462 = vector.broadcast %461 : vector<8x1xf32> to vector<8x8xf32>
    %463 = arith.divf %459, %462 : vector<8x8xf32>
    %464 = arith.truncf %463 : vector<8x8xf32> to vector<8x8xbf16>
    %c0_293 = arith.constant 0 : index
    %c2_294 = arith.constant 2 : index
    %c0_295 = arith.constant 0 : index
    %c0_296 = arith.constant 0 : index
    %465 = vector.load %arg4[%c0_293, %c2_294, %c0_295, %c0_296] : memref<1x4x8x12xbf16, #tpu.memory_space<vmem>>, vector<1x1x8x12xbf16>
    %466 = vector.shape_cast %465 : vector<1x1x8x12xbf16> to vector<8x12xbf16>
    %cst_297 = arith.constant dense<0.000000e+00> : vector<8x12xf32>
    %467 = tpu.matmul %464, %466, %cst_297 {dimension_numbers = #tpu.dot_dimension_numbers<[1], [0], [0], [1], [0, 0, 1, 1], [], []>} : vector<8x8xbf16>, vector<8x12xbf16>, vector<8x12xf32> -> vector<8x12xf32>
    %468 = arith.truncf %467 : vector<8x12xf32> to vector<8x12xbf16>
    %c0_298 = arith.constant 0 : index
    %c2_299 = arith.constant 2 : index
    %c0_300 = arith.constant 0 : index
    %c0_301 = arith.constant 0 : index
    %469 = vector.load %arg11[%c0_298, %c2_299, %c0_300, %c0_301] : memref<1x4x8x12xbf16, #tpu.memory_space<vmem>>, vector<1x1x8x12xbf16>
    %470 = vector.shape_cast %469 : vector<1x1x8x12xbf16> to vector<8x12xbf16>
    %471 = vector.shape_cast %468 : vector<8x12xbf16> to vector<1x1x8x12xbf16>
    tpu.vector_store %arg11[%c0_298, %c2_299, %c0_300, %c0_301], %471 {strides = array<i32>} : memref<1x4x8x12xbf16, #tpu.memory_space<vmem>>, vector<1x1x8x12xbf16>,
    %c2_302 = arith.constant 2 : index
    %c0_303 = arith.constant 0 : index
    %472 = memref.load %arg7[%c2_302, %c0_303] : memref<4x16xf32, #tpu.memory_space<smem>>
    %473 = vector.broadcast %472 : f32 to vector<8x8xf32>
    %474 = arith.mulf %463, %473 : vector<8x8xf32>
    %475 = arith.addf %323, %474 : vector<8x8xf32>
    %c2_304 = arith.constant 2 : index
    %c1_305 = arith.constant 1 : index
    %476 = memref.load %arg7[%c2_304, %c1_305] : memref<4x16xf32, #tpu.memory_space<smem>>
    %477 = vector.broadcast %476 : f32 to vector<8x8xf32>
    %478 = arith.mulf %463, %477 : vector<8x8xf32>
    %479 = arith.addf %327, %478 : vector<8x8xf32>
    %c2_306 = arith.constant 2 : index
    %c2_307 = arith.constant 2 : index
    %480 = memref.load %arg7[%c2_306, %c2_307] : memref<4x16xf32, #tpu.memory_space<smem>>
    %481 = vector.broadcast %480 : f32 to vector<8x8xf32>
    %482 = arith.mulf %463, %481 : vector<8x8xf32>
    %483 = arith.addf %331, %482 : vector<8x8xf32>
    %c2_308 = arith.constant 2 : index
    %c3_309 = arith.constant 3 : index
    %484 = memref.load %arg7[%c2_308, %c3_309] : memref<4x16xf32, #tpu.memory_space<smem>>
    %485 = vector.broadcast %484 : f32 to vector<8x8xf32>
    %486 = arith.mulf %463, %485 : vector<8x8xf32>
    %487 = arith.addf %335, %486 : vector<8x8xf32>
    %c2_310 = arith.constant 2 : index
    %c4_311 = arith.constant 4 : index
    %488 = memref.load %arg7[%c2_310, %c4_311] : memref<4x16xf32, #tpu.memory_space<smem>>
    %489 = vector.broadcast %488 : f32 to vector<8x8xf32>
    %490 = arith.mulf %463, %489 : vector<8x8xf32>
    %491 = arith.addf %339, %490 : vector<8x8xf32>
    %c2_312 = arith.constant 2 : index
    %c5_313 = arith.constant 5 : index
    %492 = memref.load %arg7[%c2_312, %c5_313] : memref<4x16xf32, #tpu.memory_space<smem>>
    %493 = vector.broadcast %492 : f32 to vector<8x8xf32>
    %494 = arith.mulf %463, %493 : vector<8x8xf32>
    %495 = arith.addf %343, %494 : vector<8x8xf32>
    %c2_314 = arith.constant 2 : index
    %c6_315 = arith.constant 6 : index
    %496 = memref.load %arg7[%c2_314, %c6_315] : memref<4x16xf32, #tpu.memory_space<smem>>
    %497 = vector.broadcast %496 : f32 to vector<8x8xf32>
    %498 = arith.mulf %463, %497 : vector<8x8xf32>
    %499 = arith.addf %347, %498 : vector<8x8xf32>
    %c2_316 = arith.constant 2 : index
    %c7_317 = arith.constant 7 : index
    %500 = memref.load %arg7[%c2_316, %c7_317] : memref<4x16xf32, #tpu.memory_space<smem>>
    %501 = vector.broadcast %500 : f32 to vector<8x8xf32>
    %502 = arith.mulf %463, %501 : vector<8x8xf32>
    %503 = arith.addf %351, %502 : vector<8x8xf32>
    %c2_318 = arith.constant 2 : index
    %c8_319 = arith.constant 8 : index
    %504 = memref.load %arg7[%c2_318, %c8_319] : memref<4x16xf32, #tpu.memory_space<smem>>
    %505 = vector.broadcast %504 : f32 to vector<8x8xf32>
    %506 = arith.mulf %463, %505 : vector<8x8xf32>
    %507 = arith.addf %355, %506 : vector<8x8xf32>
    %c2_320 = arith.constant 2 : index
    %c9_321 = arith.constant 9 : index
    %508 = memref.load %arg7[%c2_320, %c9_321] : memref<4x16xf32, #tpu.memory_space<smem>>
    %509 = vector.broadcast %508 : f32 to vector<8x8xf32>
    %510 = arith.mulf %463, %509 : vector<8x8xf32>
    %511 = arith.addf %359, %510 : vector<8x8xf32>
    %c2_322 = arith.constant 2 : index
    %c10_323 = arith.constant 10 : index
    %512 = memref.load %arg7[%c2_322, %c10_323] : memref<4x16xf32, #tpu.memory_space<smem>>
    %513 = vector.broadcast %512 : f32 to vector<8x8xf32>
    %514 = arith.mulf %463, %513 : vector<8x8xf32>
    %515 = arith.addf %363, %514 : vector<8x8xf32>
    %c2_324 = arith.constant 2 : index
    %c11_325 = arith.constant 11 : index
    %516 = memref.load %arg7[%c2_324, %c11_325] : memref<4x16xf32, #tpu.memory_space<smem>>
    %517 = vector.broadcast %516 : f32 to vector<8x8xf32>
    %518 = arith.mulf %463, %517 : vector<8x8xf32>
    %519 = arith.addf %367, %518 : vector<8x8xf32>
    %c2_326 = arith.constant 2 : index
    %c12_327 = arith.constant 12 : index
    %520 = memref.load %arg7[%c2_326, %c12_327] : memref<4x16xf32, #tpu.memory_space<smem>>
    %521 = vector.broadcast %520 : f32 to vector<8x8xf32>
    %522 = arith.mulf %463, %521 : vector<8x8xf32>
    %523 = arith.addf %371, %522 : vector<8x8xf32>
    %c2_328 = arith.constant 2 : index
    %c13_329 = arith.constant 13 : index
    %524 = memref.load %arg7[%c2_328, %c13_329] : memref<4x16xf32, #tpu.memory_space<smem>>
    %525 = vector.broadcast %524 : f32 to vector<8x8xf32>
    %526 = arith.mulf %463, %525 : vector<8x8xf32>
    %527 = arith.addf %375, %526 : vector<8x8xf32>
    %c2_330 = arith.constant 2 : index
    %c14_331 = arith.constant 14 : index
    %528 = memref.load %arg7[%c2_330, %c14_331] : memref<4x16xf32, #tpu.memory_space<smem>>
    %529 = vector.broadcast %528 : f32 to vector<8x8xf32>
    %530 = arith.mulf %463, %529 : vector<8x8xf32>
    %531 = arith.addf %379, %530 : vector<8x8xf32>
    %c2_332 = arith.constant 2 : index
    %c15_333 = arith.constant 15 : index
    %532 = memref.load %arg7[%c2_332, %c15_333] : memref<4x16xf32, #tpu.memory_space<smem>>
    %533 = vector.broadcast %532 : f32 to vector<8x8xf32>
    %534 = arith.mulf %463, %533 : vector<8x8xf32>
    %535 = arith.addf %383, %534 : vector<8x8xf32>
    %c3_334 = arith.constant 3 : index
    %c0_335 = arith.constant 0 : index
    %536 = memref.load %arg6[%c3_334, %c0_335] : memref<4x16xf32, #tpu.memory_space<smem>>
    %537 = vector.broadcast %536 : f32 to vector<8x8xf32>
    %538 = arith.mulf %1, %537 : vector<8x8xf32>
    %c3_336 = arith.constant 3 : index
    %c1_337 = arith.constant 1 : index
    %539 = memref.load %arg6[%c3_336, %c1_337] : memref<4x16xf32, #tpu.memory_space<smem>>
    %540 = vector.broadcast %539 : f32 to vector<8x8xf32>
    %541 = arith.mulf %3, %540 : vector<8x8xf32>
    %542 = arith.addf %538, %541 : vector<8x8xf32>
    %c3_338 = arith.constant 3 : index
    %c2_339 = arith.constant 2 : index
    %543 = memref.load %arg6[%c3_338, %c2_339] : memref<4x16xf32, #tpu.memory_space<smem>>
    %544 = vector.broadcast %543 : f32 to vector<8x8xf32>
    %545 = arith.mulf %5, %544 : vector<8x8xf32>
    %546 = arith.addf %542, %545 : vector<8x8xf32>
    %c3_340 = arith.constant 3 : index
    %c3_341 = arith.constant 3 : index
    %547 = memref.load %arg6[%c3_340, %c3_341] : memref<4x16xf32, #tpu.memory_space<smem>>
    %548 = vector.broadcast %547 : f32 to vector<8x8xf32>
    %549 = arith.mulf %7, %548 : vector<8x8xf32>
    %550 = arith.addf %546, %549 : vector<8x8xf32>
    %c3_342 = arith.constant 3 : index
    %c4_343 = arith.constant 4 : index
    %551 = memref.load %arg6[%c3_342, %c4_343] : memref<4x16xf32, #tpu.memory_space<smem>>
    %552 = vector.broadcast %551 : f32 to vector<8x8xf32>
    %553 = arith.mulf %9, %552 : vector<8x8xf32>
    %554 = arith.addf %550, %553 : vector<8x8xf32>
    %c3_344 = arith.constant 3 : index
    %c5_345 = arith.constant 5 : index
    %555 = memref.load %arg6[%c3_344, %c5_345] : memref<4x16xf32, #tpu.memory_space<smem>>
    %556 = vector.broadcast %555 : f32 to vector<8x8xf32>
    %557 = arith.mulf %11, %556 : vector<8x8xf32>
    %558 = arith.addf %554, %557 : vector<8x8xf32>
    %c3_346 = arith.constant 3 : index
    %c6_347 = arith.constant 6 : index
    %559 = memref.load %arg6[%c3_346, %c6_347] : memref<4x16xf32, #tpu.memory_space<smem>>
    %560 = vector.broadcast %559 : f32 to vector<8x8xf32>
    %561 = arith.mulf %13, %560 : vector<8x8xf32>
    %562 = arith.addf %558, %561 : vector<8x8xf32>
    %c3_348 = arith.constant 3 : index
    %c7_349 = arith.constant 7 : index
    %563 = memref.load %arg6[%c3_348, %c7_349] : memref<4x16xf32, #tpu.memory_space<smem>>
    %564 = vector.broadcast %563 : f32 to vector<8x8xf32>
    %565 = arith.mulf %15, %564 : vector<8x8xf32>
    %566 = arith.addf %562, %565 : vector<8x8xf32>
    %c3_350 = arith.constant 3 : index
    %c8_351 = arith.constant 8 : index
    %567 = memref.load %arg6[%c3_350, %c8_351] : memref<4x16xf32, #tpu.memory_space<smem>>
    %568 = vector.broadcast %567 : f32 to vector<8x8xf32>
    %569 = arith.mulf %17, %568 : vector<8x8xf32>
    %570 = arith.addf %566, %569 : vector<8x8xf32>
    %c3_352 = arith.constant 3 : index
    %c9_353 = arith.constant 9 : index
    %571 = memref.load %arg6[%c3_352, %c9_353] : memref<4x16xf32, #tpu.memory_space<smem>>
    %572 = vector.broadcast %571 : f32 to vector<8x8xf32>
    %573 = arith.mulf %19, %572 : vector<8x8xf32>
    %574 = arith.addf %570, %573 : vector<8x8xf32>
    %c3_354 = arith.constant 3 : index
    %c10_355 = arith.constant 10 : index
    %575 = memref.load %arg6[%c3_354, %c10_355] : memref<4x16xf32, #tpu.memory_space<smem>>
    %576 = vector.broadcast %575 : f32 to vector<8x8xf32>
    %577 = arith.mulf %21, %576 : vector<8x8xf32>
    %578 = arith.addf %574, %577 : vector<8x8xf32>
    %c3_356 = arith.constant 3 : index
    %c11_357 = arith.constant 11 : index
    %579 = memref.load %arg6[%c3_356, %c11_357] : memref<4x16xf32, #tpu.memory_space<smem>>
    %580 = vector.broadcast %579 : f32 to vector<8x8xf32>
    %581 = arith.mulf %23, %580 : vector<8x8xf32>
    %582 = arith.addf %578, %581 : vector<8x8xf32>
    %c3_358 = arith.constant 3 : index
    %c12_359 = arith.constant 12 : index
    %583 = memref.load %arg6[%c3_358, %c12_359] : memref<4x16xf32, #tpu.memory_space<smem>>
    %584 = vector.broadcast %583 : f32 to vector<8x8xf32>
    %585 = arith.mulf %25, %584 : vector<8x8xf32>
    %586 = arith.addf %582, %585 : vector<8x8xf32>
    %c3_360 = arith.constant 3 : index
    %c13_361 = arith.constant 13 : index
    %587 = memref.load %arg6[%c3_360, %c13_361] : memref<4x16xf32, #tpu.memory_space<smem>>
    %588 = vector.broadcast %587 : f32 to vector<8x8xf32>
    %589 = arith.mulf %27, %588 : vector<8x8xf32>
    %590 = arith.addf %586, %589 : vector<8x8xf32>
    %c3_362 = arith.constant 3 : index
    %c14_363 = arith.constant 14 : index
    %591 = memref.load %arg6[%c3_362, %c14_363] : memref<4x16xf32, #tpu.memory_space<smem>>
    %592 = vector.broadcast %591 : f32 to vector<8x8xf32>
    %593 = arith.mulf %29, %592 : vector<8x8xf32>
    %594 = arith.addf %590, %593 : vector<8x8xf32>
    %c3_364 = arith.constant 3 : index
    %c15_365 = arith.constant 15 : index
    %595 = memref.load %arg6[%c3_364, %c15_365] : memref<4x16xf32, #tpu.memory_space<smem>>
    %596 = vector.broadcast %595 : f32 to vector<8x8xf32>
    %597 = arith.mulf %31, %596 : vector<8x8xf32>
    %598 = arith.addf %594, %597 : vector<8x8xf32>
    %c0_366 = arith.constant 0 : index
    %c3_367 = arith.constant 3 : index
    %c0_368 = arith.constant 0 : index
    %c0_369 = arith.constant 0 : index
    %599 = vector.load %arg2[%c0_366, %c3_367, %c0_368, %c0_369] : memref<1x4x8x12xbf16, #tpu.memory_space<vmem>>, vector<1x1x8x12xbf16>
    %600 = vector.shape_cast %599 : vector<1x1x8x12xbf16> to vector<8x12xbf16>
    %c0_370 = arith.constant 0 : index
    %c3_371 = arith.constant 3 : index
    %c0_372 = arith.constant 0 : index
    %c0_373 = arith.constant 0 : index
    %601 = vector.load %arg3[%c0_370, %c3_371, %c0_372, %c0_373] : memref<1x4x8x12xbf16, #tpu.memory_space<vmem>>, vector<1x1x8x12xbf16>
    %602 = vector.shape_cast %601 : vector<1x1x8x12xbf16> to vector<8x12xbf16>
    %cst_374 = arith.constant dense<0.000000e+00> : vector<8x8xf32>
    %603 = tpu.matmul %600, %602, %cst_374 {dimension_numbers = #tpu.dot_dimension_numbers<[1], [1], [0], [0], [0, 0, 1, 0], [], []>} : vector<8x12xbf16>, vector<8x12xbf16>, vector<8x8xf32> -> vector<8x8xf32>
    %cst_375 = arith.constant 0.288675129 : f32
    %604 = vector.broadcast %cst_375 : f32 to vector<8x8xf32>
    %605 = arith.mulf %603, %604 : vector<8x8xf32>
    %606 = arith.addf %605, %598 : vector<8x8xf32>
    %cst_376 = arith.constant dense<0xFF800000> : vector<8xf32>
    %607 = vector.multi_reduction <maximumf>, %606, %cst_376 [1] : vector<8x8xf32> to vector<8xf32>
    %608 = vector.shape_cast %607 : vector<8xf32> to vector<8x1xf32>
    %609 = vector.broadcast %608 : vector<8x1xf32> to vector<8x8xf32>
    %610 = arith.subf %606, %609 : vector<8x8xf32>
    %611 = math.exp %610 : vector<8x8xf32>
    %cst_377 = arith.constant dense<0.000000e+00> : vector<8xf32>
    %612 = vector.multi_reduction <add>, %611, %cst_377 [1] : vector<8x8xf32> to vector<8xf32>
    %613 = vector.shape_cast %612 : vector<8xf32> to vector<8x1xf32>
    %614 = vector.broadcast %613 : vector<8x1xf32> to vector<8x8xf32>
    %615 = arith.divf %611, %614 : vector<8x8xf32>
    %616 = arith.truncf %615 : vector<8x8xf32> to vector<8x8xbf16>
    %c0_378 = arith.constant 0 : index
    %c3_379 = arith.constant 3 : index
    %c0_380 = arith.constant 0 : index
    %c0_381 = arith.constant 0 : index
    %617 = vector.load %arg4[%c0_378, %c3_379, %c0_380, %c0_381] : memref<1x4x8x12xbf16, #tpu.memory_space<vmem>>, vector<1x1x8x12xbf16>
    %618 = vector.shape_cast %617 : vector<1x1x8x12xbf16> to vector<8x12xbf16>
    %cst_382 = arith.constant dense<0.000000e+00> : vector<8x12xf32>
    %619 = tpu.matmul %616, %618, %cst_382 {dimension_numbers = #tpu.dot_dimension_numbers<[1], [0], [0], [1], [0, 0, 1, 1], [], []>} : vector<8x8xbf16>, vector<8x12xbf16>, vector<8x12xf32> -> vector<8x12xf32>
    %620 = arith.truncf %619 : vector<8x12xf32> to vector<8x12xbf16>
    %c0_383 = arith.constant 0 : index
    %c3_384 = arith.constant 3 : index
    %c0_385 = arith.constant 0 : index
    %c0_386 = arith.constant 0 : index
    %621 = vector.load %arg11[%c0_383, %c3_384, %c0_385, %c0_386] : memref<1x4x8x12xbf16, #tpu.memory_space<vmem>>, vector<1x1x8x12xbf16>
    %622 = vector.shape_cast %621 : vector<1x1x8x12xbf16> to vector<8x12xbf16>
    %623 = vector.shape_cast %620 : vector<8x12xbf16> to vector<1x1x8x12xbf16>
    tpu.vector_store %arg11[%c0_383, %c3_384, %c0_385, %c0_386], %623 {strides = array<i32>} : memref<1x4x8x12xbf16, #tpu.memory_space<vmem>>, vector<1x1x8x12xbf16>,
    %c3_387 = arith.constant 3 : index
    %c0_388 = arith.constant 0 : index
    %624 = memref.load %arg7[%c3_387, %c0_388] : memref<4x16xf32, #tpu.memory_space<smem>>
    %625 = vector.broadcast %624 : f32 to vector<8x8xf32>
    %626 = arith.mulf %615, %625 : vector<8x8xf32>
    %627 = arith.addf %475, %626 : vector<8x8xf32>
    %c3_389 = arith.constant 3 : index
    %c1_390 = arith.constant 1 : index
    %628 = memref.load %arg7[%c3_389, %c1_390] : memref<4x16xf32, #tpu.memory_space<smem>>
    %629 = vector.broadcast %628 : f32 to vector<8x8xf32>
    %630 = arith.mulf %615, %629 : vector<8x8xf32>
    %631 = arith.addf %479, %630 : vector<8x8xf32>
    %c3_391 = arith.constant 3 : index
    %c2_392 = arith.constant 2 : index
    %632 = memref.load %arg7[%c3_391, %c2_392] : memref<4x16xf32, #tpu.memory_space<smem>>
    %633 = vector.broadcast %632 : f32 to vector<8x8xf32>
    %634 = arith.mulf %615, %633 : vector<8x8xf32>
    %635 = arith.addf %483, %634 : vector<8x8xf32>
    %c3_393 = arith.constant 3 : index
    %c3_394 = arith.constant 3 : index
    %636 = memref.load %arg7[%c3_393, %c3_394] : memref<4x16xf32, #tpu.memory_space<smem>>
    %637 = vector.broadcast %636 : f32 to vector<8x8xf32>
    %638 = arith.mulf %615, %637 : vector<8x8xf32>
    %639 = arith.addf %487, %638 : vector<8x8xf32>
    %c3_395 = arith.constant 3 : index
    %c4_396 = arith.constant 4 : index
    %640 = memref.load %arg7[%c3_395, %c4_396] : memref<4x16xf32, #tpu.memory_space<smem>>
    %641 = vector.broadcast %640 : f32 to vector<8x8xf32>
    %642 = arith.mulf %615, %641 : vector<8x8xf32>
    %643 = arith.addf %491, %642 : vector<8x8xf32>
    %c3_397 = arith.constant 3 : index
    %c5_398 = arith.constant 5 : index
    %644 = memref.load %arg7[%c3_397, %c5_398] : memref<4x16xf32, #tpu.memory_space<smem>>
    %645 = vector.broadcast %644 : f32 to vector<8x8xf32>
    %646 = arith.mulf %615, %645 : vector<8x8xf32>
    %647 = arith.addf %495, %646 : vector<8x8xf32>
    %c3_399 = arith.constant 3 : index
    %c6_400 = arith.constant 6 : index
    %648 = memref.load %arg7[%c3_399, %c6_400] : memref<4x16xf32, #tpu.memory_space<smem>>
    %649 = vector.broadcast %648 : f32 to vector<8x8xf32>
    %650 = arith.mulf %615, %649 : vector<8x8xf32>
    %651 = arith.addf %499, %650 : vector<8x8xf32>
    %c3_401 = arith.constant 3 : index
    %c7_402 = arith.constant 7 : index
    %652 = memref.load %arg7[%c3_401, %c7_402] : memref<4x16xf32, #tpu.memory_space<smem>>
    %653 = vector.broadcast %652 : f32 to vector<8x8xf32>
    %654 = arith.mulf %615, %653 : vector<8x8xf32>
    %655 = arith.addf %503, %654 : vector<8x8xf32>
    %c3_403 = arith.constant 3 : index
    %c8_404 = arith.constant 8 : index
    %656 = memref.load %arg7[%c3_403, %c8_404] : memref<4x16xf32, #tpu.memory_space<smem>>
    %657 = vector.broadcast %656 : f32 to vector<8x8xf32>
    %658 = arith.mulf %615, %657 : vector<8x8xf32>
    %659 = arith.addf %507, %658 : vector<8x8xf32>
    %c3_405 = arith.constant 3 : index
    %c9_406 = arith.constant 9 : index
    %660 = memref.load %arg7[%c3_405, %c9_406] : memref<4x16xf32, #tpu.memory_space<smem>>
    %661 = vector.broadcast %660 : f32 to vector<8x8xf32>
    %662 = arith.mulf %615, %661 : vector<8x8xf32>
    %663 = arith.addf %511, %662 : vector<8x8xf32>
    %c3_407 = arith.constant 3 : index
    %c10_408 = arith.constant 10 : index
    %664 = memref.load %arg7[%c3_407, %c10_408] : memref<4x16xf32, #tpu.memory_space<smem>>
    %665 = vector.broadcast %664 : f32 to vector<8x8xf32>
    %666 = arith.mulf %615, %665 : vector<8x8xf32>
    %667 = arith.addf %515, %666 : vector<8x8xf32>
    %c3_409 = arith.constant 3 : index
    %c11_410 = arith.constant 11 : index
    %668 = memref.load %arg7[%c3_409, %c11_410] : memref<4x16xf32, #tpu.memory_space<smem>>
    %669 = vector.broadcast %668 : f32 to vector<8x8xf32>
    %670 = arith.mulf %615, %669 : vector<8x8xf32>
    %671 = arith.addf %519, %670 : vector<8x8xf32>
    %c3_411 = arith.constant 3 : index
    %c12_412 = arith.constant 12 : index
    %672 = memref.load %arg7[%c3_411, %c12_412] : memref<4x16xf32, #tpu.memory_space<smem>>
    %673 = vector.broadcast %672 : f32 to vector<8x8xf32>
    %674 = arith.mulf %615, %673 : vector<8x8xf32>
    %675 = arith.addf %523, %674 : vector<8x8xf32>
    %c3_413 = arith.constant 3 : index
    %c13_414 = arith.constant 13 : index
    %676 = memref.load %arg7[%c3_413, %c13_414] : memref<4x16xf32, #tpu.memory_space<smem>>
    %677 = vector.broadcast %676 : f32 to vector<8x8xf32>
    %678 = arith.mulf %615, %677 : vector<8x8xf32>
    %679 = arith.addf %527, %678 : vector<8x8xf32>
    %c3_415 = arith.constant 3 : index
    %c14_416 = arith.constant 14 : index
    %680 = memref.load %arg7[%c3_415, %c14_416] : memref<4x16xf32, #tpu.memory_space<smem>>
    %681 = vector.broadcast %680 : f32 to vector<8x8xf32>
    %682 = arith.mulf %615, %681 : vector<8x8xf32>
    %683 = arith.addf %531, %682 : vector<8x8xf32>
    %c3_417 = arith.constant 3 : index
    %c15_418 = arith.constant 15 : index
    %684 = memref.load %arg7[%c3_417, %c15_418] : memref<4x16xf32, #tpu.memory_space<smem>>
    %685 = vector.broadcast %684 : f32 to vector<8x8xf32>
    %686 = arith.mulf %615, %685 : vector<8x8xf32>
    %687 = arith.addf %535, %686 : vector<8x8xf32>
    %688 = arith.addf %627, %631 : vector<8x8xf32>
    %689 = arith.addf %688, %635 : vector<8x8xf32>
    %690 = arith.addf %689, %639 : vector<8x8xf32>
    %691 = arith.addf %690, %643 : vector<8x8xf32>
    %692 = arith.addf %691, %647 : vector<8x8xf32>
    %693 = arith.addf %692, %651 : vector<8x8xf32>
    %694 = arith.addf %693, %655 : vector<8x8xf32>
    %695 = arith.addf %694, %659 : vector<8x8xf32>
    %696 = arith.addf %695, %663 : vector<8x8xf32>
    %697 = arith.addf %696, %667 : vector<8x8xf32>
    %698 = arith.addf %697, %671 : vector<8x8xf32>
    %699 = arith.addf %698, %675 : vector<8x8xf32>
    %700 = arith.addf %699, %679 : vector<8x8xf32>
    %701 = arith.addf %700, %683 : vector<8x8xf32>
    %702 = arith.addf %701, %687 : vector<8x8xf32>
    %cst_419 = arith.constant 6.250000e-02 : f32
    %703 = vector.broadcast %cst_419 : f32 to vector<8x8xf32>
    %704 = arith.mulf %702, %703 : vector<8x8xf32>
    %705 = arith.subf %627, %704 : vector<8x8xf32>
    %706 = arith.mulf %705, %705 : vector<8x8xf32>
    %707 = arith.subf %631, %704 : vector<8x8xf32>
    %708 = arith.mulf %707, %707 : vector<8x8xf32>
    %709 = arith.addf %706, %708 : vector<8x8xf32>
    %710 = arith.subf %635, %704 : vector<8x8xf32>
    %711 = arith.mulf %710, %710 : vector<8x8xf32>
    %712 = arith.addf %709, %711 : vector<8x8xf32>
    %713 = arith.subf %639, %704 : vector<8x8xf32>
    %714 = arith.mulf %713, %713 : vector<8x8xf32>
    %715 = arith.addf %712, %714 : vector<8x8xf32>
    %716 = arith.subf %643, %704 : vector<8x8xf32>
    %717 = arith.mulf %716, %716 : vector<8x8xf32>
    %718 = arith.addf %715, %717 : vector<8x8xf32>
    %719 = arith.subf %647, %704 : vector<8x8xf32>
    %720 = arith.mulf %719, %719 : vector<8x8xf32>
    %721 = arith.addf %718, %720 : vector<8x8xf32>
    %722 = arith.subf %651, %704 : vector<8x8xf32>
    %723 = arith.mulf %722, %722 : vector<8x8xf32>
    %724 = arith.addf %721, %723 : vector<8x8xf32>
    %725 = arith.subf %655, %704 : vector<8x8xf32>
    %726 = arith.mulf %725, %725 : vector<8x8xf32>
    %727 = arith.addf %724, %726 : vector<8x8xf32>
    %728 = arith.subf %659, %704 : vector<8x8xf32>
    %729 = arith.mulf %728, %728 : vector<8x8xf32>
    %730 = arith.addf %727, %729 : vector<8x8xf32>
    %731 = arith.subf %663, %704 : vector<8x8xf32>
    %732 = arith.mulf %731, %731 : vector<8x8xf32>
    %733 = arith.addf %730, %732 : vector<8x8xf32>
    %734 = arith.subf %667, %704 : vector<8x8xf32>
    %735 = arith.mulf %734, %734 : vector<8x8xf32>
    %736 = arith.addf %733, %735 : vector<8x8xf32>
    %737 = arith.subf %671, %704 : vector<8x8xf32>
    %738 = arith.mulf %737, %737 : vector<8x8xf32>
    %739 = arith.addf %736, %738 : vector<8x8xf32>
    %740 = arith.subf %675, %704 : vector<8x8xf32>
    %741 = arith.mulf %740, %740 : vector<8x8xf32>
    %742 = arith.addf %739, %741 : vector<8x8xf32>
    %743 = arith.subf %679, %704 : vector<8x8xf32>
    %744 = arith.mulf %743, %743 : vector<8x8xf32>
    %745 = arith.addf %742, %744 : vector<8x8xf32>
    %746 = arith.subf %683, %704 : vector<8x8xf32>
    %747 = arith.mulf %746, %746 : vector<8x8xf32>
    %748 = arith.addf %745, %747 : vector<8x8xf32>
    %749 = arith.subf %687, %704 : vector<8x8xf32>
    %750 = arith.mulf %749, %749 : vector<8x8xf32>
    %751 = arith.addf %748, %750 : vector<8x8xf32>
    %cst_420 = arith.constant 6.250000e-02 : f32
    %752 = vector.broadcast %cst_420 : f32 to vector<8x8xf32>
    %753 = arith.mulf %751, %752 : vector<8x8xf32>
    %cst_421 = arith.constant 9.99999974E-6 : f32
    %754 = vector.broadcast %cst_421 : f32 to vector<8x8xf32>
    %755 = arith.addf %753, %754 : vector<8x8xf32>
    %756 = math.rsqrt %755 : vector<8x8xf32>
    %757 = arith.subf %627, %704 : vector<8x8xf32>
    %758 = arith.mulf %757, %756 : vector<8x8xf32>
    %c0_422 = arith.constant 0 : index
    %c0_423 = arith.constant 0 : index
    %759 = memref.load %arg9[%c0_422, %c0_423] : memref<1x16xf32, #tpu.memory_space<smem>>
    %760 = vector.broadcast %759 : f32 to vector<8x8xf32>
    %761 = arith.mulf %758, %760 : vector<8x8xf32>
    %c0_424 = arith.constant 0 : index
    %c0_425 = arith.constant 0 : index
    %762 = memref.load %arg10[%c0_424, %c0_425] : memref<1x16xf32, #tpu.memory_space<smem>>
    %763 = vector.broadcast %762 : f32 to vector<8x8xf32>
    %764 = arith.addf %761, %763 : vector<8x8xf32>
    %765 = arith.addf %627, %764 : vector<8x8xf32>
    %c0_426 = arith.constant 0 : index
    %c0_427 = arith.constant 0 : index
    %c0_428 = arith.constant 0 : index
    %c0_429 = arith.constant 0 : index
    %766 = vector.load %arg12[%c0_426, %c0_427, %c0_428, %c0_429] : memref<1x16x8x8xf32, #tpu.memory_space<vmem>>, vector<1x1x8x8xf32>
    %767 = vector.shape_cast %766 : vector<1x1x8x8xf32> to vector<8x8xf32>
    %768 = vector.shape_cast %765 : vector<8x8xf32> to vector<1x1x8x8xf32>
    tpu.vector_store %arg12[%c0_426, %c0_427, %c0_428, %c0_429], %768 {strides = array<i32>} : memref<1x16x8x8xf32, #tpu.memory_space<vmem>>, vector<1x1x8x8xf32>,
    %769 = arith.subf %631, %704 : vector<8x8xf32>
    %770 = arith.mulf %769, %756 : vector<8x8xf32>
    %c0_430 = arith.constant 0 : index
    %c1_431 = arith.constant 1 : index
    %771 = memref.load %arg9[%c0_430, %c1_431] : memref<1x16xf32, #tpu.memory_space<smem>>
    %772 = vector.broadcast %771 : f32 to vector<8x8xf32>
    %773 = arith.mulf %770, %772 : vector<8x8xf32>
    %c0_432 = arith.constant 0 : index
    %c1_433 = arith.constant 1 : index
    %774 = memref.load %arg10[%c0_432, %c1_433] : memref<1x16xf32, #tpu.memory_space<smem>>
    %775 = vector.broadcast %774 : f32 to vector<8x8xf32>
    %776 = arith.addf %773, %775 : vector<8x8xf32>
    %777 = arith.addf %631, %776 : vector<8x8xf32>
    %c0_434 = arith.constant 0 : index
    %c1_435 = arith.constant 1 : index
    %c0_436 = arith.constant 0 : index
    %c0_437 = arith.constant 0 : index
    %778 = vector.load %arg12[%c0_434, %c1_435, %c0_436, %c0_437] : memref<1x16x8x8xf32, #tpu.memory_space<vmem>>, vector<1x1x8x8xf32>
    %779 = vector.shape_cast %778 : vector<1x1x8x8xf32> to vector<8x8xf32>
    %780 = vector.shape_cast %777 : vector<8x8xf32> to vector<1x1x8x8xf32>
    tpu.vector_store %arg12[%c0_434, %c1_435, %c0_436, %c0_437], %780 {strides = array<i32>} : memref<1x16x8x8xf32, #tpu.memory_space<vmem>>, vector<1x1x8x8xf32>,
    %781 = arith.subf %635, %704 : vector<8x8xf32>
    %782 = arith.mulf %781, %756 : vector<8x8xf32>
    %c0_438 = arith.constant 0 : index
    %c2_439 = arith.constant 2 : index
    %783 = memref.load %arg9[%c0_438, %c2_439] : memref<1x16xf32, #tpu.memory_space<smem>>
    %784 = vector.broadcast %783 : f32 to vector<8x8xf32>
    %785 = arith.mulf %782, %784 : vector<8x8xf32>
    %c0_440 = arith.constant 0 : index
    %c2_441 = arith.constant 2 : index
    %786 = memref.load %arg10[%c0_440, %c2_441] : memref<1x16xf32, #tpu.memory_space<smem>>
    %787 = vector.broadcast %786 : f32 to vector<8x8xf32>
    %788 = arith.addf %785, %787 : vector<8x8xf32>
    %789 = arith.addf %635, %788 : vector<8x8xf32>
    %c0_442 = arith.constant 0 : index
    %c2_443 = arith.constant 2 : index
    %c0_444 = arith.constant 0 : index
    %c0_445 = arith.constant 0 : index
    %790 = vector.load %arg12[%c0_442, %c2_443, %c0_444, %c0_445] : memref<1x16x8x8xf32, #tpu.memory_space<vmem>>, vector<1x1x8x8xf32>
    %791 = vector.shape_cast %790 : vector<1x1x8x8xf32> to vector<8x8xf32>
    %792 = vector.shape_cast %789 : vector<8x8xf32> to vector<1x1x8x8xf32>
    tpu.vector_store %arg12[%c0_442, %c2_443, %c0_444, %c0_445], %792 {strides = array<i32>} : memref<1x16x8x8xf32, #tpu.memory_space<vmem>>, vector<1x1x8x8xf32>,
    %793 = arith.subf %639, %704 : vector<8x8xf32>
    %794 = arith.mulf %793, %756 : vector<8x8xf32>
    %c0_446 = arith.constant 0 : index
    %c3_447 = arith.constant 3 : index
    %795 = memref.load %arg9[%c0_446, %c3_447] : memref<1x16xf32, #tpu.memory_space<smem>>
    %796 = vector.broadcast %795 : f32 to vector<8x8xf32>
    %797 = arith.mulf %794, %796 : vector<8x8xf32>
    %c0_448 = arith.constant 0 : index
    %c3_449 = arith.constant 3 : index
    %798 = memref.load %arg10[%c0_448, %c3_449] : memref<1x16xf32, #tpu.memory_space<smem>>
    %799 = vector.broadcast %798 : f32 to vector<8x8xf32>
    %800 = arith.addf %797, %799 : vector<8x8xf32>
    %801 = arith.addf %639, %800 : vector<8x8xf32>
    %c0_450 = arith.constant 0 : index
    %c3_451 = arith.constant 3 : index
    %c0_452 = arith.constant 0 : index
    %c0_453 = arith.constant 0 : index
    %802 = vector.load %arg12[%c0_450, %c3_451, %c0_452, %c0_453] : memref<1x16x8x8xf32, #tpu.memory_space<vmem>>, vector<1x1x8x8xf32>
    %803 = vector.shape_cast %802 : vector<1x1x8x8xf32> to vector<8x8xf32>
    %804 = vector.shape_cast %801 : vector<8x8xf32> to vector<1x1x8x8xf32>
    tpu.vector_store %arg12[%c0_450, %c3_451, %c0_452, %c0_453], %804 {strides = array<i32>} : memref<1x16x8x8xf32, #tpu.memory_space<vmem>>, vector<1x1x8x8xf32>,
    %805 = arith.subf %643, %704 : vector<8x8xf32>
    %806 = arith.mulf %805, %756 : vector<8x8xf32>
    %c0_454 = arith.constant 0 : index
    %c4_455 = arith.constant 4 : index
    %807 = memref.load %arg9[%c0_454, %c4_455] : memref<1x16xf32, #tpu.memory_space<smem>>
    %808 = vector.broadcast %807 : f32 to vector<8x8xf32>
    %809 = arith.mulf %806, %808 : vector<8x8xf32>
    %c0_456 = arith.constant 0 : index
    %c4_457 = arith.constant 4 : index
    %810 = memref.load %arg10[%c0_456, %c4_457] : memref<1x16xf32, #tpu.memory_space<smem>>
    %811 = vector.broadcast %810 : f32 to vector<8x8xf32>
    %812 = arith.addf %809, %811 : vector<8x8xf32>
    %813 = arith.addf %643, %812 : vector<8x8xf32>
    %c0_458 = arith.constant 0 : index
    %c4_459 = arith.constant 4 : index
    %c0_460 = arith.constant 0 : index
    %c0_461 = arith.constant 0 : index
    %814 = vector.load %arg12[%c0_458, %c4_459, %c0_460, %c0_461] : memref<1x16x8x8xf32, #tpu.memory_space<vmem>>, vector<1x1x8x8xf32>
    %815 = vector.shape_cast %814 : vector<1x1x8x8xf32> to vector<8x8xf32>
    %816 = vector.shape_cast %813 : vector<8x8xf32> to vector<1x1x8x8xf32>
    tpu.vector_store %arg12[%c0_458, %c4_459, %c0_460, %c0_461], %816 {strides = array<i32>} : memref<1x16x8x8xf32, #tpu.memory_space<vmem>>, vector<1x1x8x8xf32>,
    %817 = arith.subf %647, %704 : vector<8x8xf32>
    %818 = arith.mulf %817, %756 : vector<8x8xf32>
    %c0_462 = arith.constant 0 : index
    %c5_463 = arith.constant 5 : index
    %819 = memref.load %arg9[%c0_462, %c5_463] : memref<1x16xf32, #tpu.memory_space<smem>>
    %820 = vector.broadcast %819 : f32 to vector<8x8xf32>
    %821 = arith.mulf %818, %820 : vector<8x8xf32>
    %c0_464 = arith.constant 0 : index
    %c5_465 = arith.constant 5 : index
    %822 = memref.load %arg10[%c0_464, %c5_465] : memref<1x16xf32, #tpu.memory_space<smem>>
    %823 = vector.broadcast %822 : f32 to vector<8x8xf32>
    %824 = arith.addf %821, %823 : vector<8x8xf32>
    %825 = arith.addf %647, %824 : vector<8x8xf32>
    %c0_466 = arith.constant 0 : index
    %c5_467 = arith.constant 5 : index
    %c0_468 = arith.constant 0 : index
    %c0_469 = arith.constant 0 : index
    %826 = vector.load %arg12[%c0_466, %c5_467, %c0_468, %c0_469] : memref<1x16x8x8xf32, #tpu.memory_space<vmem>>, vector<1x1x8x8xf32>
    %827 = vector.shape_cast %826 : vector<1x1x8x8xf32> to vector<8x8xf32>
    %828 = vector.shape_cast %825 : vector<8x8xf32> to vector<1x1x8x8xf32>
    tpu.vector_store %arg12[%c0_466, %c5_467, %c0_468, %c0_469], %828 {strides = array<i32>} : memref<1x16x8x8xf32, #tpu.memory_space<vmem>>, vector<1x1x8x8xf32>,
    %829 = arith.subf %651, %704 : vector<8x8xf32>
    %830 = arith.mulf %829, %756 : vector<8x8xf32>
    %c0_470 = arith.constant 0 : index
    %c6_471 = arith.constant 6 : index
    %831 = memref.load %arg9[%c0_470, %c6_471] : memref<1x16xf32, #tpu.memory_space<smem>>
    %832 = vector.broadcast %831 : f32 to vector<8x8xf32>
    %833 = arith.mulf %830, %832 : vector<8x8xf32>
    %c0_472 = arith.constant 0 : index
    %c6_473 = arith.constant 6 : index
    %834 = memref.load %arg10[%c0_472, %c6_473] : memref<1x16xf32, #tpu.memory_space<smem>>
    %835 = vector.broadcast %834 : f32 to vector<8x8xf32>
    %836 = arith.addf %833, %835 : vector<8x8xf32>
    %837 = arith.addf %651, %836 : vector<8x8xf32>
    %c0_474 = arith.constant 0 : index
    %c6_475 = arith.constant 6 : index
    %c0_476 = arith.constant 0 : index
    %c0_477 = arith.constant 0 : index
    %838 = vector.load %arg12[%c0_474, %c6_475, %c0_476, %c0_477] : memref<1x16x8x8xf32, #tpu.memory_space<vmem>>, vector<1x1x8x8xf32>
    %839 = vector.shape_cast %838 : vector<1x1x8x8xf32> to vector<8x8xf32>
    %840 = vector.shape_cast %837 : vector<8x8xf32> to vector<1x1x8x8xf32>
    tpu.vector_store %arg12[%c0_474, %c6_475, %c0_476, %c0_477], %840 {strides = array<i32>} : memref<1x16x8x8xf32, #tpu.memory_space<vmem>>, vector<1x1x8x8xf32>,
    %841 = arith.subf %655, %704 : vector<8x8xf32>
    %842 = arith.mulf %841, %756 : vector<8x8xf32>
    %c0_478 = arith.constant 0 : index
    %c7_479 = arith.constant 7 : index
    %843 = memref.load %arg9[%c0_478, %c7_479] : memref<1x16xf32, #tpu.memory_space<smem>>
    %844 = vector.broadcast %843 : f32 to vector<8x8xf32>
    %845 = arith.mulf %842, %844 : vector<8x8xf32>
    %c0_480 = arith.constant 0 : index
    %c7_481 = arith.constant 7 : index
    %846 = memref.load %arg10[%c0_480, %c7_481] : memref<1x16xf32, #tpu.memory_space<smem>>
    %847 = vector.broadcast %846 : f32 to vector<8x8xf32>
    %848 = arith.addf %845, %847 : vector<8x8xf32>
    %849 = arith.addf %655, %848 : vector<8x8xf32>
    %c0_482 = arith.constant 0 : index
    %c7_483 = arith.constant 7 : index
    %c0_484 = arith.constant 0 : index
    %c0_485 = arith.constant 0 : index
    %850 = vector.load %arg12[%c0_482, %c7_483, %c0_484, %c0_485] : memref<1x16x8x8xf32, #tpu.memory_space<vmem>>, vector<1x1x8x8xf32>
    %851 = vector.shape_cast %850 : vector<1x1x8x8xf32> to vector<8x8xf32>
    %852 = vector.shape_cast %849 : vector<8x8xf32> to vector<1x1x8x8xf32>
    tpu.vector_store %arg12[%c0_482, %c7_483, %c0_484, %c0_485], %852 {strides = array<i32>} : memref<1x16x8x8xf32, #tpu.memory_space<vmem>>, vector<1x1x8x8xf32>,
    %853 = arith.subf %659, %704 : vector<8x8xf32>
    %854 = arith.mulf %853, %756 : vector<8x8xf32>
    %c0_486 = arith.constant 0 : index
    %c8_487 = arith.constant 8 : index
    %855 = memref.load %arg9[%c0_486, %c8_487] : memref<1x16xf32, #tpu.memory_space<smem>>
    %856 = vector.broadcast %855 : f32 to vector<8x8xf32>
    %857 = arith.mulf %854, %856 : vector<8x8xf32>
    %c0_488 = arith.constant 0 : index
    %c8_489 = arith.constant 8 : index
    %858 = memref.load %arg10[%c0_488, %c8_489] : memref<1x16xf32, #tpu.memory_space<smem>>
    %859 = vector.broadcast %858 : f32 to vector<8x8xf32>
    %860 = arith.addf %857, %859 : vector<8x8xf32>
    %861 = arith.addf %659, %860 : vector<8x8xf32>
    %c0_490 = arith.constant 0 : index
    %c8_491 = arith.constant 8 : index
    %c0_492 = arith.constant 0 : index
    %c0_493 = arith.constant 0 : index
    %862 = vector.load %arg12[%c0_490, %c8_491, %c0_492, %c0_493] : memref<1x16x8x8xf32, #tpu.memory_space<vmem>>, vector<1x1x8x8xf32>
    %863 = vector.shape_cast %862 : vector<1x1x8x8xf32> to vector<8x8xf32>
    %864 = vector.shape_cast %861 : vector<8x8xf32> to vector<1x1x8x8xf32>
    tpu.vector_store %arg12[%c0_490, %c8_491, %c0_492, %c0_493], %864 {strides = array<i32>} : memref<1x16x8x8xf32, #tpu.memory_space<vmem>>, vector<1x1x8x8xf32>,
    %865 = arith.subf %663, %704 : vector<8x8xf32>
    %866 = arith.mulf %865, %756 : vector<8x8xf32>
    %c0_494 = arith.constant 0 : index
    %c9_495 = arith.constant 9 : index
    %867 = memref.load %arg9[%c0_494, %c9_495] : memref<1x16xf32, #tpu.memory_space<smem>>
    %868 = vector.broadcast %867 : f32 to vector<8x8xf32>
    %869 = arith.mulf %866, %868 : vector<8x8xf32>
    %c0_496 = arith.constant 0 : index
    %c9_497 = arith.constant 9 : index
    %870 = memref.load %arg10[%c0_496, %c9_497] : memref<1x16xf32, #tpu.memory_space<smem>>
    %871 = vector.broadcast %870 : f32 to vector<8x8xf32>
    %872 = arith.addf %869, %871 : vector<8x8xf32>
    %873 = arith.addf %663, %872 : vector<8x8xf32>
    %c0_498 = arith.constant 0 : index
    %c9_499 = arith.constant 9 : index
    %c0_500 = arith.constant 0 : index
    %c0_501 = arith.constant 0 : index
    %874 = vector.load %arg12[%c0_498, %c9_499, %c0_500, %c0_501] : memref<1x16x8x8xf32, #tpu.memory_space<vmem>>, vector<1x1x8x8xf32>
    %875 = vector.shape_cast %874 : vector<1x1x8x8xf32> to vector<8x8xf32>
    %876 = vector.shape_cast %873 : vector<8x8xf32> to vector<1x1x8x8xf32>
    tpu.vector_store %arg12[%c0_498, %c9_499, %c0_500, %c0_501], %876 {strides = array<i32>} : memref<1x16x8x8xf32, #tpu.memory_space<vmem>>, vector<1x1x8x8xf32>,
    %877 = arith.subf %667, %704 : vector<8x8xf32>
    %878 = arith.mulf %877, %756 : vector<8x8xf32>
    %c0_502 = arith.constant 0 : index
    %c10_503 = arith.constant 10 : index
    %879 = memref.load %arg9[%c0_502, %c10_503] : memref<1x16xf32, #tpu.memory_space<smem>>
    %880 = vector.broadcast %879 : f32 to vector<8x8xf32>
    %881 = arith.mulf %878, %880 : vector<8x8xf32>
    %c0_504 = arith.constant 0 : index
    %c10_505 = arith.constant 10 : index
    %882 = memref.load %arg10[%c0_504, %c10_505] : memref<1x16xf32, #tpu.memory_space<smem>>
    %883 = vector.broadcast %882 : f32 to vector<8x8xf32>
    %884 = arith.addf %881, %883 : vector<8x8xf32>
    %885 = arith.addf %667, %884 : vector<8x8xf32>
    %c0_506 = arith.constant 0 : index
    %c10_507 = arith.constant 10 : index
    %c0_508 = arith.constant 0 : index
    %c0_509 = arith.constant 0 : index
    %886 = vector.load %arg12[%c0_506, %c10_507, %c0_508, %c0_509] : memref<1x16x8x8xf32, #tpu.memory_space<vmem>>, vector<1x1x8x8xf32>
    %887 = vector.shape_cast %886 : vector<1x1x8x8xf32> to vector<8x8xf32>
    %888 = vector.shape_cast %885 : vector<8x8xf32> to vector<1x1x8x8xf32>
    tpu.vector_store %arg12[%c0_506, %c10_507, %c0_508, %c0_509], %888 {strides = array<i32>} : memref<1x16x8x8xf32, #tpu.memory_space<vmem>>, vector<1x1x8x8xf32>,
    %889 = arith.subf %671, %704 : vector<8x8xf32>
    %890 = arith.mulf %889, %756 : vector<8x8xf32>
    %c0_510 = arith.constant 0 : index
    %c11_511 = arith.constant 11 : index
    %891 = memref.load %arg9[%c0_510, %c11_511] : memref<1x16xf32, #tpu.memory_space<smem>>
    %892 = vector.broadcast %891 : f32 to vector<8x8xf32>
    %893 = arith.mulf %890, %892 : vector<8x8xf32>
    %c0_512 = arith.constant 0 : index
    %c11_513 = arith.constant 11 : index
    %894 = memref.load %arg10[%c0_512, %c11_513] : memref<1x16xf32, #tpu.memory_space<smem>>
    %895 = vector.broadcast %894 : f32 to vector<8x8xf32>
    %896 = arith.addf %893, %895 : vector<8x8xf32>
    %897 = arith.addf %671, %896 : vector<8x8xf32>
    %c0_514 = arith.constant 0 : index
    %c11_515 = arith.constant 11 : index
    %c0_516 = arith.constant 0 : index
    %c0_517 = arith.constant 0 : index
    %898 = vector.load %arg12[%c0_514, %c11_515, %c0_516, %c0_517] : memref<1x16x8x8xf32, #tpu.memory_space<vmem>>, vector<1x1x8x8xf32>
    %899 = vector.shape_cast %898 : vector<1x1x8x8xf32> to vector<8x8xf32>
    %900 = vector.shape_cast %897 : vector<8x8xf32> to vector<1x1x8x8xf32>
    tpu.vector_store %arg12[%c0_514, %c11_515, %c0_516, %c0_517], %900 {strides = array<i32>} : memref<1x16x8x8xf32, #tpu.memory_space<vmem>>, vector<1x1x8x8xf32>,
    %901 = arith.subf %675, %704 : vector<8x8xf32>
    %902 = arith.mulf %901, %756 : vector<8x8xf32>
    %c0_518 = arith.constant 0 : index
    %c12_519 = arith.constant 12 : index
    %903 = memref.load %arg9[%c0_518, %c12_519] : memref<1x16xf32, #tpu.memory_space<smem>>
    %904 = vector.broadcast %903 : f32 to vector<8x8xf32>
    %905 = arith.mulf %902, %904 : vector<8x8xf32>
    %c0_520 = arith.constant 0 : index
    %c12_521 = arith.constant 12 : index
    %906 = memref.load %arg10[%c0_520, %c12_521] : memref<1x16xf32, #tpu.memory_space<smem>>
    %907 = vector.broadcast %906 : f32 to vector<8x8xf32>
    %908 = arith.addf %905, %907 : vector<8x8xf32>
    %909 = arith.addf %675, %908 : vector<8x8xf32>
    %c0_522 = arith.constant 0 : index
    %c12_523 = arith.constant 12 : index
    %c0_524 = arith.constant 0 : index
    %c0_525 = arith.constant 0 : index
    %910 = vector.load %arg12[%c0_522, %c12_523, %c0_524, %c0_525] : memref<1x16x8x8xf32, #tpu.memory_space<vmem>>, vector<1x1x8x8xf32>
    %911 = vector.shape_cast %910 : vector<1x1x8x8xf32> to vector<8x8xf32>
    %912 = vector.shape_cast %909 : vector<8x8xf32> to vector<1x1x8x8xf32>
    tpu.vector_store %arg12[%c0_522, %c12_523, %c0_524, %c0_525], %912 {strides = array<i32>} : memref<1x16x8x8xf32, #tpu.memory_space<vmem>>, vector<1x1x8x8xf32>,
    %913 = arith.subf %679, %704 : vector<8x8xf32>
    %914 = arith.mulf %913, %756 : vector<8x8xf32>
    %c0_526 = arith.constant 0 : index
    %c13_527 = arith.constant 13 : index
    %915 = memref.load %arg9[%c0_526, %c13_527] : memref<1x16xf32, #tpu.memory_space<smem>>
    %916 = vector.broadcast %915 : f32 to vector<8x8xf32>
    %917 = arith.mulf %914, %916 : vector<8x8xf32>
    %c0_528 = arith.constant 0 : index
    %c13_529 = arith.constant 13 : index
    %918 = memref.load %arg10[%c0_528, %c13_529] : memref<1x16xf32, #tpu.memory_space<smem>>
    %919 = vector.broadcast %918 : f32 to vector<8x8xf32>
    %920 = arith.addf %917, %919 : vector<8x8xf32>
    %921 = arith.addf %679, %920 : vector<8x8xf32>
    %c0_530 = arith.constant 0 : index
    %c13_531 = arith.constant 13 : index
    %c0_532 = arith.constant 0 : index
    %c0_533 = arith.constant 0 : index
    %922 = vector.load %arg12[%c0_530, %c13_531, %c0_532, %c0_533] : memref<1x16x8x8xf32, #tpu.memory_space<vmem>>, vector<1x1x8x8xf32>
    %923 = vector.shape_cast %922 : vector<1x1x8x8xf32> to vector<8x8xf32>
    %924 = vector.shape_cast %921 : vector<8x8xf32> to vector<1x1x8x8xf32>
    tpu.vector_store %arg12[%c0_530, %c13_531, %c0_532, %c0_533], %924 {strides = array<i32>} : memref<1x16x8x8xf32, #tpu.memory_space<vmem>>, vector<1x1x8x8xf32>,
    %925 = arith.subf %683, %704 : vector<8x8xf32>
    %926 = arith.mulf %925, %756 : vector<8x8xf32>
    %c0_534 = arith.constant 0 : index
    %c14_535 = arith.constant 14 : index
    %927 = memref.load %arg9[%c0_534, %c14_535] : memref<1x16xf32, #tpu.memory_space<smem>>
    %928 = vector.broadcast %927 : f32 to vector<8x8xf32>
    %929 = arith.mulf %926, %928 : vector<8x8xf32>
    %c0_536 = arith.constant 0 : index
    %c14_537 = arith.constant 14 : index
    %930 = memref.load %arg10[%c0_536, %c14_537] : memref<1x16xf32, #tpu.memory_space<smem>>
    %931 = vector.broadcast %930 : f32 to vector<8x8xf32>
    %932 = arith.addf %929, %931 : vector<8x8xf32>
    %933 = arith.addf %683, %932 : vector<8x8xf32>
    %c0_538 = arith.constant 0 : index
    %c14_539 = arith.constant 14 : index
    %c0_540 = arith.constant 0 : index
    %c0_541 = arith.constant 0 : index
    %934 = vector.load %arg12[%c0_538, %c14_539, %c0_540, %c0_541] : memref<1x16x8x8xf32, #tpu.memory_space<vmem>>, vector<1x1x8x8xf32>
    %935 = vector.shape_cast %934 : vector<1x1x8x8xf32> to vector<8x8xf32>
    %936 = vector.shape_cast %933 : vector<8x8xf32> to vector<1x1x8x8xf32>
    tpu.vector_store %arg12[%c0_538, %c14_539, %c0_540, %c0_541], %936 {strides = array<i32>} : memref<1x16x8x8xf32, #tpu.memory_space<vmem>>, vector<1x1x8x8xf32>,
    %937 = arith.subf %687, %704 : vector<8x8xf32>
    %938 = arith.mulf %937, %756 : vector<8x8xf32>
    %c0_542 = arith.constant 0 : index
    %c15_543 = arith.constant 15 : index
    %939 = memref.load %arg9[%c0_542, %c15_543] : memref<1x16xf32, #tpu.memory_space<smem>>
    %940 = vector.broadcast %939 : f32 to vector<8x8xf32>
    %941 = arith.mulf %938, %940 : vector<8x8xf32>
    %c0_544 = arith.constant 0 : index
    %c15_545 = arith.constant 15 : index
    %942 = memref.load %arg10[%c0_544, %c15_545] : memref<1x16xf32, #tpu.memory_space<smem>>
    %943 = vector.broadcast %942 : f32 to vector<8x8xf32>
    %944 = arith.addf %941, %943 : vector<8x8xf32>
    %945 = arith.addf %687, %944 : vector<8x8xf32>
    %c0_546 = arith.constant 0 : index
    %c15_547 = arith.constant 15 : index
    %c0_548 = arith.constant 0 : index
    %c0_549 = arith.constant 0 : index
    %946 = vector.load %arg12[%c0_546, %c15_547, %c0_548, %c0_549] : memref<1x16x8x8xf32, #tpu.memory_space<vmem>>, vector<1x1x8x8xf32>
    %947 = vector.shape_cast %946 : vector<1x1x8x8xf32> to vector<8x8xf32>
    %948 = vector.shape_cast %945 : vector<8x8xf32> to vector<1x1x8x8xf32>
    tpu.vector_store %arg12[%c0_546, %c15_547, %c0_548, %c0_549], %948 {strides = array<i32>} : memref<1x16x8x8xf32, #tpu.memory_space<vmem>>, vector<1x1x8x8xf32>,
    return
  }
  func.func @transform_0(%arg0: i32, %arg1: i32) -> (i32, i32, i32, i32) {
    %c0_i32 = arith.constant 0 : i32
    %c0_i32_0 = arith.constant 0 : i32
    %c0_i32_1 = arith.constant 0 : i32
    return %arg0, %c0_i32, %arg1, %c0_i32_0 : i32, i32, i32, i32
  }
  func.func @transform_1(%arg0: i32, %arg1: i32) -> (i32, i32, i32, i32) {
    %c0_i32 = arith.constant 0 : i32
    %c0_i32_0 = arith.constant 0 : i32
    %c0_i32_1 = arith.constant 0 : i32
    %c0_i32_2 = arith.constant 0 : i32
    return %arg0, %c0_i32, %c0_i32_0, %c0_i32_1 : i32, i32, i32, i32
  }
  func.func @transform_2(%arg0: i32, %arg1: i32) -> (i32, i32, i32, i32) {
    %c0_i32 = arith.constant 0 : i32
    %c0_i32_0 = arith.constant 0 : i32
    %c0_i32_1 = arith.constant 0 : i32
    %c0_i32_2 = arith.constant 0 : i32
    return %arg0, %c0_i32, %c0_i32_0, %c0_i32_1 : i32, i32, i32, i32
  }
  func.func @transform_3(%arg0: i32, %arg1: i32) -> (i32, i32, i32, i32) {
    %c0_i32 = arith.constant 0 : i32
    %c0_i32_0 = arith.constant 0 : i32
    %c0_i32_1 = arith.constant 0 : i32
    return %arg0, %c0_i32, %arg1, %c0_i32_0 : i32, i32, i32, i32
  }
  func.func @transform_4(%arg0: i32, %arg1: i32) -> (i32, i32) {
    %c0_i32 = arith.constant 0 : i32
    %c0_i32_0 = arith.constant 0 : i32
    %c0_i32_1 = arith.constant 0 : i32
    return %c0_i32, %c0_i32_0 : i32, i32
  }
  func.func @transform_5(%arg0: i32, %arg1: i32) -> (i32, i32) {
    %c0_i32 = arith.constant 0 : i32
    %c0_i32_0 = arith.constant 0 : i32
    %c0_i32_1 = arith.constant 0 : i32
    return %c0_i32, %c0_i32_0 : i32, i32
  }
  func.func @transform_6(%arg0: i32, %arg1: i32) -> (i32, i32) {
    %c0_i32 = arith.constant 0 : i32
    %c0_i32_0 = arith.constant 0 : i32
    %c0_i32_1 = arith.constant 0 : i32
    return %c0_i32, %c0_i32_0 : i32, i32
  }
  func.func @transform_7(%arg0: i32, %arg1: i32) -> (i32, i32) {
    %c0_i32 = arith.constant 0 : i32
    %c0_i32_0 = arith.constant 0 : i32
    %c0_i32_1 = arith.constant 0 : i32
    return %c0_i32, %c0_i32_0 : i32, i32
  }
  func.func @transform_8(%arg0: i32, %arg1: i32) -> (i32, i32) {
    %c0_i32 = arith.constant 0 : i32
    %c0_i32_0 = arith.constant 0 : i32
    %c0_i32_1 = arith.constant 0 : i32
    return %c0_i32, %c0_i32_0 : i32, i32
  }
  func.func @transform_9(%arg0: i32, %arg1: i32) -> (i32, i32, i32, i32) {
    %c0_i32 = arith.constant 0 : i32
    %c0_i32_0 = arith.constant 0 : i32
    %c0_i32_1 = arith.constant 0 : i32
    return %arg0, %c0_i32, %arg1, %c0_i32_0 : i32, i32, i32, i32
  }
  func.func @transform_10(%arg0: i32, %arg1: i32) -> (i32, i32, i32, i32) {
    %c0_i32 = arith.constant 0 : i32
    %c0_i32_0 = arith.constant 0 : i32
    %c0_i32_1 = arith.constant 0 : i32
    return %arg0, %c0_i32, %arg1, %c0_i32_0 : i32, i32, i32, i32
  }
}

module attributes {stable_mosaic.version = 11 : i64} {
  func.func @_linear_residual_kernel(%arg0: i32, %arg1: memref<16x128xbf16, #tpu.memory_space<vmem>>, %arg2: memref<128x48xbf16, #tpu.memory_space<vmem>>, %arg3: memref<1x48xf32, #tpu.memory_space<vmem>>, %arg4: memref<16x48xf32, #tpu.memory_space<vmem>>, %arg5: memref<16x48xf32, #tpu.memory_space<vmem>>) attributes {dimension_semantics = [#tpu.dimension_semantics<parallel>], iteration_bounds = array<i64: 1>, scalar_prefetch = 0 : i64, scratch_operands = 0 : i64, tpu.core_type = #tpu.core_type<tc>, window_params = [{transform_indices = @transform_0, window_bounds = array<i64: 16, 128>}, {pipeline_mode = #tpu.pipeline_mode<synchronous>, transform_indices = @transform_1, window_bounds = array<i64: 128, 48>}, {pipeline_mode = #tpu.pipeline_mode<synchronous>, transform_indices = @transform_2, window_bounds = array<i64: 1, 48>}, {transform_indices = @transform_3, window_bounds = array<i64: 16, 48>}, {transform_indices = @transform_4, window_bounds = array<i64: 16, 48>}]} {
    %c0 = arith.constant 0 : index
    %c0_0 = arith.constant 0 : index
    %0 = vector.load %arg1[%c0, %c0_0] : memref<16x128xbf16, #tpu.memory_space<vmem>>, vector<16x128xbf16>
    %c0_1 = arith.constant 0 : index
    %c0_2 = arith.constant 0 : index
    %1 = vector.load %arg2[%c0_1, %c0_2] : memref<128x48xbf16, #tpu.memory_space<vmem>>, vector<128x48xbf16>
    %cst = arith.constant dense<0.000000e+00> : vector<16x48xf32>
    %2 = tpu.matmul %0, %1, %cst {dimension_numbers = #tpu.dot_dimension_numbers<[1], [0], [0], [1], [0, 0, 1, 1], [], []>} : vector<16x128xbf16>, vector<128x48xbf16>, vector<16x48xf32> -> vector<16x48xf32>
    %c0_3 = arith.constant 0 : index
    %c0_4 = arith.constant 0 : index
    %3 = vector.load %arg3[%c0_3, %c0_4] : memref<1x48xf32, #tpu.memory_space<vmem>>, vector<1x48xf32>
    %4 = vector.broadcast %3 : vector<1x48xf32> to vector<16x48xf32>
    %5 = arith.addf %2, %4 : vector<16x48xf32>
    %c0_5 = arith.constant 0 : index
    %c0_6 = arith.constant 0 : index
    %6 = vector.load %arg4[%c0_5, %c0_6] : memref<16x48xf32, #tpu.memory_space<vmem>>, vector<16x48xf32>
    %7 = arith.addf %5, %6 : vector<16x48xf32>
    %c0_7 = arith.constant 0 : index
    %c0_8 = arith.constant 0 : index
    %8 = vector.load %arg5[%c0_7, %c0_8] : memref<16x48xf32, #tpu.memory_space<vmem>>, vector<16x48xf32>
    tpu.vector_store %arg5[%c0_7, %c0_8], %7 {strides = array<i32>} : memref<16x48xf32, #tpu.memory_space<vmem>>, vector<16x48xf32>,
    return
  }
  func.func @transform_0(%arg0: i32) -> (i32, i32) {
    %c0_i32 = arith.constant 0 : i32
    %c0_i32_0 = arith.constant 0 : i32
    return %arg0, %c0_i32 : i32, i32
  }
  func.func @transform_1(%arg0: i32) -> (i32, i32) {
    %c0_i32 = arith.constant 0 : i32
    %c0_i32_0 = arith.constant 0 : i32
    %c0_i32_1 = arith.constant 0 : i32
    return %c0_i32, %c0_i32_0 : i32, i32
  }
  func.func @transform_2(%arg0: i32) -> (i32, i32) {
    %c0_i32 = arith.constant 0 : i32
    %c0_i32_0 = arith.constant 0 : i32
    %c0_i32_1 = arith.constant 0 : i32
    return %c0_i32, %c0_i32_0 : i32, i32
  }
  func.func @transform_3(%arg0: i32) -> (i32, i32) {
    %c0_i32 = arith.constant 0 : i32
    %c0_i32_0 = arith.constant 0 : i32
    return %arg0, %c0_i32 : i32, i32
  }
  func.func @transform_4(%arg0: i32) -> (i32, i32) {
    %c0_i32 = arith.constant 0 : i32
    %c0_i32_0 = arith.constant 0 : i32
    return %arg0, %c0_i32 : i32, i32
  }
}

module attributes {stable_mosaic.version = 11 : i64} {
  func.func @_layernorm_kernel(%arg0: i32, %arg1: memref<16x48xf32, #tpu.memory_space<vmem>>, %arg2: memref<1x48xf32, #tpu.memory_space<vmem>>, %arg3: memref<1x48xf32, #tpu.memory_space<vmem>>, %arg4: memref<16x48xf32, #tpu.memory_space<vmem>>) attributes {dimension_semantics = [#tpu.dimension_semantics<parallel>], iteration_bounds = array<i64: 1>, scalar_prefetch = 0 : i64, scratch_operands = 0 : i64, tpu.core_type = #tpu.core_type<tc>, window_params = [{transform_indices = @transform_0, window_bounds = array<i64: 16, 48>}, {pipeline_mode = #tpu.pipeline_mode<synchronous>, transform_indices = @transform_1, window_bounds = array<i64: 1, 48>}, {pipeline_mode = #tpu.pipeline_mode<synchronous>, transform_indices = @transform_2, window_bounds = array<i64: 1, 48>}, {transform_indices = @transform_3, window_bounds = array<i64: 16, 48>}]} {
    %c0 = arith.constant 0 : index
    %c0_0 = arith.constant 0 : index
    %0 = vector.load %arg1[%c0, %c0_0] : memref<16x48xf32, #tpu.memory_space<vmem>>, vector<16x48xf32>
    %cst = arith.constant dense<0.000000e+00> : vector<16xf32>
    %1 = vector.multi_reduction <add>, %0, %cst [1] : vector<16x48xf32> to vector<16xf32>
    %2 = vector.shape_cast %1 : vector<16xf32> to vector<16x1xf32>
    %cst_1 = arith.constant 4.800000e+01 : f32
    %3 = vector.broadcast %cst_1 : f32 to vector<16x1xf32>
    %4 = arith.divf %2, %3 : vector<16x1xf32>
    %5 = vector.broadcast %4 : vector<16x1xf32> to vector<16x48xf32>
    %6 = arith.subf %0, %5 : vector<16x48xf32>
    %7 = arith.mulf %6, %6 : vector<16x48xf32>
    %cst_2 = arith.constant dense<0.000000e+00> : vector<16xf32>
    %8 = vector.multi_reduction <add>, %7, %cst_2 [1] : vector<16x48xf32> to vector<16xf32>
    %9 = vector.shape_cast %8 : vector<16xf32> to vector<16x1xf32>
    %cst_3 = arith.constant 4.800000e+01 : f32
    %10 = vector.broadcast %cst_3 : f32 to vector<16x1xf32>
    %11 = arith.divf %9, %10 : vector<16x1xf32>
    %12 = vector.broadcast %4 : vector<16x1xf32> to vector<16x48xf32>
    %13 = arith.subf %0, %12 : vector<16x48xf32>
    %cst_4 = arith.constant 9.99999974E-6 : f32
    %14 = vector.broadcast %cst_4 : f32 to vector<16x1xf32>
    %15 = arith.addf %11, %14 : vector<16x1xf32>
    %16 = math.rsqrt %15 : vector<16x1xf32>
    %17 = vector.broadcast %16 : vector<16x1xf32> to vector<16x48xf32>
    %18 = arith.mulf %13, %17 : vector<16x48xf32>
    %c0_5 = arith.constant 0 : index
    %c0_6 = arith.constant 0 : index
    %19 = vector.load %arg2[%c0_5, %c0_6] : memref<1x48xf32, #tpu.memory_space<vmem>>, vector<1x48xf32>
    %20 = vector.broadcast %19 : vector<1x48xf32> to vector<16x48xf32>
    %21 = arith.mulf %18, %20 : vector<16x48xf32>
    %c0_7 = arith.constant 0 : index
    %c0_8 = arith.constant 0 : index
    %22 = vector.load %arg3[%c0_7, %c0_8] : memref<1x48xf32, #tpu.memory_space<vmem>>, vector<1x48xf32>
    %23 = vector.broadcast %22 : vector<1x48xf32> to vector<16x48xf32>
    %24 = arith.addf %21, %23 : vector<16x48xf32>
    %c0_9 = arith.constant 0 : index
    %c0_10 = arith.constant 0 : index
    %25 = vector.load %arg4[%c0_9, %c0_10] : memref<16x48xf32, #tpu.memory_space<vmem>>, vector<16x48xf32>
    tpu.vector_store %arg4[%c0_9, %c0_10], %24 {strides = array<i32>} : memref<16x48xf32, #tpu.memory_space<vmem>>, vector<16x48xf32>,
    return
  }
  func.func @transform_0(%arg0: i32) -> (i32, i32) {
    %c0_i32 = arith.constant 0 : i32
    %c0_i32_0 = arith.constant 0 : i32
    return %arg0, %c0_i32 : i32, i32
  }
  func.func @transform_1(%arg0: i32) -> (i32, i32) {
    %c0_i32 = arith.constant 0 : i32
    %c0_i32_0 = arith.constant 0 : i32
    %c0_i32_1 = arith.constant 0 : i32
    return %c0_i32, %c0_i32_0 : i32, i32
  }
  func.func @transform_2(%arg0: i32) -> (i32, i32) {
    %c0_i32 = arith.constant 0 : i32
    %c0_i32_0 = arith.constant 0 : i32
    %c0_i32_1 = arith.constant 0 : i32
    return %c0_i32, %c0_i32_0 : i32, i32
  }
  func.func @transform_3(%arg0: i32) -> (i32, i32) {
    %c0_i32 = arith.constant 0 : i32
    %c0_i32_0 = arith.constant 0 : i32
    return %arg0, %c0_i32 : i32, i32
  }
}

module attributes {stable_mosaic.version = 11 : i64} {
  func.func @_layernorm_kernel(%arg0: i32, %arg1: memref<128x16xf32, #tpu.memory_space<vmem>>, %arg2: memref<1x16xf32, #tpu.memory_space<vmem>>, %arg3: memref<1x16xf32, #tpu.memory_space<vmem>>, %arg4: memref<128x16xf32, #tpu.memory_space<vmem>>) attributes {dimension_semantics = [#tpu.dimension_semantics<parallel>], iteration_bounds = array<i64: 1>, scalar_prefetch = 0 : i64, scratch_operands = 0 : i64, tpu.core_type = #tpu.core_type<tc>, window_params = [{transform_indices = @transform_0, window_bounds = array<i64: 128, 16>}, {pipeline_mode = #tpu.pipeline_mode<synchronous>, transform_indices = @transform_1, window_bounds = array<i64: 1, 16>}, {pipeline_mode = #tpu.pipeline_mode<synchronous>, transform_indices = @transform_2, window_bounds = array<i64: 1, 16>}, {transform_indices = @transform_3, window_bounds = array<i64: 128, 16>}]} {
    %c0 = arith.constant 0 : index
    %c0_0 = arith.constant 0 : index
    %0 = vector.load %arg1[%c0, %c0_0] : memref<128x16xf32, #tpu.memory_space<vmem>>, vector<128x16xf32>
    %cst = arith.constant dense<0.000000e+00> : vector<128xf32>
    %1 = vector.multi_reduction <add>, %0, %cst [1] : vector<128x16xf32> to vector<128xf32>
    %2 = vector.shape_cast %1 : vector<128xf32> to vector<128x1xf32>
    %cst_1 = arith.constant 1.600000e+01 : f32
    %3 = vector.broadcast %cst_1 : f32 to vector<128x1xf32>
    %4 = arith.divf %2, %3 : vector<128x1xf32>
    %5 = vector.broadcast %4 : vector<128x1xf32> to vector<128x16xf32>
    %6 = arith.subf %0, %5 : vector<128x16xf32>
    %7 = arith.mulf %6, %6 : vector<128x16xf32>
    %cst_2 = arith.constant dense<0.000000e+00> : vector<128xf32>
    %8 = vector.multi_reduction <add>, %7, %cst_2 [1] : vector<128x16xf32> to vector<128xf32>
    %9 = vector.shape_cast %8 : vector<128xf32> to vector<128x1xf32>
    %cst_3 = arith.constant 1.600000e+01 : f32
    %10 = vector.broadcast %cst_3 : f32 to vector<128x1xf32>
    %11 = arith.divf %9, %10 : vector<128x1xf32>
    %12 = vector.broadcast %4 : vector<128x1xf32> to vector<128x16xf32>
    %13 = arith.subf %0, %12 : vector<128x16xf32>
    %cst_4 = arith.constant 9.99999974E-6 : f32
    %14 = vector.broadcast %cst_4 : f32 to vector<128x1xf32>
    %15 = arith.addf %11, %14 : vector<128x1xf32>
    %16 = math.rsqrt %15 : vector<128x1xf32>
    %17 = vector.broadcast %16 : vector<128x1xf32> to vector<128x16xf32>
    %18 = arith.mulf %13, %17 : vector<128x16xf32>
    %c0_5 = arith.constant 0 : index
    %c0_6 = arith.constant 0 : index
    %19 = vector.load %arg2[%c0_5, %c0_6] : memref<1x16xf32, #tpu.memory_space<vmem>>, vector<1x16xf32>
    %20 = vector.broadcast %19 : vector<1x16xf32> to vector<128x16xf32>
    %21 = arith.mulf %18, %20 : vector<128x16xf32>
    %c0_7 = arith.constant 0 : index
    %c0_8 = arith.constant 0 : index
    %22 = vector.load %arg3[%c0_7, %c0_8] : memref<1x16xf32, #tpu.memory_space<vmem>>, vector<1x16xf32>
    %23 = vector.broadcast %22 : vector<1x16xf32> to vector<128x16xf32>
    %24 = arith.addf %21, %23 : vector<128x16xf32>
    %c0_9 = arith.constant 0 : index
    %c0_10 = arith.constant 0 : index
    %25 = vector.load %arg4[%c0_9, %c0_10] : memref<128x16xf32, #tpu.memory_space<vmem>>, vector<128x16xf32>
    tpu.vector_store %arg4[%c0_9, %c0_10], %24 {strides = array<i32>} : memref<128x16xf32, #tpu.memory_space<vmem>>, vector<128x16xf32>,
    return
  }
  func.func @transform_0(%arg0: i32) -> (i32, i32) {
    %c0_i32 = arith.constant 0 : i32
    %c0_i32_0 = arith.constant 0 : i32
    return %arg0, %c0_i32 : i32, i32
  }
  func.func @transform_1(%arg0: i32) -> (i32, i32) {
    %c0_i32 = arith.constant 0 : i32
    %c0_i32_0 = arith.constant 0 : i32
    %c0_i32_1 = arith.constant 0 : i32
    return %c0_i32, %c0_i32_0 : i32, i32
  }
  func.func @transform_2(%arg0: i32) -> (i32, i32) {
    %c0_i32 = arith.constant 0 : i32
    %c0_i32_0 = arith.constant 0 : i32
    %c0_i32_1 = arith.constant 0 : i32
    return %c0_i32, %c0_i32_0 : i32, i32
  }
  func.func @transform_3(%arg0: i32) -> (i32, i32) {
    %c0_i32 = arith.constant 0 : i32
    %c0_i32_0 = arith.constant 0 : i32
    return %arg0, %c0_i32 : i32, i32
  }
}

</mosaic_0001>

<llo_original>
// kernel: cformer_forward.17
$region0: #{cformer_forward.17}
  #allocation0 [shape = 'u32[]', space=smem, size = 0x4, offset = 0x4, fixed_abs, tag = 'smem constant byte address 0x4 - core index']
  #allocation1 [shape = 'u32[144,128]{1,0:T(1,128)}', space=vmem, size = 0x12000, scoped, tag = 'internal scratch']
  %s0 = inlined_call_operand.vmem [shape: bf16[16,48], index: 0, kind: input, shape index: {}]
  %s1 = inlined_call_operand.vmem [shape: bf16[48,144], index: 1, kind: input, shape index: {}]
  %s2 = inlined_call_operand.vmem [shape: f32[1,144], index: 2, kind: input, shape index: {}]
  %s3 = inlined_call_operand.vmem [shape: f32[16,144], index: 3, kind: output, shape index: {}]
  %s4 = sld [smem:[#allocation0]]
  $region22: #{cformer_forward.17} parent=0
    _
  %s6 = ssub.s32 1, %s4
  %s7 = scalar_select 0, %s6, %s4
  // Predicated region
  $region2: #{cformer_forward.17} parent=0 // pred_check
    _
  $region3: #{cformer_forward.17} parent=0 // pred_check_branch
    %9 = sbr.rel (0) target = $region5
  $region4: #{cformer_forward.17} parent=0 // pred_region
    _
  $region5: #{cformer_forward.17} parent=0 // pred_fallthru
    _
  // Predicated region
  $region6: #{cformer_forward.17} parent=0 // pred_check
    _
  $region7: #{cformer_forward.17} parent=0 // pred_check_branch
    %11 = sbr.rel (0) target = $region9
  $region8: #{cformer_forward.17} parent=0 // pred_region
    _
  $region9: #{cformer_forward.17} parent=0 // pred_fallthru
    _
  // Predicated region
  $region10: #{cformer_forward.17} parent=0 // pred_check
    _
  $region11: #{cformer_forward.17} parent=0 // pred_check_branch
    %13 = sbr.rel (0) target = $region13
  $region12: #{cformer_forward.17} parent=0 // pred_region
    _
  $region13: #{cformer_forward.17} parent=0 // pred_fallthru
    _
  %v15 = vld [vmem:[%s0] sm:$0xf]
  %v16 = vld [vmem:[%s0 + $0x4] sm:$0xf]
  %v17 = vld [vmem:[%s1] sm:$0xff]
  %v18 = vld [vmem:[%s1 + $0x8] sm:$0xff]
  %v19 = vld [vmem:[%s1 + $0x10] sm:$0xff]
  %v20 = vld [vmem:[%s1 + $0x18] sm:$0xff]
  %v21 = vld [vmem:[%s1 + $0x20] sm:$0xff]
  %v22 = vld [vmem:[%s1 + $0x28] sm:$0xff]
  %v23 = vld [vmem:[%s2] sm:$0x3]
  %v25 = vlaneseq
  %v26 = vshrl.u32 %v25, 7
  %v27 = vsub.s32 0, %v26
  %v28 = vrot.slane %v23, %v27
  %v29 = vlaneseq
  %v30 = vshrl.u32 %v29, 7
  %v31 = vsub.s32 1, %v30
  %v32 = vrot.slane %v23, %v31
  %v37 = vunpack.c.l.b16 %v15
  %v38 = vunpack.c.l.b16 %v16
  %v39 = vpack.c.b16 %v38, %v37
  %v46 = vunpack.c.l.b16 %v17
  %v47 = vunpack.c.h.b16 %v17
  %v48 = vunpack.c.l.b16 %v18
  %v49 = vunpack.c.h.b16 %v18
  %v50 = vunpack.c.l.b16 %v19
  %v51 = vunpack.c.h.b16 %v19
  %v52 = vunpack.c.l.b16 %v20
  %v53 = vunpack.c.h.b16 %v20
  %v54 = vunpack.c.l.b16 %v21
  %v55 = vunpack.c.h.b16 %v21
  %v56 = vunpack.c.l.b16 %v22
  %v57 = vunpack.c.h.b16 %v22
  %v58 = vpack.c.b16 %v48, %v46
  %v59 = vpack.c.b16 %v49, %v47
  %v60 = vpack.c.b16 %v52, %v50
  %v61 = vpack.c.b16 %v53, %v51
  %v62 = vpack.c.b16 %v56, %v54
  %v63 = vpack.c.b16 %v57, %v55
  %vm70 = vcmask 392192
  %v72 = vsel %vm70, %v39, 0
  %74 = vmatprep.subr.bf16.mxu0 0
  %75 = vmatpush1.bf16.msra.mxu0 0
  %76 = vmatprep.subr.bf16.mxu0 0
  %77 = vmatpush1.bf16.msra.mxu0 0
  %78 = vmatprep.subr.bf16.mxu0 0
  %79 = vmatpush1.bf16.msra.mxu0 0
  %80 = vmatprep.subr.bf16.mxu0 0
  %81 = vmatpush1.bf16.msra.mxu0 0
  %82 = vmatprep.subr.bf16.mxu0 0
  %83 = vmatpush1.bf16.msra.mxu0 0
  %84 = vmatprep.subr.bf16.mxu0 %v63
  %85 = vmatpush1.bf16.msra.mxu0 %v62
  %86 = vmatprep.subr.bf16.mxu0 %v61
  %87 = vmatpush1.bf16.msra.mxu0 %v60
  %88 = vmatprep.subr.bf16.mxu0 %v59
  %89 = vmatpush1.bf16.msra.mxu0 %v58
  %90 = vmatprep.subr.bf16.mxu0 0
  %91 = vmatpush2.bf16.msra.mxu0 0
  %92 = vmatprep.subr.bf16.mxu0 0
  %93 = vmatpush2.bf16.msra.mxu0 0
  %94 = vmatprep.subr.bf16.mxu0 0
  %95 = vmatpush2.bf16.msra.mxu0 0
  %96 = vmatprep.subr.bf16.mxu0 0
  %97 = vmatpush2.bf16.msra.mxu0 0
  %98 = vmatprep.subr.bf16.mxu0 0
  %99 = vmatpush2.bf16.msra.mxu0 0
  %100 = vmatprep.subr.bf16.mxu0 0
  %101 = vmatpush2.bf16.msra.mxu0 0
  %102 = vmatprep.subr.bf16.mxu0 0
  %103 = vmatpush2.bf16.msra.mxu0 0
  %104 = vmatprep.subr.bf16.mxu0 0
  %105 = vmatpush2.bf16.msra.mxu0 0
  %106 = vmatprep.mubr.bf16.mxu0 0
  %107 = vmatmul.mubr.bf16.gmra.mxu0 %v72
  %v108 = vpop.f32.mrf.mxu0
  %v109 = vadd.f32 %v28, %v108
  %v110 = vpop.f32.mrf.mxu0
  %v111 = vadd.f32 %v32, %v110
  %v112 = vpop.f32.mrf.mxu0
  %v113 = vadd.f32 %v28, %v112
  %v114 = vpop.f32.mrf.mxu0
  %v115 = vadd.f32 %v32, %v114
  %116 = vdwg.mxu0
  %117 = vst [vmem:[%s3] sm:$0xff] %v109
  %vm118 = vcmask 130048
  %119 = vst.msk [vmem:[%s3 + $0x8] sm:$0xff] %vm118, %v111
  %120 = vst [vmem:[%s3 + $0x10] sm:$0xff] %v113
  %121 = vst.msk [vmem:[%s3 + $0x18] sm:$0xff] %vm118, %v115
  // Predicated region
  $region14: #{cformer_forward.17} parent=0 // pred_check
    _
  $region15: #{cformer_forward.17} parent=0 // pred_check_branch
    %123 = sbr.rel (0) target = $region17
  $region16: #{cformer_forward.17} parent=0 // pred_region
    _
  $region17: #{cformer_forward.17} parent=0 // pred_fallthru
    _
  // Predicated region
  $region18: #{cformer_forward.17} parent=0 // pred_check
    _
  $region19: #{cformer_forward.17} parent=0 // pred_check_branch
    %125 = sbr.rel (0) target = $region21
  $region20: #{cformer_forward.17} parent=0 // pred_region
    _
  $region21: #{cformer_forward.17} parent=0 // pred_fallthru
    _

// kernel: cformer_forward.16
$region0: #{cformer_forward.16}
  #allocation0 [shape = 'u32[]', space=smem, size = 0x4, offset = 0x4, fixed_abs, tag = 'smem constant byte address 0x4 - core index']
  #allocation1 [shape = 'u32[144,128]{1,0:T(1,128)}', space=vmem, size = 0x12000, scoped, tag = 'internal scratch']
  %s0 = inlined_call_operand.vmem [shape: f32[16,48], index: 0, kind: input, shape index: {}]
  %s1 = inlined_call_operand.vmem [shape: f32[1,48], index: 1, kind: input, shape index: {}]
  %s2 = inlined_call_operand.vmem [shape: f32[1,48], index: 2, kind: input, shape index: {}]
  %s3 = inlined_call_operand.vmem [shape: f32[16,48], index: 3, kind: output, shape index: {}]
  %s4 = sld [smem:[#allocation0]]
  $region22: #{cformer_forward.16} parent=0
    _
  %s6 = ssub.s32 1, %s4
  %s7 = scalar_select 0, %s6, %s4
  // Predicated region
  $region2: #{cformer_forward.16} parent=0 // pred_check
    _
  $region3: #{cformer_forward.16} parent=0 // pred_check_branch
    %9 = sbr.rel (0) target = $region5
  $region4: #{cformer_forward.16} parent=0 // pred_region
    _
  $region5: #{cformer_forward.16} parent=0 // pred_fallthru
    _
  // Predicated region
  $region6: #{cformer_forward.16} parent=0 // pred_check
    _
  $region7: #{cformer_forward.16} parent=0 // pred_check_branch
    %11 = sbr.rel (0) target = $region9
  $region8: #{cformer_forward.16} parent=0 // pred_region
    _
  $region9: #{cformer_forward.16} parent=0 // pred_fallthru
    _
  // Predicated region
  $region10: #{cformer_forward.16} parent=0 // pred_check
    _
  $region11: #{cformer_forward.16} parent=0 // pred_check_branch
    %13 = sbr.rel (0) target = $region13
  $region12: #{cformer_forward.16} parent=0 // pred_region
    _
  $region13: #{cformer_forward.16} parent=0 // pred_fallthru
    _
  %v14 = vld [vmem:[%s0] sm:$0xff]
  %v15 = vld [vmem:[%s0 + $0x8] sm:$0xff]
  %vm16 = vcmask 392192
  %v17 = vsel %vm16, %v14, 0.0
  %18 = vadd.xlane.f32.xlu0 %v17
  %v19 = vpop.xlane.xlu0 %18
  %v20 = vsel %vm16, %v15, 0.0
  %21 = vadd.xlane.f32.xlu0 %v20
  %v22 = vpop.xlane.xlu0 %21
  %v23 = vrcp.pop 48.0
  %v24 = vmul.f32 %v19, %v23
  %v25 = vmul.f32 %v22, %v23
  %v26 = vsub.f32 %v14, %v24
  %v27 = vsub.f32 %v15, %v25
  %v28 = vmul.f32 %v26, %v26
  %v29 = vmul.f32 %v27, %v27
  %v30 = vsel %vm16, %v28, 0.0
  %31 = vadd.xlane.f32.xlu0 %v30
  %v32 = vpop.xlane.xlu0 %31
  %v33 = vsel %vm16, %v29, 0.0
  %34 = vadd.xlane.f32.xlu0 %v33
  %v35 = vpop.xlane.xlu0 %34
  %v36 = vmul.f32 %v32, %v23
  %v37 = vmul.f32 %v35, %v23
  %v38 = vadd.f32 %v36, 1e-05
  %v39 = vadd.f32 %v37, 1e-05
  %v40 = vrsqrt.pop %v38
  %v41 = vrsqrt.pop %v39
  %v42 = vmul.f32 %v26, %v40
  %v43 = vmul.f32 %v27, %v41
  %v44 = vld [vmem:[%s1] sm:$0x1]
  %v46 = vlaneseq
  %v47 = vshrl.u32 %v46, 7
  %v48 = vsub.s32 0, %v47
  %v49 = vrot.slane %v44, %v48
  %v51 = vmul.f32 %v42, %v49
  %v52 = vmul.f32 %v43, %v49
  %v53 = vld [vmem:[%s2] sm:$0x1]
  %v55 = vlaneseq
  %v56 = vshrl.u32 %v55, 7
  %v57 = vsub.s32 0, %v56
  %v58 = vrot.slane %v53, %v57
  %v60 = vadd.f32 %v51, %v58
  %v61 = vadd.f32 %v52, %v58
  %62 = vst.msk [vmem:[%s3] sm:$0xff] %vm16, %v60
  %63 = vst.msk [vmem:[%s3 + $0x8] sm:$0xff] %vm16, %v61
  // Predicated region
  $region14: #{cformer_forward.16} parent=0 // pred_check
    _
  $region15: #{cformer_forward.16} parent=0 // pred_check_branch
    %65 = sbr.rel (0) target = $region17
  $region16: #{cformer_forward.16} parent=0 // pred_region
    _
  $region17: #{cformer_forward.16} parent=0 // pred_fallthru
    _
  // Predicated region
  $region18: #{cformer_forward.16} parent=0 // pred_check
    _
  $region19: #{cformer_forward.16} parent=0 // pred_check_branch
    %67 = sbr.rel (0) target = $region21
  $region20: #{cformer_forward.16} parent=0 // pred_region
    _
  $region21: #{cformer_forward.16} parent=0 // pred_fallthru
    _

// kernel: cformer_forward.19
$region0: #{cformer_forward.19}
  #allocation0 [shape = 'u32[]', space=smem, size = 0x4, offset = 0x4, fixed_abs, tag = 'smem constant byte address 0x4 - core index']
  #allocation1 [shape = 'u32[144,128]{1,0:T(1,128)}', space=vmem, size = 0x12000, scoped, tag = 'internal scratch']
  %s0 = inlined_call_operand.vmem [shape: bf16[16,48], index: 0, kind: input, shape index: {}]
  %s1 = inlined_call_operand.vmem [shape: bf16[48,48], index: 1, kind: input, shape index: {}]
  %s2 = inlined_call_operand.vmem [shape: f32[1,48], index: 2, kind: input, shape index: {}]
  %s3 = inlined_call_operand.vmem [shape: f32[16,48], index: 3, kind: output, shape index: {}]
  %s4 = sld [smem:[#allocation0]]
  $region22: #{cformer_forward.19} parent=0
    _
  %s6 = ssub.s32 1, %s4
  %s7 = scalar_select 0, %s6, %s4
  // Predicated region
  $region2: #{cformer_forward.19} parent=0 // pred_check
    _
  $region3: #{cformer_forward.19} parent=0 // pred_check_branch
    %9 = sbr.rel (0) target = $region5
  $region4: #{cformer_forward.19} parent=0 // pred_region
    _
  $region5: #{cformer_forward.19} parent=0 // pred_fallthru
    _
  // Predicated region
  $region6: #{cformer_forward.19} parent=0 // pred_check
    _
  $region7: #{cformer_forward.19} parent=0 // pred_check_branch
    %11 = sbr.rel (0) target = $region9
  $region8: #{cformer_forward.19} parent=0 // pred_region
    _
  $region9: #{cformer_forward.19} parent=0 // pred_fallthru
    _
  // Predicated region
  $region10: #{cformer_forward.19} parent=0 // pred_check
    _
  $region11: #{cformer_forward.19} parent=0 // pred_check_branch
    %13 = sbr.rel (0) target = $region13
  $region12: #{cformer_forward.19} parent=0 // pred_region
    _
  $region13: #{cformer_forward.19} parent=0 // pred_fallthru
    _
  %v15 = vld [vmem:[%s0] sm:$0xf]
  %v16 = vld [vmem:[%s0 + $0x4] sm:$0xf]
  %v17 = vld [vmem:[%s1] sm:$0xf]
  %v18 = vld [vmem:[%s1 + $0x4] sm:$0xf]
  %v19 = vld [vmem:[%s1 + $0x8] sm:$0xf]
  %v20 = vld [vmem:[%s1 + $0xc] sm:$0xf]
  %v21 = vld [vmem:[%s1 + $0x10] sm:$0xf]
  %v22 = vld [vmem:[%s1 + $0x14] sm:$0xf]
  %v23 = vld [vmem:[%s2] sm:$0x1]
  %v25 = vlaneseq
  %v26 = vshrl.u32 %v25, 7
  %v27 = vsub.s32 0, %v26
  %v28 = vrot.slane %v23, %v27
  %v32 = vunpack.c.l.b16 %v15
  %v33 = vunpack.c.l.b16 %v16
  %v34 = vpack.c.b16 %v33, %v32
  %v41 = vunpack.c.l.b16 %v17
  %v42 = vunpack.c.l.b16 %v18
  %v43 = vunpack.c.l.b16 %v19
  %v44 = vunpack.c.l.b16 %v20
  %v45 = vunpack.c.l.b16 %v21
  %v46 = vunpack.c.l.b16 %v22
  %v47 = vpack.c.b16 %v42, %v41
  %v48 = vpack.c.b16 %v44, %v43
  %v49 = vpack.c.b16 %v46, %v45
  %vm53 = vcmask 392192
  %v55 = vsel %vm53, %v34, 0
  %57 = vmatprep.subr.bf16.mxu0 0
  %58 = vmatpush1.bf16.msra.mxu0 0
  %59 = vmatprep.subr.bf16.mxu0 0
  %60 = vmatpush1.bf16.msra.mxu0 0
  %61 = vmatprep.subr.bf16.mxu0 0
  %62 = vmatpush1.bf16.msra.mxu0 0
  %63 = vmatprep.subr.bf16.mxu0 0
  %64 = vmatpush1.bf16.msra.mxu0 0
  %65 = vmatprep.subr.bf16.mxu0 0
  %66 = vmatpush1.bf16.msra.mxu0 0
  %67 = vmatprep.subr.bf16.mxu0 0
  %68 = vmatpush1.bf16.msra.mxu0 %v49
  %69 = vmatprep.subr.bf16.mxu0 0
  %70 = vmatpush1.bf16.msra.mxu0 %v48
  %71 = vmatprep.subr.bf16.mxu0 0
  %72 = vmatpush1.bf16.msra.mxu0 %v47
  %73 = vmatprep.subr.bf16.mxu0 0
  %74 = vmatpush2.bf16.msra.mxu0 0
  %75 = vmatprep.subr.bf16.mxu0 0
  %76 = vmatpush2.bf16.msra.mxu0 0
  %77 = vmatprep.subr.bf16.mxu0 0
  %78 = vmatpush2.bf16.msra.mxu0 0
  %79 = vmatprep.subr.bf16.mxu0 0
  %80 = vmatpush2.bf16.msra.mxu0 0
  %81 = vmatprep.subr.bf16.mxu0 0
  %82 = vmatpush2.bf16.msra.mxu0 0
  %83 = vmatprep.subr.bf16.mxu0 0
  %84 = vmatpush2.bf16.msra.mxu0 0
  %85 = vmatprep.subr.bf16.mxu0 0
  %86 = vmatpush2.bf16.msra.mxu0 0
  %87 = vmatprep.subr.bf16.mxu0 0
  %88 = vmatpush2.bf16.msra.mxu0 0
  %89 = vmatprep.mubr.bf16.mxu0 0
  %90 = vmatmul.mubr.bf16.gmra.mxu0 %v55
  %v91 = vpop.f32.mrf.mxu0
  %v92 = vadd.f32 %v28, %v91
  %v93 = vpop.f32.mrf.mxu0
  %v94 = vpop.f32.mrf.mxu0
  %v95 = vadd.f32 %v28, %v94
  %v96 = vpop.f32.mrf.mxu0
  %97 = vdwg.mxu0
  %98 = vst.msk [vmem:[%s3] sm:$0xff] %vm53, %v92
  %99 = vst.msk [vmem:[%s3 + $0x8] sm:$0xff] %vm53, %v95
  // Predicated region
  $region14: #{cformer_forward.19} parent=0 // pred_check
    _
  $region15: #{cformer_forward.19} parent=0 // pred_check_branch
    %101 = sbr.rel (0) target = $region17
  $region16: #{cformer_forward.19} parent=0 // pred_region
    _
  $region17: #{cformer_forward.19} parent=0 // pred_fallthru
    _
  // Predicated region
  $region18: #{cformer_forward.19} parent=0 // pred_check
    _
  $region19: #{cformer_forward.19} parent=0 // pred_check_branch
    %103 = sbr.rel (0) target = $region21
  $region20: #{cformer_forward.19} parent=0 // pred_region
    _
  $region21: #{cformer_forward.19} parent=0 // pred_fallthru
    _

// kernel: cformer_forward.20
$region0: #{cformer_forward.20}
  #allocation0 [shape = 'u32[]', space=smem, size = 0x4, offset = 0x4, fixed_abs, tag = 'smem constant byte address 0x4 - core index']
  #allocation1 [shape = 'u32[144,128]{1,0:T(1,128)}', space=vmem, size = 0x12000, scoped, tag = 'internal scratch']
  %s0 = inlined_call_operand.vmem [shape: f32[16,48], index: 0, kind: input, shape index: {}]
  %s1 = inlined_call_operand.vmem [shape: f32[16,48], index: 1, kind: input, shape index: {}]
  %s2 = inlined_call_operand.vmem [shape: f32[1,48], index: 2, kind: input, shape index: {}]
  %s3 = inlined_call_operand.vmem [shape: f32[1,48], index: 3, kind: input, shape index: {}]
  %s4 = inlined_call_operand.vmem [shape: f32[16,48], index: 4, kind: output, shape index: {0}]
  %s5 = inlined_call_operand.vmem [shape: f32[16,48], index: 5, kind: output, shape index: {1}]
  %6 = xla_tuple %s4, %s5
  %s7 = sld [smem:[#allocation0]]
  $region34: #{cformer_forward.20} parent=0
    _
  %s9 = ssub.s32 1, %s7
  %s10 = scalar_select 0, %s9, %s7
  // Predicated region
  $region2: #{cformer_forward.20} parent=0 // pred_check
    _
  $region3: #{cformer_forward.20} parent=0 // pred_check_branch
    %12 = sbr.rel (0) target = $region5
  $region4: #{cformer_forward.20} parent=0 // pred_region
    _
  $region5: #{cformer_forward.20} parent=0 // pred_fallthru
    _
  // Predicated region
  $region6: #{cformer_forward.20} parent=0 // pred_check
    _
  $region7: #{cformer_forward.20} parent=0 // pred_check_branch
    %14 = sbr.rel (0) target = $region9
  $region8: #{cformer_forward.20} parent=0 // pred_region
    _
  $region9: #{cformer_forward.20} parent=0 // pred_fallthru
    _
  // Predicated region
  $region10: #{cformer_forward.20} parent=0 // pred_check
    _
  $region11: #{cformer_forward.20} parent=0 // pred_check_branch
    %16 = sbr.rel (0) target = $region13
  $region12: #{cformer_forward.20} parent=0 // pred_region
    _
  $region13: #{cformer_forward.20} parent=0 // pred_fallthru
    _
  // Predicated region
  $region14: #{cformer_forward.20} parent=0 // pred_check
    _
  $region15: #{cformer_forward.20} parent=0 // pred_check_branch
    %18 = sbr.rel (0) target = $region17
  $region16: #{cformer_forward.20} parent=0 // pred_region
    _
  $region17: #{cformer_forward.20} parent=0 // pred_fallthru
    _
  %v19 = vld [vmem:[%s0] sm:$0xff]
  %v20 = vld [vmem:[%s0 + $0x8] sm:$0xff]
  %v21 = vld [vmem:[%s1] sm:$0xff]
  %v22 = vld [vmem:[%s1 + $0x8] sm:$0xff]
  %v23 = vadd.f32 %v19, %v21
  %v24 = vadd.f32 %v20, %v22
  %vm25 = vcmask 392192
  %26 = vst.msk [vmem:[%s4] sm:$0xff] %vm25, %v23
  %27 = vst.msk [vmem:[%s4 + $0x8] sm:$0xff] %vm25, %v24
  %v28 = vsel %vm25, %v23, 0.0
  %29 = vadd.xlane.f32.xlu0 %v28
  %v30 = vpop.xlane.xlu0 %29
  %v31 = vsel %vm25, %v24, 0.0
  %32 = vadd.xlane.f32.xlu0 %v31
  %v33 = vpop.xlane.xlu0 %32
  %v34 = vrcp.pop 48.0
  %v35 = vmul.f32 %v30, %v34
  %v36 = vmul.f32 %v33, %v34
  %v37 = vsub.f32 %v23, %v35
  %v38 = vsub.f32 %v24, %v36
  %v39 = vmul.f32 %v37, %v37
  %v40 = vmul.f32 %v38, %v38
  %v41 = vsel %vm25, %v39, 0.0
  %42 = vadd.xlane.f32.xlu0 %v41
  %v43 = vpop.xlane.xlu0 %42
  %v44 = vsel %vm25, %v40, 0.0
  %45 = vadd.xlane.f32.xlu0 %v44
  %v46 = vpop.xlane.xlu0 %45
  %v47 = vmul.f32 %v43, %v34
  %v48 = vmul.f32 %v46, %v34
  %v49 = vadd.f32 %v47, 1e-05
  %v50 = vadd.f32 %v48, 1e-05
  %v51 = vrsqrt.pop %v49
  %v52 = vrsqrt.pop %v50
  %v53 = vmul.f32 %v37, %v51
  %v54 = vmul.f32 %v38, %v52
  %v55 = vld [vmem:[%s2] sm:$0x1]
  %v57 = vlaneseq
  %v58 = vshrl.u32 %v57, 7
  %v59 = vsub.s32 0, %v58
  %v60 = vrot.slane %v55, %v59
  %v62 = vmul.f32 %v53, %v60
  %v63 = vmul.f32 %v54, %v60
  %v64 = vld [vmem:[%s3] sm:$0x1]
  %v66 = vlaneseq
  %v67 = vshrl.u32 %v66, 7
  %v68 = vsub.s32 0, %v67
  %v69 = vrot.slane %v64, %v68
  %v71 = vadd.f32 %v62, %v69
  %v72 = vadd.f32 %v63, %v69
  %73 = vst.msk [vmem:[%s5] sm:$0xff] %vm25, %v71
  %74 = vst.msk [vmem:[%s5 + $0x8] sm:$0xff] %vm25, %v72
  // Predicated region
  $region18: #{cformer_forward.20} parent=0 // pred_check
    _
  $region19: #{cformer_forward.20} parent=0 // pred_check_branch
    %76 = sbr.rel (0) target = $region21
  $region20: #{cformer_forward.20} parent=0 // pred_region
    _
  $region21: #{cformer_forward.20} parent=0 // pred_fallthru
    _
  // Predicated region
  $region22: #{cformer_forward.20} parent=0 // pred_check
    _
  $region23: #{cformer_forward.20} parent=0 // pred_check_branch
    %78 = sbr.rel (0) target = $region25
  $region24: #{cformer_forward.20} parent=0 // pred_region
    _
  $region25: #{cformer_forward.20} parent=0 // pred_fallthru
    _
  // Predicated region
  $region26: #{cformer_forward.20} parent=0 // pred_check
    _
  $region27: #{cformer_forward.20} parent=0 // pred_check_branch
    %80 = sbr.rel (0) target = $region29
  $region28: #{cformer_forward.20} parent=0 // pred_region
    _
  $region29: #{cformer_forward.20} parent=0 // pred_fallthru
    _
  // Predicated region
  $region30: #{cformer_forward.20} parent=0 // pred_check
    _
  $region31: #{cformer_forward.20} parent=0 // pred_check_branch
    %82 = sbr.rel (0) target = $region33
  $region32: #{cformer_forward.20} parent=0 // pred_region
    _
  $region33: #{cformer_forward.20} parent=0 // pred_fallthru
    _

// kernel: cformer_forward.21
$region0: #{cformer_forward.21}
  #allocation0 [shape = 'u32[]', space=smem, size = 0x4, offset = 0x4, fixed_abs, tag = 'smem constant byte address 0x4 - core index']
  #allocation1 [shape = 'u32[144,128]{1,0:T(1,128)}', space=vmem, size = 0x12000, scoped, tag = 'internal scratch']
  #allocation2 [shape = 'f32[1]{0:T(128)S(6)}', space=smem, size = 0x200, scoped, tag = 'scoped memory for cformer_forward.21']
  %s0 = inlined_call_operand.vmem [shape: bf16[16,48], index: 0, kind: input, shape index: {}]
  %s1 = inlined_call_operand.vmem [shape: bf16[48,128], index: 1, kind: input, shape index: {}]
  %s2 = inlined_call_operand.vmem [shape: f32[1,128], index: 2, kind: input, shape index: {}]
  %s3 = inlined_call_operand.vmem [shape: bf16[48,128], index: 3, kind: input, shape index: {}]
  %s4 = inlined_call_operand.vmem [shape: f32[1,128], index: 4, kind: input, shape index: {}]
  %s5 = inlined_call_operand.<no memory space> [shape: f32[1], index: 5, kind: input, shape index: {}]
  %s6 = inlined_call_operand.vmem [shape: bf16[16,128], index: 6, kind: output, shape index: {}]
  %s7 = sld [smem:[#allocation0]]
  $region34: #{cformer_forward.21} parent=0
    _
  %s9 = ssub.s32 1, %s7
  %s10 = scalar_select 0, %s9, %s7
  %11 = sst [smem:[#allocation2]] %s5
  // Predicated region
  $region2: #{cformer_forward.21} parent=0 // pred_check
    _
  $region3: #{cformer_forward.21} parent=0 // pred_check_branch
    %13 = sbr.rel (0) target = $region5
  $region4: #{cformer_forward.21} parent=0 // pred_region
    _
  $region5: #{cformer_forward.21} parent=0 // pred_fallthru
    _
  // Predicated region
  $region6: #{cformer_forward.21} parent=0 // pred_check
    _
  $region7: #{cformer_forward.21} parent=0 // pred_check_branch
    %15 = sbr.rel (0) target = $region9
  $region8: #{cformer_forward.21} parent=0 // pred_region
    _
  $region9: #{cformer_forward.21} parent=0 // pred_fallthru
    _
  // Predicated region
  $region10: #{cformer_forward.21} parent=0 // pred_check
    _
  $region11: #{cformer_forward.21} parent=0 // pred_check_branch
    %17 = sbr.rel (0) target = $region13
  $region12: #{cformer_forward.21} parent=0 // pred_region
    _
  $region13: #{cformer_forward.21} parent=0 // pred_fallthru
    _
  // Predicated region
  $region14: #{cformer_forward.21} parent=0 // pred_check
    _
  $region15: #{cformer_forward.21} parent=0 // pred_check_branch
    %19 = sbr.rel (0) target = $region17
  $region16: #{cformer_forward.21} parent=0 // pred_region
    _
  $region17: #{cformer_forward.21} parent=0 // pred_fallthru
    _
  // Predicated region
  $region18: #{cformer_forward.21} parent=0 // pred_check
    _
  $region19: #{cformer_forward.21} parent=0 // pred_check_branch
    %21 = sbr.rel (0) target = $region21
  $region20: #{cformer_forward.21} parent=0 // pred_region
    _
  $region21: #{cformer_forward.21} parent=0 // pred_fallthru
    _
  // Predicated region
  $region22: #{cformer_forward.21} parent=0 // pred_check
    _
  $region23: #{cformer_forward.21} parent=0 // pred_check_branch
    %23 = sbr.rel (0) target = $region25
  $region24: #{cformer_forward.21} parent=0 // pred_region
    _
  $region25: #{cformer_forward.21} parent=0 // pred_fallthru
    _
  %v25 = vld [vmem:[%s0] sm:$0xf]
  %v26 = vld [vmem:[%s0 + $0x4] sm:$0xf]
  %v27 = vld [vmem:[%s1] sm:$0xf]
  %v28 = vld [vmem:[%s1 + $0x4] sm:$0xf]
  %v29 = vld [vmem:[%s1 + $0x8] sm:$0xf]
  %v30 = vld [vmem:[%s1 + $0xc] sm:$0xf]
  %v31 = vld [vmem:[%s1 + $0x10] sm:$0xf]
  %v32 = vld [vmem:[%s1 + $0x14] sm:$0xf]
  %v33 = vld [vmem:[%s2] sm:$0x1]
  %v35 = vlaneseq
  %v36 = vshrl.u32 %v35, 7
  %v37 = vsub.s32 0, %v36
  %v38 = vrot.slane %v33, %v37
  %v42 = vunpack.c.l.b16 %v25
  %v43 = vunpack.c.l.b16 %v26
  %v44 = vpack.c.b16 %v43, %v42
  %v51 = vunpack.c.l.b16 %v27
  %v52 = vunpack.c.l.b16 %v28
  %v53 = vunpack.c.l.b16 %v29
  %v54 = vunpack.c.l.b16 %v30
  %v55 = vunpack.c.l.b16 %v31
  %v56 = vunpack.c.l.b16 %v32
  %v57 = vpack.c.b16 %v52, %v51
  %v58 = vpack.c.b16 %v54, %v53
  %v59 = vpack.c.b16 %v56, %v55
  %vm63 = vcmask 392192
  %v65 = vsel %vm63, %v44, 0
  %67 = vmatprep.subr.bf16.mxu0 0
  %68 = vmatpush1.bf16.msra.mxu0 0
  %69 = vmatprep.subr.bf16.mxu0 0
  %70 = vmatpush1.bf16.msra.mxu0 0
  %71 = vmatprep.subr.bf16.mxu0 0
  %72 = vmatpush1.bf16.msra.mxu0 0
  %73 = vmatprep.subr.bf16.mxu0 0
  %74 = vmatpush1.bf16.msra.mxu0 0
  %75 = vmatprep.subr.bf16.mxu0 0
  %76 = vmatpush1.bf16.msra.mxu0 0
  %77 = vmatprep.subr.bf16.mxu0 0
  %78 = vmatpush1.bf16.msra.mxu0 %v59
  %79 = vmatprep.subr.bf16.mxu0 0
  %80 = vmatpush1.bf16.msra.mxu0 %v58
  %81 = vmatprep.subr.bf16.mxu0 0
  %82 = vmatpush1.bf16.msra.mxu0 %v57
  %83 = vmatprep.subr.bf16.mxu0 0
  %84 = vmatpush2.bf16.msra.mxu0 0
  %85 = vmatprep.subr.bf16.mxu0 0
  %86 = vmatpush2.bf16.msra.mxu0 0
  %87 = vmatprep.subr.bf16.mxu0 0
  %88 = vmatpush2.bf16.msra.mxu0 0
  %89 = vmatprep.subr.bf16.mxu0 0
  %90 = vmatpush2.bf16.msra.mxu0 0
  %91 = vmatprep.subr.bf16.mxu0 0
  %92 = vmatpush2.bf16.msra.mxu0 0
  %93 = vmatprep.subr.bf16.mxu0 0
  %94 = vmatpush2.bf16.msra.mxu0 0
  %95 = vmatprep.subr.bf16.mxu0 0
  %96 = vmatpush2.bf16.msra.mxu0 0
  %97 = vmatprep.subr.bf16.mxu0 0
  %98 = vmatpush2.bf16.msra.mxu0 0
  %99 = vmatprep.mubr.bf16.mxu0 0
  %100 = vmatmul.mubr.bf16.gmra.mxu0 %v65
  %v101 = vpop.f32.mrf.mxu0
  %v102 = vadd.f32 %v38, %v101
  %v103 = vpop.f32.mrf.mxu0
  %v104 = vpop.f32.mrf.mxu0
  %v105 = vadd.f32 %v38, %v104
  %v106 = vpop.f32.mrf.mxu0
  %107 = vdwg.mxu0
  %v108 = vld [vmem:[%s3] sm:$0xf]
  %v109 = vld [vmem:[%s3 + $0x4] sm:$0xf]
  %v110 = vld [vmem:[%s3 + $0x8] sm:$0xf]
  %v111 = vld [vmem:[%s3 + $0xc] sm:$0xf]
  %v112 = vld [vmem:[%s3 + $0x10] sm:$0xf]
  %v113 = vld [vmem:[%s3 + $0x14] sm:$0xf]
  %v114 = vld [vmem:[%s4] sm:$0x1]
  %v116 = vlaneseq
  %v117 = vshrl.u32 %v116, 7
  %v118 = vsub.s32 0, %v117
  %v119 = vrot.slane %v114, %v118
  %v127 = vunpack.c.l.b16 %v108
  %v128 = vunpack.c.l.b16 %v109
  %v129 = vunpack.c.l.b16 %v110
  %v130 = vunpack.c.l.b16 %v111
  %v131 = vunpack.c.l.b16 %v112
  %v132 = vunpack.c.l.b16 %v113
  %v133 = vpack.c.b16 %v128, %v127
  %v134 = vpack.c.b16 %v130, %v129
  %v135 = vpack.c.b16 %v132, %v131
  %139 = vmatprep.subr.bf16.mxu0 0
  %140 = vmatpush1.bf16.msra.mxu0 0
  %141 = vmatprep.subr.bf16.mxu0 0
  %142 = vmatpush1.bf16.msra.mxu0 0
  %143 = vmatprep.subr.bf16.mxu0 0
  %144 = vmatpush1.bf16.msra.mxu0 0
  %145 = vmatprep.subr.bf16.mxu0 0
  %146 = vmatpush1.bf16.msra.mxu0 0
  %147 = vmatprep.subr.bf16.mxu0 0
  %148 = vmatpush1.bf16.msra.mxu0 0
  %149 = vmatprep.subr.bf16.mxu0 0
  %150 = vmatpush1.bf16.msra.mxu0 %v135
  %151 = vmatprep.subr.bf16.mxu0 0
  %152 = vmatpush1.bf16.msra.mxu0 %v134
  %153 = vmatprep.subr.bf16.mxu0 0
  %154 = vmatpush1.bf16.msra.mxu0 %v133
  %155 = vmatprep.subr.bf16.mxu0 0
  %156 = vmatpush2.bf16.msra.mxu0 0
  %157 = vmatprep.subr.bf16.mxu0 0
  %158 = vmatpush2.bf16.msra.mxu0 0
  %159 = vmatprep.subr.bf16.mxu0 0
  %160 = vmatpush2.bf16.msra.mxu0 0
  %161 = vmatprep.subr.bf16.mxu0 0
  %162 = vmatpush2.bf16.msra.mxu0 0
  %163 = vmatprep.subr.bf16.mxu0 0
  %164 = vmatpush2.bf16.msra.mxu0 0
  %165 = vmatprep.subr.bf16.mxu0 0
  %166 = vmatpush2.bf16.msra.mxu0 0
  %167 = vmatprep.subr.bf16.mxu0 0
  %168 = vmatpush2.bf16.msra.mxu0 0
  %169 = vmatprep.subr.bf16.mxu0 0
  %170 = vmatpush2.bf16.msra.mxu0 0
  %171 = vmatprep.mubr.bf16.mxu0 0
  %172 = vmatmul.mubr.bf16.gmra.mxu0 %v65
  %v173 = vpop.f32.mrf.mxu0
  %v174 = vadd.f32 %v119, %v173
  %v175 = vpop.f32.mrf.mxu0
  %v176 = vpop.f32.mrf.mxu0
  %v177 = vadd.f32 %v119, %v176
  %v178 = vpop.f32.mrf.mxu0
  %179 = vdwg.mxu0
  %s180 = sld [smem:[#allocation2]]
  %v181 = vstv %s180
  %v182 = vmul.f32 %v181, %v102
  %v183 = vmul.f32 %v181, %v105
  %v184 = vxor.u32 %v182, 2147483648
  %v185 = vxor.u32 %v183, 2147483648
  %v186 = vmul.f32 %v184, 1.442695
  %v187 = vpow.pop %v186
  %v188 = vmul.f32 %v185, 1.442695
  %v189 = vpow.pop %v188
  %v190 = vadd.f32 %v187, 1.0
  %v191 = vadd.f32 %v189, 1.0
  %v192 = vrcp.pop %v190
  %v193 = vmul.f32 1.0, %v192
  %v194 = vrcp.pop %v191
  %v195 = vmul.f32 1.0, %v194
  %v196 = vmul.f32 %v102, %v193
  %v197 = vmul.f32 %v105, %v195
  %v198 = vmul.f32 %v196, %v174
  %v199 = vmul.f32 %v197, %v177
  %v200 = vpack.c.bf16 %v199, %v198
  %v202 = vunpack.c.l.b16 %v200
  %v203 = vunpack.c.h.b16 %v200
  %v204 = vpack.c.b16 %v202, %v202
  %v205 = vpack.c.b16 %v203, %v203
  %208 = vst [vmem:[%s6] sm:$0xf] %v204
  %209 = vst [vmem:[%s6 + $0x4] sm:$0xf] %v205
  // Predicated region
  $region26: #{cformer_forward.21} parent=0 // pred_check
    _
  $region27: #{cformer_forward.21} parent=0 // pred_check_branch
    %211 = sbr.rel (0) target = $region29
  $region28: #{cformer_forward.21} parent=0 // pred_region
    _
  $region29: #{cformer_forward.21} parent=0 // pred_fallthru
    _
  // Predicated region
  $region30: #{cformer_forward.21} parent=0 // pred_check
    _
  $region31: #{cformer_forward.21} parent=0 // pred_check_branch
    %213 = sbr.rel (0) target = $region33
  $region32: #{cformer_forward.21} parent=0 // pred_region
    _
  $region33: #{cformer_forward.21} parent=0 // pred_fallthru
    _

// kernel: cformer_forward.22
$region0: #{cformer_forward.22}
  #allocation0 [shape = 'u32[]', space=smem, size = 0x4, offset = 0x4, fixed_abs, tag = 'smem constant byte address 0x4 - core index']
  #allocation1 [shape = 'u32[144,128]{1,0:T(1,128)}', space=vmem, size = 0x12000, scoped, tag = 'internal scratch']
  %s0 = inlined_call_operand.vmem [shape: bf16[16,128], index: 0, kind: input, shape index: {}]
  %s1 = inlined_call_operand.vmem [shape: bf16[128,48], index: 1, kind: input, shape index: {}]
  %s2 = inlined_call_operand.vmem [shape: f32[1,48], index: 2, kind: input, shape index: {}]
  %s3 = inlined_call_operand.vmem [shape: f32[16,48], index: 3, kind: input, shape index: {}]
  %s4 = inlined_call_operand.vmem [shape: f32[16,48], index: 4, kind: output, shape index: {}]
  %s5 = sld [smem:[#allocation0]]
  $region26: #{cformer_forward.22} parent=0
    _
  %s7 = ssub.s32 1, %s5
  %s8 = scalar_select 0, %s7, %s5
  // Predicated region
  $region2: #{cformer_forward.22} parent=0 // pred_check
    _
  $region3: #{cformer_forward.22} parent=0 // pred_check_branch
    %10 = sbr.rel (0) target = $region5
  $region4: #{cformer_forward.22} parent=0 // pred_region
    _
  $region5: #{cformer_forward.22} parent=0 // pred_fallthru
    _
  // Predicated region
  $region6: #{cformer_forward.22} parent=0 // pred_check
    _
  $region7: #{cformer_forward.22} parent=0 // pred_check_branch
    %12 = sbr.rel (0) target = $region9
  $region8: #{cformer_forward.22} parent=0 // pred_region
    _
  $region9: #{cformer_forward.22} parent=0 // pred_fallthru
    _
  // Predicated region
  $region10: #{cformer_forward.22} parent=0 // pred_check
    _
  $region11: #{cformer_forward.22} parent=0 // pred_check_branch
    %14 = sbr.rel (0) target = $region13
  $region12: #{cformer_forward.22} parent=0 // pred_region
    _
  $region13: #{cformer_forward.22} parent=0 // pred_fallthru
    _
  // Predicated region
  $region14: #{cformer_forward.22} parent=0 // pred_check
    _
  $region15: #{cformer_forward.22} parent=0 // pred_check_branch
    %16 = sbr.rel (0) target = $region17
  $region16: #{cformer_forward.22} parent=0 // pred_region
    _
  $region17: #{cformer_forward.22} parent=0 // pred_fallthru
    _
  %v18 = vld [vmem:[%s0] sm:$0xf]
  %v19 = vld [vmem:[%s0 + $0x4] sm:$0xf]
  %v20 = vld [vmem:[%s1] sm:$0xf]
  %v21 = vld [vmem:[%s1 + $0x4] sm:$0xf]
  %v22 = vld [vmem:[%s1 + $0x8] sm:$0xf]
  %v23 = vld [vmem:[%s1 + $0xc] sm:$0xf]
  %v24 = vld [vmem:[%s1 + $0x10] sm:$0xf]
  %v25 = vld [vmem:[%s1 + $0x14] sm:$0xf]
  %v26 = vld [vmem:[%s1 + $0x18] sm:$0xf]
  %v27 = vld [vmem:[%s1 + $0x1c] sm:$0xf]
  %v28 = vld [vmem:[%s1 + $0x20] sm:$0xf]
  %v29 = vld [vmem:[%s1 + $0x24] sm:$0xf]
  %v30 = vld [vmem:[%s1 + $0x28] sm:$0xf]
  %v31 = vld [vmem:[%s1 + $0x2c] sm:$0xf]
  %v32 = vld [vmem:[%s1 + $0x30] sm:$0xf]
  %v33 = vld [vmem:[%s1 + $0x34] sm:$0xf]
  %v34 = vld [vmem:[%s1 + $0x38] sm:$0xf]
  %v35 = vld [vmem:[%s1 + $0x3c] sm:$0xf]
  %v36 = vld [vmem:[%s2] sm:$0x1]
  %v38 = vlaneseq
  %v39 = vshrl.u32 %v38, 7
  %v40 = vsub.s32 0, %v39
  %v41 = vrot.slane %v36, %v40
  %v45 = vunpack.c.l.b16 %v18
  %v46 = vunpack.c.l.b16 %v19
  %v47 = vpack.c.b16 %v46, %v45
  %v65 = vunpack.c.l.b16 %v20
  %v66 = vunpack.c.l.b16 %v21
  %v67 = vunpack.c.l.b16 %v22
  %v68 = vunpack.c.l.b16 %v23
  %v69 = vunpack.c.l.b16 %v24
  %v70 = vunpack.c.l.b16 %v25
  %v71 = vunpack.c.l.b16 %v26
  %v72 = vunpack.c.l.b16 %v27
  %v73 = vunpack.c.l.b16 %v28
  %v74 = vunpack.c.l.b16 %v29
  %v75 = vunpack.c.l.b16 %v30
  %v76 = vunpack.c.l.b16 %v31
  %v77 = vunpack.c.l.b16 %v32
  %v78 = vunpack.c.l.b16 %v33
  %v79 = vunpack.c.l.b16 %v34
  %v80 = vunpack.c.l.b16 %v35
  %v81 = vpack.c.b16 %v66, %v65
  %v82 = vpack.c.b16 %v68, %v67
  %v83 = vpack.c.b16 %v70, %v69
  %v84 = vpack.c.b16 %v72, %v71
  %v85 = vpack.c.b16 %v74, %v73
  %v86 = vpack.c.b16 %v76, %v75
  %v87 = vpack.c.b16 %v78, %v77
  %v88 = vpack.c.b16 %v80, %v79
  %97 = vmatprep.subr.bf16.mxu0 0
  %98 = vmatpush1.bf16.msra.mxu0 %v88
  %99 = vmatprep.subr.bf16.mxu0 0
  %100 = vmatpush1.bf16.msra.mxu0 %v87
  %101 = vmatprep.subr.bf16.mxu0 0
  %102 = vmatpush1.bf16.msra.mxu0 %v86
  %103 = vmatprep.subr.bf16.mxu0 0
  %104 = vmatpush1.bf16.msra.mxu0 %v85
  %105 = vmatprep.subr.bf16.mxu0 0
  %106 = vmatpush1.bf16.msra.mxu0 %v84
  %107 = vmatprep.subr.bf16.mxu0 0
  %108 = vmatpush1.bf16.msra.mxu0 %v83
  %109 = vmatprep.subr.bf16.mxu0 0
  %110 = vmatpush1.bf16.msra.mxu0 %v82
  %111 = vmatprep.subr.bf16.mxu0 0
  %112 = vmatpush1.bf16.msra.mxu0 %v81
  %113 = vmatprep.subr.bf16.mxu0 0
  %114 = vmatpush2.bf16.msra.mxu0 0
  %115 = vmatprep.subr.bf16.mxu0 0
  %116 = vmatpush2.bf16.msra.mxu0 0
  %117 = vmatprep.subr.bf16.mxu0 0
  %118 = vmatpush2.bf16.msra.mxu0 0
  %119 = vmatprep.subr.bf16.mxu0 0
  %120 = vmatpush2.bf16.msra.mxu0 0
  %121 = vmatprep.subr.bf16.mxu0 0
  %122 = vmatpush2.bf16.msra.mxu0 0
  %123 = vmatprep.subr.bf16.mxu0 0
  %124 = vmatpush2.bf16.msra.mxu0 0
  %125 = vmatprep.subr.bf16.mxu0 0
  %126 = vmatpush2.bf16.msra.mxu0 0
  %127 = vmatprep.subr.bf16.mxu0 0
  %128 = vmatpush2.bf16.msra.mxu0 0
  %129 = vmatprep.mubr.bf16.mxu0 0
  %130 = vmatmul.mubr.bf16.gmra.mxu0 %v47
  %v131 = vpop.f32.mrf.mxu0
  %v132 = vadd.f32 %v41, %v131
  %v133 = vpop.f32.mrf.mxu0
  %v134 = vpop.f32.mrf.mxu0
  %v135 = vadd.f32 %v41, %v134
  %v136 = vpop.f32.mrf.mxu0
  %137 = vdwg.mxu0
  %v138 = vld [vmem:[%s3] sm:$0xff]
  %v139 = vld [vmem:[%s3 + $0x8] sm:$0xff]
  %v140 = vadd.f32 %v132, %v138
  %v141 = vadd.f32 %v135, %v139
  %vm142 = vcmask 392192
  %143 = vst.msk [vmem:[%s4] sm:$0xff] %vm142, %v140
  %144 = vst.msk [vmem:[%s4 + $0x8] sm:$0xff] %vm142, %v141
  // Predicated region
  $region18: #{cformer_forward.22} parent=0 // pred_check
    _
  $region19: #{cformer_forward.22} parent=0 // pred_check_branch
    %146 = sbr.rel (0) target = $region21
  $region20: #{cformer_forward.22} parent=0 // pred_region
    _
  $region21: #{cformer_forward.22} parent=0 // pred_fallthru
    _
  // Predicated region
  $region22: #{cformer_forward.22} parent=0 // pred_check
    _
  $region23: #{cformer_forward.22} parent=0 // pred_check_branch
    %148 = sbr.rel (0) target = $region25
  $region24: #{cformer_forward.22} parent=0 // pred_region
    _
  $region25: #{cformer_forward.22} parent=0 // pred_fallthru
    _

// kernel: cformer_forward.30
$region0: #{cformer_forward.30}
  #allocation0 [shape = 'u32[]', space=smem, size = 0x4, offset = 0x4, fixed_abs, tag = 'smem constant byte address 0x4 - core index']
  #allocation1 [shape = 'u32[144,128]{1,0:T(1,128)}', space=vmem, size = 0x12000, scoped, tag = 'internal scratch']
  %s0 = inlined_call_operand.vmem [shape: f32[16,48], index: 0, kind: input, shape index: {}]
  %s1 = inlined_call_operand.vmem [shape: f32[1,48], index: 1, kind: input, shape index: {}]
  %s2 = inlined_call_operand.vmem [shape: f32[1,48], index: 2, kind: input, shape index: {}]
  %s3 = inlined_call_operand.hbm [shape: f32[16,48], index: 3, kind: output, shape index: {}]
  %s4 = sld [smem:[#allocation0]]
  $region22: #{cformer_forward.30} parent=0
    _
  %s6 = ssub.s32 1, %s4
  %s7 = scalar_select 0, %s6, %s4
  $region1: #{cformer_forward.30} parent=0
    #allocation2 [shape = 'u8[8192]{0}', space=vmem, size = 0x2000, scoped, tag = 'output window, operand 0, single buffered']
    #allocation3 [shape = 's32[1]{0}', space=sflag, size = 0x4, scoped, tag = 'scoped memory for cformer_forward.30']
    %8 = vsyncpa [#allocation3], 0
    // Predicated region
    $region2: #{cformer_forward.30} parent=1 // pred_check
      _
    $region3: #{cformer_forward.30} parent=1 // pred_check_branch
      %10 = sbr.rel (0) target = $region5
    $region4: #{cformer_forward.30} parent=1 // pred_region
      _
    $region5: #{cformer_forward.30} parent=1 // pred_fallthru
      _
    // Predicated region
    $region6: #{cformer_forward.30} parent=1 // pred_check
      _
    $region7: #{cformer_forward.30} parent=1 // pred_check_branch
      %12 = sbr.rel (0) target = $region9
    $region8: #{cformer_forward.30} parent=1 // pred_region
      _
    $region9: #{cformer_forward.30} parent=1 // pred_fallthru
      _
    // Predicated region
    $region10: #{cformer_forward.30} parent=1 // pred_check
      _
    $region11: #{cformer_forward.30} parent=1 // pred_check_branch
      %14 = sbr.rel (0) target = $region13
    $region12: #{cformer_forward.30} parent=1 // pred_region
      _
    $region13: #{cformer_forward.30} parent=1 // pred_fallthru
      _
    %v15 = vld [vmem:[%s0] sm:$0xff]
    %v16 = vld [vmem:[%s0 + $0x8] sm:$0xff]
    %vm17 = vcmask 392192
    %v18 = vsel %vm17, %v15, 0.0
    %19 = vadd.xlane.f32.xlu0 %v18
    %v20 = vpop.xlane.xlu0 %19
    %v21 = vsel %vm17, %v16, 0.0
    %22 = vadd.xlane.f32.xlu0 %v21
    %v23 = vpop.xlane.xlu0 %22
    %v24 = vrcp.pop 48.0
    %v25 = vmul.f32 %v20, %v24
    %v26 = vmul.f32 %v23, %v24
    %v27 = vsub.f32 %v15, %v25
    %v28 = vsub.f32 %v16, %v26
    %v29 = vmul.f32 %v27, %v27
    %v30 = vmul.f32 %v28, %v28
    %v31 = vsel %vm17, %v29, 0.0
    %32 = vadd.xlane.f32.xlu0 %v31
    %v33 = vpop.xlane.xlu0 %32
    %v34 = vsel %vm17, %v30, 0.0
    %35 = vadd.xlane.f32.xlu0 %v34
    %v36 = vpop.xlane.xlu0 %35
    %v37 = vmul.f32 %v33, %v24
    %v38 = vmul.f32 %v36, %v24
    %v39 = vadd.f32 %v37, 1e-05
    %v40 = vadd.f32 %v38, 1e-05
    %v41 = vrsqrt.pop %v39
    %v42 = vrsqrt.pop %v40
    %v43 = vmul.f32 %v27, %v41
    %v44 = vmul.f32 %v28, %v42
    %v45 = vld [vmem:[%s1] sm:$0x1]
    %v47 = vlaneseq
    %v48 = vshrl.u32 %v47, 7
    %v49 = vsub.s32 0, %v48
    %v50 = vrot.slane %v45, %v49
    %v52 = vmul.f32 %v43, %v50
    %v53 = vmul.f32 %v44, %v50
    %v54 = vld [vmem:[%s2] sm:$0x1]
    %v56 = vlaneseq
    %v57 = vshrl.u32 %v56, 7
    %v58 = vsub.s32 0, %v57
    %v59 = vrot.slane %v54, %v58
    %v61 = vadd.f32 %v52, %v59
    %v62 = vadd.f32 %v53, %v59
    %63 = vst.msk [vmem:[#allocation2] sm:$0xff] %vm17, %v61
    %64 = vst.msk [vmem:[#allocation2 + $0x8] sm:$0xff] %vm17, %v62
    // Predicated region
    $region14: #{cformer_forward.30} parent=1 // pred_check
      _
    $region15: #{cformer_forward.30} parent=1 // pred_check_branch
      %66 = sbr.rel (0) target = $region17
    $region16: #{cformer_forward.30} parent=1 // pred_region
      %s68 = ssub.s32 256, 256
      %69 = vsyncadd [#allocation3], %s68
      %s70 = sshll.u32 [#allocation2], 4
      %s71 = int_to_ptr.vmem [resolvable:$true] %s70
      %76 = dma.vmem_to_hbm [thread:$0]  %s71, 256, %s3, [#allocation3], 128, 128, 8
    $region17: #{cformer_forward.30} parent=1 // pred_fallthru
      _
    // Predicated region
    $region18: #{cformer_forward.30} parent=1 // pred_check
      _
    $region19: #{cformer_forward.30} parent=1 // pred_check_branch
      %78 = sbr.rel (0) target = $region21
    $region20: #{cformer_forward.30} parent=1 // pred_region
      %79 = dma.done [#allocation3], 256
    $region21: #{cformer_forward.30} parent=1 // pred_fallthru
      _
    %80 = vsyncpa [#allocation3], 1

// kernel: cformer_forward.31
$region0: #{cformer_forward.31}
  #allocation0 [shape = 'u32[]', space=smem, size = 0x4, offset = 0x4, fixed_abs, tag = 'smem constant byte address 0x4 - core index']
  #allocation1 [shape = 'u32[144,128]{1,0:T(1,128)}', space=vmem, size = 0x12000, scoped, tag = 'internal scratch']
  %s0 = inlined_call_operand.vmem [shape: f32[128,16], index: 0, kind: input, shape index: {}]
  %s1 = inlined_call_operand.vmem [shape: f32[1,16], index: 1, kind: input, shape index: {}]
  %s2 = inlined_call_operand.vmem [shape: f32[1,16], index: 2, kind: input, shape index: {}]
  %s3 = inlined_call_operand.hbm [shape: f32[128,16], index: 3, kind: output, shape index: {}]
  %s4 = sld [smem:[#allocation0]]
  $region22: #{cformer_forward.31} parent=0
    _
  %s6 = ssub.s32 1, %s4
  %s7 = scalar_select 0, %s6, %s4
  $region1: #{cformer_forward.31} parent=0
    #allocation2 [shape = 'u8[65536]{0}', space=vmem, size = 0x10000, scoped, tag = 'output window, operand 0, single buffered']
    #allocation3 [shape = 's32[1]{0}', space=sflag, size = 0x4, scoped, tag = 'scoped memory for cformer_forward.31']
    %8 = vsyncpa [#allocation3], 0
    // Predicated region
    $region2: #{cformer_forward.31} parent=1 // pred_check
      _
    $region3: #{cformer_forward.31} parent=1 // pred_check_branch
      %10 = sbr.rel (0) target = $region5
    $region4: #{cformer_forward.31} parent=1 // pred_region
      _
    $region5: #{cformer_forward.31} parent=1 // pred_fallthru
      _
    // Predicated region
    $region6: #{cformer_forward.31} parent=1 // pred_check
      _
    $region7: #{cformer_forward.31} parent=1 // pred_check_branch
      %12 = sbr.rel (0) target = $region9
    $region8: #{cformer_forward.31} parent=1 // pred_region
      _
    $region9: #{cformer_forward.31} parent=1 // pred_fallthru
      _
    // Predicated region
    $region10: #{cformer_forward.31} parent=1 // pred_check
      _
    $region11: #{cformer_forward.31} parent=1 // pred_check_branch
      %14 = sbr.rel (0) target = $region13
    $region12: #{cformer_forward.31} parent=1 // pred_region
      _
    $region13: #{cformer_forward.31} parent=1 // pred_fallthru
      _
    %v15 = vld [vmem:[%s0] sm:$0xff]
    %v16 = vld [vmem:[%s0 + $0x8] sm:$0xff]
    %v17 = vld [vmem:[%s0 + $0x10] sm:$0xff]
    %v18 = vld [vmem:[%s0 + $0x18] sm:$0xff]
    %v19 = vld [vmem:[%s0 + $0x20] sm:$0xff]
    %v20 = vld [vmem:[%s0 + $0x28] sm:$0xff]
    %v21 = vld [vmem:[%s0 + $0x30] sm:$0xff]
    %v22 = vld [vmem:[%s0 + $0x38] sm:$0xff]
    %v23 = vld [vmem:[%s0 + $0x40] sm:$0xff]
    %v24 = vld [vmem:[%s0 + $0x48] sm:$0xff]
    %v25 = vld [vmem:[%s0 + $0x50] sm:$0xff]
    %v26 = vld [vmem:[%s0 + $0x58] sm:$0xff]
    %v27 = vld [vmem:[%s0 + $0x60] sm:$0xff]
    %v28 = vld [vmem:[%s0 + $0x68] sm:$0xff]
    %v29 = vld [vmem:[%s0 + $0x70] sm:$0xff]
    %v30 = vld [vmem:[%s0 + $0x78] sm:$0xff]
    %vm31 = vcmask 130048
    %v32 = vsel %vm31, %v15, 0.0
    %33 = vadd.xlane.f32.xlu0 %v32
    %v34 = vpop.xlane.xlu0 %33
    %v35 = vsel %vm31, %v16, 0.0
    %36 = vadd.xlane.f32.xlu0 %v35
    %v37 = vpop.xlane.xlu0 %36
    %v38 = vsel %vm31, %v17, 0.0
    %39 = vadd.xlane.f32.xlu0 %v38
    %v40 = vpop.xlane.xlu0 %39
    %v41 = vsel %vm31, %v18, 0.0
    %42 = vadd.xlane.f32.xlu0 %v41
    %v43 = vpop.xlane.xlu0 %42
    %v44 = vsel %vm31, %v19, 0.0
    %45 = vadd.xlane.f32.xlu0 %v44
    %v46 = vpop.xlane.xlu0 %45
    %v47 = vsel %vm31, %v20, 0.0
    %48 = vadd.xlane.f32.xlu0 %v47
    %v49 = vpop.xlane.xlu0 %48
    %v50 = vsel %vm31, %v21, 0.0
    %51 = vadd.xlane.f32.xlu0 %v50
    %v52 = vpop.xlane.xlu0 %51
    %v53 = vsel %vm31, %v22, 0.0
    %54 = vadd.xlane.f32.xlu0 %v53
    %v55 = vpop.xlane.xlu0 %54
    %v56 = vsel %vm31, %v23, 0.0
    %57 = vadd.xlane.f32.xlu0 %v56
    %v58 = vpop.xlane.xlu0 %57
    %v59 = vsel %vm31, %v24, 0.0
    %60 = vadd.xlane.f32.xlu0 %v59
    %v61 = vpop.xlane.xlu0 %60
    %v62 = vsel %vm31, %v25, 0.0
    %63 = vadd.xlane.f32.xlu0 %v62
    %v64 = vpop.xlane.xlu0 %63
    %v65 = vsel %vm31, %v26, 0.0
    %66 = vadd.xlane.f32.xlu0 %v65
    %v67 = vpop.xlane.xlu0 %66
    %v68 = vsel %vm31, %v27, 0.0
    %69 = vadd.xlane.f32.xlu0 %v68
    %v70 = vpop.xlane.xlu0 %69
    %v71 = vsel %vm31, %v28, 0.0
    %72 = vadd.xlane.f32.xlu0 %v71
    %v73 = vpop.xlane.xlu0 %72
    %v74 = vsel %vm31, %v29, 0.0
    %75 = vadd.xlane.f32.xlu0 %v74
    %v76 = vpop.xlane.xlu0 %75
    %v77 = vsel %vm31, %v30, 0.0
    %78 = vadd.xlane.f32.xlu0 %v77
    %v79 = vpop.xlane.xlu0 %78
    %v80 = vrcp.pop 16.0
    %v81 = vmul.f32 %v34, %v80
    %v82 = vmul.f32 %v37, %v80
    %v83 = vmul.f32 %v40, %v80
    %v84 = vmul.f32 %v43, %v80
    %v85 = vmul.f32 %v46, %v80
    %v86 = vmul.f32 %v49, %v80
    %v87 = vmul.f32 %v52, %v80
    %v88 = vmul.f32 %v55, %v80
    %v89 = vmul.f32 %v58, %v80
    %v90 = vmul.f32 %v61, %v80
    %v91 = vmul.f32 %v64, %v80
    %v92 = vmul.f32 %v67, %v80
    %v93 = vmul.f32 %v70, %v80
    %v94 = vmul.f32 %v73, %v80
    %v95 = vmul.f32 %v76, %v80
    %v96 = vmul.f32 %v79, %v80
    %v97 = vsub.f32 %v15, %v81
    %v98 = vsub.f32 %v16, %v82
    %v99 = vsub.f32 %v17, %v83
    %v100 = vsub.f32 %v18, %v84
    %v101 = vsub.f32 %v19, %v85
    %v102 = vsub.f32 %v20, %v86
    %v103 = vsub.f32 %v21, %v87
    %v104 = vsub.f32 %v22, %v88
    %v105 = vsub.f32 %v23, %v89
    %v106 = vsub.f32 %v24, %v90
    %v107 = vsub.f32 %v25, %v91
    %v108 = vsub.f32 %v26, %v92
    %v109 = vsub.f32 %v27, %v93
    %v110 = vsub.f32 %v28, %v94
    %v111 = vsub.f32 %v29, %v95
    %v112 = vsub.f32 %v30, %v96
    %v113 = vmul.f32 %v97, %v97
    %v114 = vmul.f32 %v98, %v98
    %v115 = vmul.f32 %v99, %v99
    %v116 = vmul.f32 %v100, %v100
    %v117 = vmul.f32 %v101, %v101
    %v118 = vmul.f32 %v102, %v102
    %v119 = vmul.f32 %v103, %v103
    %v120 = vmul.f32 %v104, %v104
    %v121 = vmul.f32 %v105, %v105
    %v122 = vmul.f32 %v106, %v106
    %v123 = vmul.f32 %v107, %v107
    %v124 = vmul.f32 %v108, %v108
    %v125 = vmul.f32 %v109, %v109
    %v126 = vmul.f32 %v110, %v110
    %v127 = vmul.f32 %v111, %v111
    %v128 = vmul.f32 %v112, %v112
    %v129 = vsel %vm31, %v113, 0.0
    %130 = vadd.xlane.f32.xlu0 %v129
    %v131 = vpop.xlane.xlu0 %130
    %v132 = vsel %vm31, %v114, 0.0
    %133 = vadd.xlane.f32.xlu0 %v132
    %v134 = vpop.xlane.xlu0 %133
    %v135 = vsel %vm31, %v115, 0.0
    %136 = vadd.xlane.f32.xlu0 %v135
    %v137 = vpop.xlane.xlu0 %136
    %v138 = vsel %vm31, %v116, 0.0
    %139 = vadd.xlane.f32.xlu0 %v138
    %v140 = vpop.xlane.xlu0 %139
    %v141 = vsel %vm31, %v117, 0.0
    %142 = vadd.xlane.f32.xlu0 %v141
    %v143 = vpop.xlane.xlu0 %142
    %v144 = vsel %vm31, %v118, 0.0
    %145 = vadd.xlane.f32.xlu0 %v144
    %v146 = vpop.xlane.xlu0 %145
    %v147 = vsel %vm31, %v119, 0.0
    %148 = vadd.xlane.f32.xlu0 %v147
    %v149 = vpop.xlane.xlu0 %148
    %v150 = vsel %vm31, %v120, 0.0
    %151 = vadd.xlane.f32.xlu0 %v150
    %v152 = vpop.xlane.xlu0 %151
    %v153 = vsel %vm31, %v121, 0.0
    %154 = vadd.xlane.f32.xlu0 %v153
    %v155 = vpop.xlane.xlu0 %154
    %v156 = vsel %vm31, %v122, 0.0
    %157 = vadd.xlane.f32.xlu0 %v156
    %v158 = vpop.xlane.xlu0 %157
    %v159 = vsel %vm31, %v123, 0.0
    %160 = vadd.xlane.f32.xlu0 %v159
    %v161 = vpop.xlane.xlu0 %160
    %v162 = vsel %vm31, %v124, 0.0
    %163 = vadd.xlane.f32.xlu0 %v162
    %v164 = vpop.xlane.xlu0 %163
    %v165 = vsel %vm31, %v125, 0.0
    %166 = vadd.xlane.f32.xlu0 %v165
    %v167 = vpop.xlane.xlu0 %166
    %v168 = vsel %vm31, %v126, 0.0
    %169 = vadd.xlane.f32.xlu0 %v168
    %v170 = vpop.xlane.xlu0 %169
    %v171 = vsel %vm31, %v127, 0.0
    %172 = vadd.xlane.f32.xlu0 %v171
    %v173 = vpop.xlane.xlu0 %172
    %v174 = vsel %vm31, %v128, 0.0
    %175 = vadd.xlane.f32.xlu0 %v174
    %v176 = vpop.xlane.xlu0 %175
    %v177 = vmul.f32 %v131, %v80
    %v178 = vmul.f32 %v134, %v80
    %v179 = vmul.f32 %v137, %v80
    %v180 = vmul.f32 %v140, %v80
    %v181 = vmul.f32 %v143, %v80
    %v182 = vmul.f32 %v146, %v80
    %v183 = vmul.f32 %v149, %v80
    %v184 = vmul.f32 %v152, %v80
    %v185 = vmul.f32 %v155, %v80
    %v186 = vmul.f32 %v158, %v80
    %v187 = vmul.f32 %v161, %v80
    %v188 = vmul.f32 %v164, %v80
    %v189 = vmul.f32 %v167, %v80
    %v190 = vmul.f32 %v170, %v80
    %v191 = vmul.f32 %v173, %v80
    %v192 = vmul.f32 %v176, %v80
    %v193 = vadd.f32 %v177, 1e-05
    %v194 = vadd.f32 %v178, 1e-05
    %v195 = vadd.f32 %v179, 1e-05
    %v196 = vadd.f32 %v180, 1e-05
    %v197 = vadd.f32 %v181, 1e-05
    %v198 = vadd.f32 %v182, 1e-05
    %v199 = vadd.f32 %v183, 1e-05
    %v200 = vadd.f32 %v184, 1e-05
    %v201 = vadd.f32 %v185, 1e-05
    %v202 = vadd.f32 %v186, 1e-05
    %v203 = vadd.f32 %v187, 1e-05
    %v204 = vadd.f32 %v188, 1e-05
    %v205 = vadd.f32 %v189, 1e-05
    %v206 = vadd.f32 %v190, 1e-05
    %v207 = vadd.f32 %v191, 1e-05
    %v208 = vadd.f32 %v192, 1e-05
    %v209 = vrsqrt.pop %v193
    %v210 = vrsqrt.pop %v194
    %v211 = vrsqrt.pop %v195
    %v212 = vrsqrt.pop %v196
    %v213 = vrsqrt.pop %v197
    %v214 = vrsqrt.pop %v198
    %v215 = vrsqrt.pop %v199
    %v216 = vrsqrt.pop %v200
    %v217 = vrsqrt.pop %v201
    %v218 = vrsqrt.pop %v202
    %v219 = vrsqrt.pop %v203
    %v220 = vrsqrt.pop %v204
    %v221 = vrsqrt.pop %v205
    %v222 = vrsqrt.pop %v206
    %v223 = vrsqrt.pop %v207
    %v224 = vrsqrt.pop %v208
    %v225 = vmul.f32 %v97, %v209
    %v226 = vmul.f32 %v98, %v210
    %v227 = vmul.f32 %v99, %v211
    %v228 = vmul.f32 %v100, %v212
    %v229 = vmul.f32 %v101, %v213
    %v230 = vmul.f32 %v102, %v214
    %v231 = vmul.f32 %v103, %v215
    %v232 = vmul.f32 %v104, %v216
    %v233 = vmul.f32 %v105, %v217
    %v234 = vmul.f32 %v106, %v218
    %v235 = vmul.f32 %v107, %v219
    %v236 = vmul.f32 %v108, %v220
    %v237 = vmul.f32 %v109, %v221
    %v238 = vmul.f32 %v110, %v222
    %v239 = vmul.f32 %v111, %v223
    %v240 = vmul.f32 %v112, %v224
    %v241 = vld [vmem:[%s1] sm:$0x1]
    %v243 = vlaneseq
    %v244 = vshrl.u32 %v243, 7
    %v245 = vsub.s32 0, %v244
    %v246 = vrot.slane %v241, %v245
    %v248 = vmul.f32 %v225, %v246
    %v249 = vmul.f32 %v226, %v246
    %v250 = vmul.f32 %v227, %v246
    %v251 = vmul.f32 %v228, %v246
    %v252 = vmul.f32 %v229, %v246
    %v253 = vmul.f32 %v230, %v246
    %v254 = vmul.f32 %v231, %v246
    %v255 = vmul.f32 %v232, %v246
    %v256 = vmul.f32 %v233, %v246
    %v257 = vmul.f32 %v234, %v246
    %v258 = vmul.f32 %v235, %v246
    %v259 = vmul.f32 %v236, %v246
    %v260 = vmul.f32 %v237, %v246
    %v261 = vmul.f32 %v238, %v246
    %v262 = vmul.f32 %v239, %v246
    %v263 = vmul.f32 %v240, %v246
    %v264 = vld [vmem:[%s2] sm:$0x1]
    %v266 = vlaneseq
    %v267 = vshrl.u32 %v266, 7
    %v268 = vsub.s32 0, %v267
    %v269 = vrot.slane %v264, %v268
    %v271 = vadd.f32 %v248, %v269
    %v272 = vadd.f32 %v249, %v269
    %v273 = vadd.f32 %v250, %v269
    %v274 = vadd.f32 %v251, %v269
    %v275 = vadd.f32 %v252, %v269
    %v276 = vadd.f32 %v253, %v269
    %v277 = vadd.f32 %v254, %v269
    %v278 = vadd.f32 %v255, %v269
    %v279 = vadd.f32 %v256, %v269
    %v280 = vadd.f32 %v257, %v269
    %v281 = vadd.f32 %v258, %v269
    %v282 = vadd.f32 %v259, %v269
    %v283 = vadd.f32 %v260, %v269
    %v284 = vadd.f32 %v261, %v269
    %v285 = vadd.f32 %v262, %v269
    %v286 = vadd.f32 %v263, %v269
    %287 = vst.msk [vmem:[#allocation2] sm:$0xff] %vm31, %v271
    %288 = vst.msk [vmem:[#allocation2 + $0x8] sm:$0xff] %vm31, %v272
    %289 = vst.msk [vmem:[#allocation2 + $0x10] sm:$0xff] %vm31, %v273
    %290 = vst.msk [vmem:[#allocation2 + $0x18] sm:$0xff] %vm31, %v274
    %291 = vst.msk [vmem:[#allocation2 + $0x20] sm:$0xff] %vm31, %v275
    %292 = vst.msk [vmem:[#allocation2 + $0x28] sm:$0xff] %vm31, %v276
    %293 = vst.msk [vmem:[#allocation2 + $0x30] sm:$0xff] %vm31, %v277
    %294 = vst.msk [vmem:[#allocation2 + $0x38] sm:$0xff] %vm31, %v278
    %295 = vst.msk [vmem:[#allocation2 + $0x40] sm:$0xff] %vm31, %v279
    %296 = vst.msk [vmem:[#allocation2 + $0x48] sm:$0xff] %vm31, %v280
    %297 = vst.msk [vmem:[#allocation2 + $0x50] sm:$0xff] %vm31, %v281
    %298 = vst.msk [vmem:[#allocation2 + $0x58] sm:$0xff] %vm31, %v282
    %299 = vst.msk [vmem:[#allocation2 + $0x60] sm:$0xff] %vm31, %v283
    %300 = vst.msk [vmem:[#allocation2 + $0x68] sm:$0xff] %vm31, %v284
    %301 = vst.msk [vmem:[#allocation2 + $0x70] sm:$0xff] %vm31, %v285
    %302 = vst.msk [vmem:[#allocation2 + $0x78] sm:$0xff] %vm31, %v286
    // Predicated region
    $region14: #{cformer_forward.31} parent=1 // pred_check
      _
    $region15: #{cformer_forward.31} parent=1 // pred_check_branch
      %304 = sbr.rel (0) target = $region17
    $region16: #{cformer_forward.31} parent=1 // pred_region
      %s306 = ssub.s32 2048, 2048
      %307 = vsyncadd [#allocation3], %s306
      %s308 = sshll.u32 [#allocation2], 4
      %s309 = int_to_ptr.vmem [resolvable:$true] %s308
      %314 = dma.vmem_to_hbm [thread:$0]  %s309, 2048, %s3, [#allocation3], 128, 128, 8
    $region17: #{cformer_forward.31} parent=1 // pred_fallthru
      _
    // Predicated region
    $region18: #{cformer_forward.31} parent=1 // pred_check
      _
    $region19: #{cformer_forward.31} parent=1 // pred_check_branch
      %316 = sbr.rel (0) target = $region21
    $region20: #{cformer_forward.31} parent=1 // pred_region
      %317 = dma.done [#allocation3], 2048
    $region21: #{cformer_forward.31} parent=1 // pred_fallthru
      _
    %318 = vsyncpa [#allocation3], 1

// kernel: cformer_forward.18
$region0: #{cformer_forward.18}
  #allocation0 [shape = 'u32[]', space=smem, size = 0x4, offset = 0x4, fixed_abs, tag = 'smem constant byte address 0x4 - core index']
  #allocation1 [shape = 'u32[144,128]{1,0:T(1,128)}', space=vmem, size = 0x12000, scoped, tag = 'internal scratch']
  %s0 = inlined_call_operand.vmem [shape: bf16[2,4,8,12], index: 0, kind: input, shape index: {}]
  %s1 = inlined_call_operand.vmem [shape: bf16[2,4,8,12], index: 1, kind: input, shape index: {}]
  %s2 = inlined_call_operand.vmem [shape: bf16[2,4,8,12], index: 2, kind: input, shape index: {}]
  %s3 = inlined_call_operand.vmem [shape: f32[2,16,8,8], index: 3, kind: input, shape index: {}]
  %s4 = inlined_call_operand.vmem [shape: f32[4,16], index: 4, kind: input, shape index: {}]
  %s5 = inlined_call_operand.vmem [shape: f32[4,16], index: 5, kind: input, shape index: {}]
  %s6 = inlined_call_operand.vmem [shape: f32[1,16], index: 6, kind: input, shape index: {}]
  %s7 = inlined_call_operand.vmem [shape: f32[1,16], index: 7, kind: input, shape index: {}]
  %s8 = inlined_call_operand.vmem [shape: f32[1,16], index: 8, kind: input, shape index: {}]
  %s9 = inlined_call_operand.vmem [shape: bf16[2,4,8,12], index: 9, kind: output, shape index: {0}]
  %s10 = inlined_call_operand.vmem [shape: f32[2,16,8,8], index: 10, kind: output, shape index: {1}]
  %11 = xla_tuple %s9, %s10
  %s12 = sld [smem:[#allocation0]]
  $region97: #{cformer_forward.18} parent=0
    _
  %s14 = ssub.s32 1, %s12
  %s15 = scalar_select 0, %s14, %s12
  $region1: #{cformer_forward.18} parent=0
    #allocation2 [shape = 'u8[2048]{0}', space=smem, size = 0x800, scoped, tag = 'input window, operand 4, single buffered']
    #allocation3 [shape = 's32[2]{0}', space=sflag, size = 0x8, scoped, tag = 'scoped memory for cformer_forward.18']
    #allocation4 [shape = 'u8[2048]{0}', space=smem, size = 0x800, scoped, tag = 'input window, operand 5, single buffered']
    #allocation5 [shape = 's32[1]{0}', space=sflag, size = 0x4, scoped, tag = 'scoped memory for cformer_forward.18']
    #allocation6 [shape = 'u8[512]{0}', space=smem, size = 0x200, scoped, tag = 'input window, operand 6, single buffered']
    #allocation7 [shape = 'u8[512]{0}', space=smem, size = 0x200, scoped, tag = 'input window, operand 7, single buffered']
    #allocation8 [shape = 's32[1]{0}', space=sflag, size = 0x4, scoped, tag = 'scoped memory for cformer_forward.18']
    #allocation9 [shape = 'u8[512]{0}', space=smem, size = 0x200, scoped, tag = 'input window, operand 8, single buffered']
    %16 = vsyncpa [#allocation3], 0
    %17 = vsyncpa [#allocation5], 0
    %18 = vsyncpa [#allocation8], 0
    loop: start=0, step=1, limit=4
    $region2: #{cformer_forward.18} parent=1 // loop_pre_header
      _
    $region3: #{cformer_forward.18} parent=1 // loop_header
      %s20 = sphi 0, %s24
      %p21 = scmp.ge.s32.totalorder %s20, 4
      %s27 = sphi 0, %s39
      %s28 = sphi 0, %s35
      %s29 = sphi 0, %s27
      %s30 = sphi 0, %s28
      %s31 = sphi 0, %s29
      %s32 = sphi 0, %s30
      %s44 = sphi 0, %s46
      %s47 = sphi 0, %s44
      %s48 = sphi 0, %s47
      %s64 = sphi 0, %s48
      %s70 = sphi 0, %s72
      %s73 = sphi 0, %s70
      %s74 = sphi 0, %s73
      %s90 = sphi 0, %s74
      %s96 = sphi 0, %s98
      %s99 = sphi 0, %s96
      %s100 = sphi 0, %s99
      %s116 = sphi 0, %s100
      %s124 = sphi 0, %s126
      %s127 = sphi 0, %s124
      %s128 = sphi 0, %s127
      %s144 = sphi 0, %s128
      %s148 = sphi 0, %s148
      %s150 = sphi 0, %s148
      %s151 = sphi 0, %s150
      %s165 = sphi 0, %s151
      %s169 = sphi 0, %s169
      %s171 = sphi 0, %s169
      %s172 = sphi 0, %s171
      %s186 = sphi 0, %s172
      %s190 = sphi 0, %s190
      %s192 = sphi 0, %s190
      %s193 = sphi 0, %s192
      %s207 = sphi 0, %s193
      %s211 = sphi 0, %s211
      %s213 = sphi 0, %s211
      %s214 = sphi 0, %s213
      %s228 = sphi 0, %s214
      %s232 = sphi 0, %s232
      %s234 = sphi 0, %s232
      %s235 = sphi 0, %s234
      %s249 = sphi 0, %s235
      %s257 = sphi 0, %s259
      %s260 = sphi 0, %s257
      %s261 = sphi 0, %s260
      %s277 = sphi 0, %s261
      %s285 = sphi 0, %s287
      %s288 = sphi 0, %s285
      %s289 = sphi 0, %s288
      %s305 = sphi 0, %s289
    $region4: #{cformer_forward.18} parent=1 // loop_header_branch
      %23 = sbr.rel (%p21) target = $region8
    $region5: #{cformer_forward.18} parent=1 // loop_body
      %s25 = ssub.s32 %s20, 1
      %s26 = ssub.s32 %s20, 2
      %s33 = sadd.s32 1, %s28
      %p34 = scmp.ge.s32.totalorder %s33, 1
      %s35 = scalar_select %p34, 0, %s33
      %s36 = sadd.s32 1, %s27
      %s37 = scalar_select %p34, %s36, %s27
      %p38 = scmp.ge.s32.totalorder %s37, 2
      %s39 = scalar_select %p38, 0, %s37
      %s40 = ssub.s32 %s27, %s39
      %s41 = ssub.s32 %s28, %s35
      %s42 = sor.u32 %s40, %s41
      %p43 = scmp.eq.s32.totalorder %s42, 0
      %s45 = sadd.s32 %s44, 1
      %s46 = scalar_select %p43, %s44, %s45
      %p49 = pneg %p43
      %p50 = scmp.eq.s32.totalorder %s20, 1
      %p51 = por %p49, %p50
      %p52 = scmp.ne.s32.totalorder %s44, %s47
      %p53 = scmp.eq.s32.totalorder %s20, 0
      %p54 = por %p52, %p53
      %p55 = scmp.ne.s32.totalorder %s44, %s47
      %p56 = scmp.eq.s32.totalorder %s25, 1
      %p57 = por %p55, %p56
      %p58 = scmp.ne.s32.totalorder %s47, %s48
      %p59 = scmp.eq.s32.totalorder %s25, 0
      %p60 = por %p58, %p59
      %p61 = scmp.ne.s32.totalorder %s47, %s48
      %p62 = scmp.eq.s32.totalorder %s26, 1
      %p63 = por %p61, %p62
      %p65 = scmp.ne.s32.totalorder %s48, %s64
      %p66 = scmp.eq.s32.totalorder %s26, 0
      %p67 = por %p65, %p66
      %s68 = ssub.s32 %s27, %s39
      %p69 = scmp.eq.s32.totalorder %s68, 0
      %s71 = sadd.s32 %s70, 1
      %s72 = scalar_select %p69, %s70, %s71
      %p75 = pneg %p69
      %p76 = scmp.eq.s32.totalorder %s20, 1
      %p77 = por %p75, %p76
      %p78 = scmp.ne.s32.totalorder %s70, %s73
      %p79 = scmp.eq.s32.totalorder %s20, 0
      %p80 = por %p78, %p79
      %p81 = scmp.ne.s32.totalorder %s70, %s73
      %p82 = scmp.eq.s32.totalorder %s25, 1
      %p83 = por %p81, %p82
      %p84 = scmp.ne.s32.totalorder %s73, %s74
      %p85 = scmp.eq.s32.totalorder %s25, 0
      %p86 = por %p84, %p85
      %p87 = scmp.ne.s32.totalorder %s73, %s74
      %p88 = scmp.eq.s32.totalorder %s26, 1
      %p89 = por %p87, %p88
      %p91 = scmp.ne.s32.totalorder %s74, %s90
      %p92 = scmp.eq.s32.totalorder %s26, 0
      %p93 = por %p91, %p92
      %s94 = ssub.s32 %s27, %s39
      %p95 = scmp.eq.s32.totalorder %s94, 0
      %s97 = sadd.s32 %s96, 1
      %s98 = scalar_select %p95, %s96, %s97
      %p101 = pneg %p95
      %p102 = scmp.eq.s32.totalorder %s20, 1
      %p103 = por %p101, %p102
      %p104 = scmp.ne.s32.totalorder %s96, %s99
      %p105 = scmp.eq.s32.totalorder %s20, 0
      %p106 = por %p104, %p105
      %p107 = scmp.ne.s32.totalorder %s96, %s99
      %p108 = scmp.eq.s32.totalorder %s25, 1
      %p109 = por %p107, %p108
      %p110 = scmp.ne.s32.totalorder %s99, %s100
      %p111 = scmp.eq.s32.totalorder %s25, 0
      %p112 = por %p110, %p111
      %p113 = scmp.ne.s32.totalorder %s99, %s100
      %p114 = scmp.eq.s32.totalorder %s26, 1
      %p115 = por %p113, %p114
      %p117 = scmp.ne.s32.totalorder %s100, %s116
      %p118 = scmp.eq.s32.totalorder %s26, 0
      %p119 = por %p117, %p118
      %s120 = ssub.s32 %s27, %s39
      %s121 = ssub.s32 %s28, %s35
      %s122 = sor.u32 %s120, %s121
      %p123 = scmp.eq.s32.totalorder %s122, 0
      %s125 = sadd.s32 %s124, 1
      %s126 = scalar_select %p123, %s124, %s125
      %p129 = pneg %p123
      %p130 = scmp.eq.s32.totalorder %s20, 1
      %p131 = por %p129, %p130
      %p132 = scmp.ne.s32.totalorder %s124, %s127
      %p133 = scmp.eq.s32.totalorder %s20, 0
      %p134 = por %p132, %p133
      %p135 = scmp.ne.s32.totalorder %s124, %s127
      %p136 = scmp.eq.s32.totalorder %s25, 1
      %p137 = por %p135, %p136
      %p138 = scmp.ne.s32.totalorder %s127, %s128
      %p139 = scmp.eq.s32.totalorder %s25, 0
      %p140 = por %p138, %p139
      %p141 = scmp.ne.s32.totalorder %s127, %s128
      %p142 = scmp.eq.s32.totalorder %s26, 1
      %p143 = por %p141, %p142
      %p145 = scmp.ne.s32.totalorder %s128, %s144
      %p146 = scmp.eq.s32.totalorder %s26, 0
      %p147 = por %p145, %p146
      %s149 = sadd.s32 %s148, 1
      %p152 = scmp.eq.s32.totalorder %s20, 1
      %p153 = scmp.ne.s32.totalorder %s148, %s150
      %p154 = scmp.eq.s32.totalorder %s20, 0
      %p155 = por %p153, %p154
      %p156 = scmp.ne.s32.totalorder %s148, %s150
      %p157 = scmp.eq.s32.totalorder %s25, 1
      %p158 = por %p156, %p157
      %p159 = scmp.ne.s32.totalorder %s150, %s151
      %p160 = scmp.eq.s32.totalorder %s25, 0
      %p161 = por %p159, %p160
      %p162 = scmp.ne.s32.totalorder %s150, %s151
      %p163 = scmp.eq.s32.totalorder %s26, 1
      %p164 = por %p162, %p163
      %p166 = scmp.ne.s32.totalorder %s151, %s165
      %p167 = scmp.eq.s32.totalorder %s26, 0
      %p168 = por %p166, %p167
      %s170 = sadd.s32 %s169, 1
      %p173 = scmp.eq.s32.totalorder %s20, 1
      %p174 = scmp.ne.s32.totalorder %s169, %s171
      %p175 = scmp.eq.s32.totalorder %s20, 0
      %p176 = por %p174, %p175
      %p177 = scmp.ne.s32.totalorder %s169, %s171
      %p178 = scmp.eq.s32.totalorder %s25, 1
      %p179 = por %p177, %p178
      %p180 = scmp.ne.s32.totalorder %s171, %s172
      %p181 = scmp.eq.s32.totalorder %s25, 0
      %p182 = por %p180, %p181
      %p183 = scmp.ne.s32.totalorder %s171, %s172
      %p184 = scmp.eq.s32.totalorder %s26, 1
      %p185 = por %p183, %p184
      %p187 = scmp.ne.s32.totalorder %s172, %s186
      %p188 = scmp.eq.s32.totalorder %s26, 0
      %p189 = por %p187, %p188
      %s191 = sadd.s32 %s190, 1
      %p194 = scmp.eq.s32.totalorder %s20, 1
      %p195 = scmp.ne.s32.totalorder %s190, %s192
      %p196 = scmp.eq.s32.totalorder %s20, 0
      %p197 = por %p195, %p196
      %p198 = scmp.ne.s32.totalorder %s190, %s192
      %p199 = scmp.eq.s32.totalorder %s25, 1
      %p200 = por %p198, %p199
      %p201 = scmp.ne.s32.totalorder %s192, %s193
      %p202 = scmp.eq.s32.totalorder %s25, 0
      %p203 = por %p201, %p202
      %p204 = scmp.ne.s32.totalorder %s192, %s193
      %p205 = scmp.eq.s32.totalorder %s26, 1
      %p206 = por %p204, %p205
      %p208 = scmp.ne.s32.totalorder %s193, %s207
      %p209 = scmp.eq.s32.totalorder %s26, 0
      %p210 = por %p208, %p209
      %s212 = sadd.s32 %s211, 1
      %p215 = scmp.eq.s32.totalorder %s20, 1
      %p216 = scmp.ne.s32.totalorder %s211, %s213
      %p217 = scmp.eq.s32.totalorder %s20, 0
      %p218 = por %p216, %p217
      %p219 = scmp.ne.s32.totalorder %s211, %s213
      %p220 = scmp.eq.s32.totalorder %s25, 1
      %p221 = por %p219, %p220
      %p222 = scmp.ne.s32.totalorder %s213, %s214
      %p223 = scmp.eq.s32.totalorder %s25, 0
      %p224 = por %p222, %p223
      %p225 = scmp.ne.s32.totalorder %s213, %s214
      %p226 = scmp.eq.s32.totalorder %s26, 1
      %p227 = por %p225, %p226
      %p229 = scmp.ne.s32.totalorder %s214, %s228
      %p230 = scmp.eq.s32.totalorder %s26, 0
      %p231 = por %p229, %p230
      %s233 = sadd.s32 %s232, 1
      %p236 = scmp.eq.s32.totalorder %s20, 1
      %p237 = scmp.ne.s32.totalorder %s232, %s234
      %p238 = scmp.eq.s32.totalorder %s20, 0
      %p239 = por %p237, %p238
      %p240 = scmp.ne.s32.totalorder %s232, %s234
      %p241 = scmp.eq.s32.totalorder %s25, 1
      %p242 = por %p240, %p241
      %p243 = scmp.ne.s32.totalorder %s234, %s235
      %p244 = scmp.eq.s32.totalorder %s25, 0
      %p245 = por %p243, %p244
      %p246 = scmp.ne.s32.totalorder %s234, %s235
      %p247 = scmp.eq.s32.totalorder %s26, 1
      %p248 = por %p246, %p247
      %p250 = scmp.ne.s32.totalorder %s235, %s249
      %p251 = scmp.eq.s32.totalorder %s26, 0
      %p252 = por %p250, %p251
      %s253 = ssub.s32 %s27, %s39
      %s254 = ssub.s32 %s28, %s35
      %s255 = sor.u32 %s253, %s254
      %p256 = scmp.eq.s32.totalorder %s255, 0
      %s258 = sadd.s32 %s257, 1
      %s259 = scalar_select %p256, %s257, %s258
      %p262 = pneg %p256
      %p263 = scmp.eq.s32.totalorder %s20, 1
      %p264 = por %p262, %p263
      %p265 = scmp.ne.s32.totalorder %s257, %s260
      %p266 = scmp.eq.s32.totalorder %s20, 0
      %p267 = por %p265, %p266
      %p268 = scmp.ne.s32.totalorder %s257, %s260
      %p269 = scmp.eq.s32.totalorder %s25, 1
      %p270 = por %p268, %p269
      %p271 = scmp.ne.s32.totalorder %s260, %s261
      %p272 = scmp.eq.s32.totalorder %s25, 0
      %p273 = por %p271, %p272
      %p274 = scmp.ne.s32.totalorder %s260, %s261
      %p275 = scmp.eq.s32.totalorder %s26, 1
      %p276 = por %p274, %p275
      %p278 = scmp.ne.s32.totalorder %s261, %s277
      %p279 = scmp.eq.s32.totalorder %s26, 0
      %p280 = por %p278, %p279
      %s281 = ssub.s32 %s27, %s39
      %s282 = ssub.s32 %s28, %s35
      %s283 = sor.u32 %s281, %s282
      %p284 = scmp.eq.s32.totalorder %s283, 0
      %s286 = sadd.s32 %s285, 1
      %s287 = scalar_select %p284, %s285, %s286
      %p290 = pneg %p284
      %p291 = scmp.eq.s32.totalorder %s20, 1
      %p292 = por %p290, %p291
      %p293 = scmp.ne.s32.totalorder %s285, %s288
      %p294 = scmp.eq.s32.totalorder %s20, 0
      %p295 = por %p293, %p294
      %p296 = scmp.ne.s32.totalorder %s285, %s288
      %p297 = scmp.eq.s32.totalorder %s25, 1
      %p298 = por %p296, %p297
      %p299 = scmp.ne.s32.totalorder %s288, %s289
      %p300 = scmp.eq.s32.totalorder %s25, 0
      %p301 = por %p299, %p300
      %p302 = scmp.ne.s32.totalorder %s288, %s289
      %p303 = scmp.eq.s32.totalorder %s26, 1
      %p304 = por %p302, %p303
      %p306 = scmp.ne.s32.totalorder %s289, %s305
      %p307 = scmp.eq.s32.totalorder %s26, 0
      %p308 = por %p306, %p307
      %p309 = scmp.le.s32.totalorder 1, %s20
      %p310 = scmp.lt.s32.totalorder %s20, 3
      %p311 = pnand %p309, %p310
      %p312 = pneg %p311
      // Predicated region
      $region9: #{cformer_forward.18} parent=5 // pred_check
        _
      $region10: #{cformer_forward.18} parent=5 // pred_check_branch
        %314 = sbr.rel (%p311) target = $region12
      $region11: #{cformer_forward.18} parent=5 // pred_region
        %s315 = ssub.s32 %s20, 1
        // Predicated region
        $region13: #{cformer_forward.18} parent=11 // pred_check
          %p316 = pneg %p161
        $region14: #{cformer_forward.18} parent=11 // pred_check_branch
          %318 = sbr.rel (%p316) target = $region16
        $region15: #{cformer_forward.18} parent=11 // pred_region
          %s320 = ssub.s32 64, 64
          %321 = vsyncadd [#allocation3], %s320
          %s323 = sshll.u32 %s4, 4
          %s324 = int_to_ptr.vmem [resolvable:$true] %s323
          %326 = dma.vmem_to_smem %s324, 64, [#allocation2], [#allocation3]
        $region16: #{cformer_forward.18} parent=11 // pred_fallthru
          _
        // Predicated region
        $region17: #{cformer_forward.18} parent=11 // pred_check
          %p327 = pneg %p182
        $region18: #{cformer_forward.18} parent=11 // pred_check_branch
          %329 = sbr.rel (%p327) target = $region20
        $region19: #{cformer_forward.18} parent=11 // pred_region
          %s331 = ssub.s32 64, 64
          %332 = vsyncadd [#allocation5], %s331
          %s334 = sshll.u32 %s5, 4
          %s335 = int_to_ptr.vmem [resolvable:$true] %s334
          %337 = dma.vmem_to_smem %s335, 64, [#allocation4], [#allocation5]
        $region20: #{cformer_forward.18} parent=11 // pred_fallthru
          _
        // Predicated region
        $region21: #{cformer_forward.18} parent=11 // pred_check
          %p338 = pneg %p203
        $region22: #{cformer_forward.18} parent=11 // pred_check_branch
          %340 = sbr.rel (%p338) target = $region24
        $region23: #{cformer_forward.18} parent=11 // pred_region
          %s342 = ssub.s32 16, 16
          %343 = vsyncadd [#allocation5], %s342
          %s345 = sshll.u32 %s6, 4
          %s346 = int_to_ptr.vmem [resolvable:$true] %s345
          %348 = dma.vmem_to_smem %s346, 16, [#allocation6], [#allocation5]
        $region24: #{cformer_forward.18} parent=11 // pred_fallthru
          _
        // Predicated region
        $region25: #{cformer_forward.18} parent=11 // pred_check
          %p349 = pneg %p224
        $region26: #{cformer_forward.18} parent=11 // pred_check_branch
          %351 = sbr.rel (%p349) target = $region28
        $region27: #{cformer_forward.18} parent=11 // pred_region
          %s353 = ssub.s32 16, 16
          %354 = vsyncadd [#allocation8], %s353
          %s356 = sshll.u32 %s7, 4
          %s357 = int_to_ptr.vmem [resolvable:$true] %s356
          %359 = dma.vmem_to_smem %s357, 16, [#allocation7], [#allocation8]
        $region28: #{cformer_forward.18} parent=11 // pred_fallthru
          _
        // Predicated region
        $region29: #{cformer_forward.18} parent=11 // pred_check
          %p360 = pneg %p245
        $region30: #{cformer_forward.18} parent=11 // pred_check_branch
          %362 = sbr.rel (%p360) target = $region32
        $region31: #{cformer_forward.18} parent=11 // pred_region
          %s364 = ssub.s32 16, 16
          %365 = vsyncadd [#allocation8], %s364
          %s367 = sshll.u32 %s8, 4
          %s368 = int_to_ptr.vmem [resolvable:$true] %s367
          %370 = dma.vmem_to_smem %s368, 16, [#allocation9], [#allocation8]
        $region32: #{cformer_forward.18} parent=11 // pred_fallthru
          _
      $region12: #{cformer_forward.18} parent=5 // pred_fallthru
        _
      %p371 = scmp.lt.s32.totalorder %s20, 2
      // Predicated region
      $region33: #{cformer_forward.18} parent=5 // pred_check
        %p372 = pneg %p371
      $region34: #{cformer_forward.18} parent=5 // pred_check_branch
        %374 = sbr.rel (%p372) target = $region36
      $region35: #{cformer_forward.18} parent=5 // pred_region
        // Predicated region
        $region37: #{cformer_forward.18} parent=35 // pred_check
          %p375 = pneg %p54
        $region38: #{cformer_forward.18} parent=35 // pred_check_branch
          %377 = sbr.rel (%p375) target = $region40
        $region39: #{cformer_forward.18} parent=35 // pred_region
          %p378 = scmp.lt.s32.totalorder %s27, 1
          %s379 = scalar_select %p378, %s27, 1
          %p380 = scmp.lt.s32.totalorder %s28, 0
          %s381 = scalar_select %p380, %s28, 0
          %s382 = smul.addr %s379, 4
          %s383 = sadd.s32 %s381, %s382
          %s384 = smul.addr %s383, 4
          %s385 = scalar_lea.vmem %s0, %s384
        $region40: #{cformer_forward.18} parent=35 // pred_fallthru
          _
        // Predicated region
        $region41: #{cformer_forward.18} parent=35 // pred_check
          %p386 = pneg %p80
        $region42: #{cformer_forward.18} parent=35 // pred_check_branch
          %388 = sbr.rel (%p386) target = $region44
        $region43: #{cformer_forward.18} parent=35 // pred_region
          %p389 = scmp.lt.s32.totalorder %s27, 1
          %s390 = scalar_select %p389, %s27, 1
          %s391 = smul.addr %s390, 4
          %s392 = smul.addr %s391, 4
          %s393 = scalar_lea.vmem %s1, %s392
        $region44: #{cformer_forward.18} parent=35 // pred_fallthru
          _
        // Predicated region
        $region45: #{cformer_forward.18} parent=35 // pred_check
          %p394 = pneg %p106
        $region46: #{cformer_forward.18} parent=35 // pred_check_branch
          %396 = sbr.rel (%p394) target = $region48
        $region47: #{cformer_forward.18} parent=35 // pred_region
          %p397 = scmp.lt.s32.totalorder %s27, 1
          %s398 = scalar_select %p397, %s27, 1
          %s399 = smul.addr %s398, 4
          %s400 = smul.addr %s399, 4
          %s401 = scalar_lea.vmem %s2, %s400
        $region48: #{cformer_forward.18} parent=35 // pred_fallthru
          _
        // Predicated region
        $region49: #{cformer_forward.18} parent=35 // pred_check
          %p402 = pneg %p134
        $region50: #{cformer_forward.18} parent=35 // pred_check_branch
          %404 = sbr.rel (%p402) target = $region52
        $region51: #{cformer_forward.18} parent=35 // pred_region
          %p405 = scmp.lt.s32.totalorder %s27, 1
          %s406 = scalar_select %p405, %s27, 1
          %p407 = scmp.lt.s32.totalorder %s28, 0
          %s408 = scalar_select %p407, %s28, 0
          %s409 = smul.addr %s406, 16
          %s410 = sadd.s32 %s408, %s409
          %s411 = smul.addr %s410, 8
          %s412 = scalar_lea.vmem %s3, %s411
        $region52: #{cformer_forward.18} parent=35 // pred_fallthru
          _
      $region36: #{cformer_forward.18} parent=5 // pred_fallthru
        _
      %p413 = scmp.le.s32.totalorder 1, %s20
      %p414 = scmp.lt.s32.totalorder %s20, 3
      %p415 = pnand %p413, %p414
      %p416 = pneg %p415
      // Predicated region
      $region53: #{cformer_forward.18} parent=5 // pred_check
        _
      $region54: #{cformer_forward.18} parent=5 // pred_check_branch
        %418 = sbr.rel (%p415) target = $region56
      $region55: #{cformer_forward.18} parent=5 // pred_region
        %s419 = ssub.s32 %s20, 1
        // Predicated region
        $region57: #{cformer_forward.18} parent=55 // pred_check
          %p420 = pneg %p161
        $region58: #{cformer_forward.18} parent=55 // pred_check_branch
          %422 = sbr.rel (%p420) target = $region60
        $region59: #{cformer_forward.18} parent=55 // pred_region
          %423 = dma.done [#allocation3], 64
        $region60: #{cformer_forward.18} parent=55 // pred_fallthru
          _
        // Predicated region
        $region61: #{cformer_forward.18} parent=55 // pred_check
          %p424 = pneg %p182
        $region62: #{cformer_forward.18} parent=55 // pred_check_branch
          %426 = sbr.rel (%p424) target = $region64
        $region63: #{cformer_forward.18} parent=55 // pred_region
          %427 = dma.done [#allocation5], 64
        $region64: #{cformer_forward.18} parent=55 // pred_fallthru
          _
        // Predicated region
        $region65: #{cformer_forward.18} parent=55 // pred_check
          %p428 = pneg %p203
        $region66: #{cformer_forward.18} parent=55 // pred_check_branch
          %430 = sbr.rel (%p428) target = $region68
        $region67: #{cformer_forward.18} parent=55 // pred_region
          %431 = dma.done [#allocation5], 16
        $region68: #{cformer_forward.18} parent=55 // pred_fallthru
          _
        // Predicated region
        $region69: #{cformer_forward.18} parent=55 // pred_check
          %p432 = pneg %p224
        $region70: #{cformer_forward.18} parent=55 // pred_check_branch
          %434 = sbr.rel (%p432) target = $region72
        $region71: #{cformer_forward.18} parent=55 // pred_region
          %435 = dma.done [#allocation8], 16
        $region72: #{cformer_forward.18} parent=55 // pred_fallthru
          _
        // Predicated region
        $region73: #{cformer_forward.18} parent=55 // pred_check
          %p436 = pneg %p245
        $region74: #{cformer_forward.18} parent=55 // pred_check_branch
          %438 = sbr.rel (%p436) target = $region76
        $region75: #{cformer_forward.18} parent=55 // pred_region
          %439 = dma.done [#allocation8], 16
        $region76: #{cformer_forward.18} parent=55 // pred_fallthru
          _
        %440 = sfence
        %p441 = scmp.lt.s32.totalorder %s29, 1
        %s442 = scalar_select %p441, %s29, 1
        %p443 = scmp.lt.s32.totalorder %s30, 0
        %s444 = scalar_select %p443, %s30, 0
        %s445 = smul.addr %s442, 4
        %s446 = sadd.s32 %s444, %s445
        %s447 = smul.addr %s446, 4
        %s448 = scalar_lea.vmem %s0, %s447
        %p449 = pneg %p60
        %p450 = pneg %p57
        %p451 = scmp.lt.s32.totalorder %s29, 1
        %s452 = scalar_select %p451, %s29, 1
        %s453 = smul.addr %s452, 4
        %s454 = smul.addr %s453, 4
        %s455 = scalar_lea.vmem %s1, %s454
        %p456 = pneg %p86
        %p457 = pneg %p83
        %p458 = scmp.lt.s32.totalorder %s29, 1
        %s459 = scalar_select %p458, %s29, 1
        %s460 = smul.addr %s459, 4
        %s461 = smul.addr %s460, 4
        %s462 = scalar_lea.vmem %s2, %s461
        %p463 = pneg %p112
        %p464 = pneg %p109
        %p465 = scmp.lt.s32.totalorder %s29, 1
        %s466 = scalar_select %p465, %s29, 1
        %p467 = scmp.lt.s32.totalorder %s30, 0
        %s468 = scalar_select %p467, %s30, 0
        %s469 = smul.addr %s466, 16
        %s470 = sadd.s32 %s468, %s469
        %s471 = smul.addr %s470, 8
        %s472 = scalar_lea.vmem %s3, %s471
        %p473 = pneg %p140
        %p474 = pneg %p137
        %p475 = pneg %p161
        %p476 = pneg %p158
        %p477 = pneg %p182
        %p478 = pneg %p179
        %p479 = pneg %p203
        %p480 = pneg %p200
        %p481 = pneg %p224
        %p482 = pneg %p221
        %p483 = pneg %p245
        %p484 = pneg %p242
        %p485 = pneg %p273
        %p486 = pneg %p270
        %p487 = scmp.lt.s32.totalorder %s29, 1
        %s488 = scalar_select %p487, %s29, 1
        %p489 = scmp.lt.s32.totalorder %s30, 0
        %s490 = scalar_select %p489, %s30, 0
        %s491 = smul.addr %s488, 4
        %s492 = sadd.s32 %s490, %s491
        %s493 = smul.addr %s492, 4
        %s494 = scalar_lea.vmem %s9, %s493
        %p495 = pneg %p301
        %p496 = pneg %p298
        %p497 = scmp.lt.s32.totalorder %s29, 1
        %s498 = scalar_select %p497, %s29, 1
        %p499 = scmp.lt.s32.totalorder %s30, 0
        %s500 = scalar_select %p499, %s30, 0
        %s501 = smul.addr %s498, 16
        %s502 = sadd.s32 %s500, %s501
        %s503 = smul.addr %s502, 8
        %s504 = scalar_lea.vmem %s10, %s503
        %p505 = scmp.lt.s32.totalorder %s29, 1
        %s506 = scalar_select %p505, %s29, 1
        %p507 = scmp.lt.s32.totalorder %s30, 0
        %s508 = scalar_select %p507, %s30, 0
        %s509 = smul.addr %s506, 4
        %s510 = sadd.s32 %s508, %s509
        %s511 = smul.addr %s510, 4
        %s512 = scalar_lea.vmem %s0, %s511
        %p513 = scmp.lt.s32.totalorder %s29, 1
        %s514 = scalar_select %p513, %s29, 1
        %s515 = smul.addr %s514, 4
        %s516 = smul.addr %s515, 4
        %s517 = scalar_lea.vmem %s1, %s516
        %p518 = scmp.lt.s32.totalorder %s29, 1
        %s519 = scalar_select %p518, %s29, 1
        %s520 = smul.addr %s519, 4
        %s521 = smul.addr %s520, 4
        %s522 = scalar_lea.vmem %s2, %s521
        %p523 = scmp.lt.s32.totalorder %s29, 1
        %s524 = scalar_select %p523, %s29, 1
        %p525 = scmp.lt.s32.totalorder %s30, 0
        %s526 = scalar_select %p525, %s30, 0
        %s527 = smul.addr %s524, 16
        %s528 = sadd.s32 %s526, %s527
        %s529 = smul.addr %s528, 8
        %s530 = scalar_lea.vmem %s3, %s529
        %p531 = scmp.lt.s32.totalorder %s29, 1
        %s532 = scalar_select %p531, %s29, 1
        %p533 = scmp.lt.s32.totalorder %s30, 0
        %s534 = scalar_select %p533, %s30, 0
        %s535 = smul.addr %s532, 4
        %s536 = sadd.s32 %s534, %s535
        %s537 = smul.addr %s536, 4
        %s538 = scalar_lea.vmem %s9, %s537
        %p539 = scmp.lt.s32.totalorder %s29, 1
        %s540 = scalar_select %p539, %s29, 1
        %p541 = scmp.lt.s32.totalorder %s30, 0
        %s542 = scalar_select %p541, %s30, 0
        %s543 = smul.addr %s540, 16
        %s544 = sadd.s32 %s542, %s543
        %s545 = smul.addr %s544, 8
        %s546 = scalar_lea.vmem %s10, %s545
        %v548 = vld [vmem:[%s530] sm:$0xff]
        %s549 = scalar_lea.vmem %s530, 8
        %v550 = vld [vmem:[%s549] sm:$0xff]
        %s551 = scalar_lea.vmem %s530, 16
        %v552 = vld [vmem:[%s551] sm:$0xff]
        %s553 = scalar_lea.vmem %s530, 24
        %v554 = vld [vmem:[%s553] sm:$0xff]
        %s555 = scalar_lea.vmem %s530, 32
        %v556 = vld [vmem:[%s555] sm:$0xff]
        %s557 = scalar_lea.vmem %s530, 40
        %v558 = vld [vmem:[%s557] sm:$0xff]
        %s559 = scalar_lea.vmem %s530, 48
        %v560 = vld [vmem:[%s559] sm:$0xff]
        %s561 = scalar_lea.vmem %s530, 56
        %v562 = vld [vmem:[%s561] sm:$0xff]
        %s563 = scalar_lea.vmem %s530, 64
        %v564 = vld [vmem:[%s563] sm:$0xff]
        %s565 = scalar_lea.vmem %s530, 72
        %v566 = vld [vmem:[%s565] sm:$0xff]
        %s567 = scalar_lea.vmem %s530, 80
        %v568 = vld [vmem:[%s567] sm:$0xff]
        %s569 = scalar_lea.vmem %s530, 88
        %v570 = vld [vmem:[%s569] sm:$0xff]
        %s571 = scalar_lea.vmem %s530, 96
        %v572 = vld [vmem:[%s571] sm:$0xff]
        %s573 = scalar_lea.vmem %s530, 104
        %v574 = vld [vmem:[%s573] sm:$0xff]
        %s575 = scalar_lea.vmem %s530, 112
        %v576 = vld [vmem:[%s575] sm:$0xff]
        %s577 = scalar_lea.vmem %s530, 120
        %v578 = vld [vmem:[%s577] sm:$0xff]
        %s579 = sld [smem:[#allocation6]]
        %v580 = vstv %s579
        %v581 = vadd.f32 %v548, %v580
        %s582 = sld [smem:[#allocation6 + $0x1]]
        %v583 = vstv %s582
        %v584 = vadd.f32 %v550, %v583
        %s585 = sld [smem:[#allocation6 + $0x2]]
        %v586 = vstv %s585
        %v587 = vadd.f32 %v552, %v586
        %s588 = sld [smem:[#allocation6 + $0x3]]
        %v589 = vstv %s588
        %v590 = vadd.f32 %v554, %v589
        %s591 = sld [smem:[#allocation6 + $0x4]]
        %v592 = vstv %s591
        %v593 = vadd.f32 %v556, %v592
        %s594 = sld [smem:[#allocation6 + $0x5]]
        %v595 = vstv %s594
        %v596 = vadd.f32 %v558, %v595
        %s597 = sld [smem:[#allocation6 + $0x6]]
        %v598 = vstv %s597
        %v599 = vadd.f32 %v560, %v598
        %s600 = sld [smem:[#allocation6 + $0x7]]
        %v601 = vstv %s600
        %v602 = vadd.f32 %v562, %v601
        %s603 = sld [smem:[#allocation6 + $0x8]]
        %v604 = vstv %s603
        %v605 = vadd.f32 %v564, %v604
        %s606 = sld [smem:[#allocation6 + $0x9]]
        %v607 = vstv %s606
        %v608 = vadd.f32 %v566, %v607
        %s609 = sld [smem:[#allocation6 + $0xa]]
        %v610 = vstv %s609
        %v611 = vadd.f32 %v568, %v610
        %s612 = sld [smem:[#allocation6 + $0xb]]
        %v613 = vstv %s612
        %v614 = vadd.f32 %v570, %v613
        %s615 = sld [smem:[#allocation6 + $0xc]]
        %v616 = vstv %s615
        %v617 = vadd.f32 %v572, %v616
        %s618 = sld [smem:[#allocation6 + $0xd]]
        %v619 = vstv %s618
        %v620 = vadd.f32 %v574, %v619
        %s621 = sld [smem:[#allocation6 + $0xe]]
        %v622 = vstv %s621
        %v623 = vadd.f32 %v576, %v622
        %s624 = sld [smem:[#allocation6 + $0xf]]
        %v625 = vstv %s624
        %v626 = vadd.f32 %v578, %v625
        %s627 = sld [smem:[#allocation2]]
        %v628 = vstv %s627
        %v629 = vmul.f32 %v548, %v628
        %s630 = sld [smem:[#allocation2 + $0x1]]
        %v631 = vstv %s630
        %v632 = vmul.f32 %v550, %v631
        %v633 = vadd.f32 %v629, %v632
        %s634 = sld [smem:[#allocation2 + $0x2]]
        %v635 = vstv %s634
        %v636 = vmul.f32 %v552, %v635
        %v637 = vadd.f32 %v633, %v636
        %s638 = sld [smem:[#allocation2 + $0x3]]
        %v639 = vstv %s638
        %v640 = vmul.f32 %v554, %v639
        %v641 = vadd.f32 %v637, %v640
        %s642 = sld [smem:[#allocation2 + $0x4]]
        %v643 = vstv %s642
        %v644 = vmul.f32 %v556, %v643
        %v645 = vadd.f32 %v641, %v644
        %s646 = sld [smem:[#allocation2 + $0x5]]
        %v647 = vstv %s646
        %v648 = vmul.f32 %v558, %v647
        %v649 = vadd.f32 %v645, %v648
        %s650 = sld [smem:[#allocation2 + $0x6]]
        %v651 = vstv %s650
        %v652 = vmul.f32 %v560, %v651
        %v653 = vadd.f32 %v649, %v652
        %s654 = sld [smem:[#allocation2 + $0x7]]
        %v655 = vstv %s654
        %v656 = vmul.f32 %v562, %v655
        %v657 = vadd.f32 %v653, %v656
        %s658 = sld [smem:[#allocation2 + $0x8]]
        %v659 = vstv %s658
        %v660 = vmul.f32 %v564, %v659
        %v661 = vadd.f32 %v657, %v660
        %s662 = sld [smem:[#allocation2 + $0x9]]
        %v663 = vstv %s662
        %v664 = vmul.f32 %v566, %v663
        %v665 = vadd.f32 %v661, %v664
        %s666 = sld [smem:[#allocation2 + $0xa]]
        %v667 = vstv %s666
        %v668 = vmul.f32 %v568, %v667
        %v669 = vadd.f32 %v665, %v668
        %s670 = sld [smem:[#allocation2 + $0xb]]
        %v671 = vstv %s670
        %v672 = vmul.f32 %v570, %v671
        %v673 = vadd.f32 %v669, %v672
        %s674 = sld [smem:[#allocation2 + $0xc]]
        %v675 = vstv %s674
        %v676 = vmul.f32 %v572, %v675
        %v677 = vadd.f32 %v673, %v676
        %s678 = sld [smem:[#allocation2 + $0xd]]
        %v679 = vstv %s678
        %v680 = vmul.f32 %v574, %v679
        %v681 = vadd.f32 %v677, %v680
        %s682 = sld [smem:[#allocation2 + $0xe]]
        %v683 = vstv %s682
        %v684 = vmul.f32 %v576, %v683
        %v685 = vadd.f32 %v681, %v684
        %s686 = sld [smem:[#allocation2 + $0xf]]
        %v687 = vstv %s686
        %v688 = vmul.f32 %v578, %v687
        %v689 = vadd.f32 %v685, %v688
        %v690 = vld [vmem:[%s512] sm:$0xf]
        %v691 = vld [vmem:[%s517] sm:$0xf]
        %vm692 = vcmask 97280
        %v694 = vsel %vm692, %v690, 0
        %v697 = vsel %vm692, %v691, 0
        %699 = vmatprep.subr.bf16.mxu0 0
        %700 = vmatpush1.bf16.xpose.msra.mxu0 0
        %701 = vmatprep.subr.bf16.mxu0 0
        %702 = vmatpush1.bf16.xpose.msra.mxu0 0
        %703 = vmatprep.subr.bf16.mxu0 0
        %704 = vmatpush1.bf16.xpose.msra.mxu0 0
        %705 = vmatprep.subr.bf16.mxu0 0
        %706 = vmatpush1.bf16.xpose.msra.mxu0 0
        %707 = vmatprep.subr.bf16.mxu0 0
        %708 = vmatpush1.bf16.xpose.msra.mxu0 0
        %709 = vmatprep.subr.bf16.mxu0 0
        %710 = vmatpush1.bf16.xpose.msra.mxu0 0
        %711 = vmatprep.subr.bf16.mxu0 0
        %712 = vmatpush1.bf16.xpose.msra.mxu0 0
        %713 = vmatprep.subr.bf16.mxu0 0
        %714 = vmatpush1.bf16.xpose.msra.mxu0 %v697
        %715 = vmatprep.subr.bf16.mxu0 0
        %716 = vmatpush2.bf16.xpose.msra.mxu0 0
        %717 = vmatprep.subr.bf16.mxu0 0
        %718 = vmatpush2.bf16.xpose.msra.mxu0 0
        %719 = vmatprep.subr.bf16.mxu0 0
        %720 = vmatpush2.bf16.xpose.msra.mxu0 0
        %721 = vmatprep.subr.bf16.mxu0 0
        %722 = vmatpush2.bf16.xpose.msra.mxu0 0
        %723 = vmatprep.subr.bf16.mxu0 0
        %724 = vmatpush2.bf16.xpose.msra.mxu0 0
        %725 = vmatprep.subr.bf16.mxu0 0
        %726 = vmatpush2.bf16.xpose.msra.mxu0 0
        %727 = vmatprep.subr.bf16.mxu0 0
        %728 = vmatpush2.bf16.xpose.msra.mxu0 0
        %729 = vmatprep.subr.bf16.mxu0 0
        %730 = vmatpush2.bf16.xpose.msra.mxu0 0
        %731 = vmatprep.mubr.bf16.mxu0 0
        %732 = vmatmul.mubr.bf16.gmra.mxu0 %v694
        %v733 = vpop.f32.mrf.mxu0
        %v734 = vadd.f32 0.0, %v733
        %v735 = vpop.f32.mrf.mxu0
        %v736 = vpop.f32.mrf.mxu0
        %v737 = vpop.f32.mrf.mxu0
        %738 = vdwg.mxu0
        %v739 = vmul.f32 %v734, 0.28867513
        %v740 = vadd.f32 %v739, %v689
        %vm741 = vcmask 64512
        %v742 = vsel %vm741, %v740, -inf
        %743 = vmax.xlane.f32.xlu0 %v742
        %v744 = vpop.xlane.xlu0 %743
        %v745 = vsub.f32 %v740, %v744
        %v746 = vmul.f32 %v745, 1.442695
        %v747 = vpow.pop %v746
        %v748 = vsel %vm741, %v747, 0.0
        %749 = vadd.xlane.f32.xlu0 %v748
        %v750 = vpop.xlane.xlu0 %749
        %v751 = vrcp.pop %v750
        %v752 = vmul.f32 %v747, %v751
        %v753 = vpack.c.bf16 %v752, %v752
        %v754 = vld [vmem:[%s522] sm:$0xf]
        %v756 = vsel %vm741, %v753, 0
        %vm758 = vcmask 1043456
        %v760 = vsel %vm758, %v754, 0
        %762 = vmatprep.subr.bf16.mxu0 0
        %763 = vmatpush1.bf16.msra.mxu0 0
        %764 = vmatprep.subr.bf16.mxu0 0
        %765 = vmatpush1.bf16.msra.mxu0 0
        %766 = vmatprep.subr.bf16.mxu0 0
        %767 = vmatpush1.bf16.msra.mxu0 0
        %768 = vmatprep.subr.bf16.mxu0 0
        %769 = vmatpush1.bf16.msra.mxu0 0
        %770 = vmatprep.subr.bf16.mxu0 0
        %771 = vmatpush1.bf16.msra.mxu0 0
        %772 = vmatprep.subr.bf16.mxu0 0
        %773 = vmatpush1.bf16.msra.mxu0 0
        %774 = vmatprep.subr.bf16.mxu0 0
        %775 = vmatpush1.bf16.msra.mxu0 0
        %776 = vmatprep.subr.bf16.mxu0 0
        %777 = vmatpush1.bf16.msra.mxu0 %v760
        %778 = vmatprep.subr.bf16.mxu0 0
        %779 = vmatpush2.bf16.msra.mxu0 0
        %780 = vmatprep.subr.bf16.mxu0 0
        %781 = vmatpush2.bf16.msra.mxu0 0
        %782 = vmatprep.subr.bf16.mxu0 0
        %783 = vmatpush2.bf16.msra.mxu0 0
        %784 = vmatprep.subr.bf16.mxu0 0
        %785 = vmatpush2.bf16.msra.mxu0 0
        %786 = vmatprep.subr.bf16.mxu0 0
        %787 = vmatpush2.bf16.msra.mxu0 0
        %788 = vmatprep.subr.bf16.mxu0 0
        %789 = vmatpush2.bf16.msra.mxu0 0
        %790 = vmatprep.subr.bf16.mxu0 0
        %791 = vmatpush2.bf16.msra.mxu0 0
        %792 = vmatprep.subr.bf16.mxu0 0
        %793 = vmatpush2.bf16.msra.mxu0 0
        %794 = vmatprep.mubr.bf16.mxu0 0
        %795 = vmatmul.mubr.bf16.gmra.mxu0 %v756
        %v796 = vpop.f32.mrf.mxu0
        %v797 = vadd.f32 0.0, %v796
        %v798 = vpop.f32.mrf.mxu0
        %v799 = vpop.f32.mrf.mxu0
        %v800 = vpop.f32.mrf.mxu0
        %801 = vdwg.mxu0
        %v802 = vpack.c.bf16 %v797, %v797
        %vm803 = vcmask 93184
        %804 = vst.msk [vmem:[%s538] sm:$0xf] %vm803, %v802
        %s805 = sld [smem:[#allocation4]]
        %v806 = vstv %s805
        %v807 = vmul.f32 %v752, %v806
        %v808 = vadd.f32 %v581, %v807
        %s809 = sld [smem:[#allocation4 + $0x1]]
        %v810 = vstv %s809
        %v811 = vmul.f32 %v752, %v810
        %v812 = vadd.f32 %v584, %v811
        %s813 = sld [smem:[#allocation4 + $0x2]]
        %v814 = vstv %s813
        %v815 = vmul.f32 %v752, %v814
        %v816 = vadd.f32 %v587, %v815
        %s817 = sld [smem:[#allocation4 + $0x3]]
        %v818 = vstv %s817
        %v819 = vmul.f32 %v752, %v818
        %v820 = vadd.f32 %v590, %v819
        %s821 = sld [smem:[#allocation4 + $0x4]]
        %v822 = vstv %s821
        %v823 = vmul.f32 %v752, %v822
        %v824 = vadd.f32 %v593, %v823
        %s825 = sld [smem:[#allocation4 + $0x5]]
        %v826 = vstv %s825
        %v827 = vmul.f32 %v752, %v826
        %v828 = vadd.f32 %v596, %v827
        %s829 = sld [smem:[#allocation4 + $0x6]]
        %v830 = vstv %s829
        %v831 = vmul.f32 %v752, %v830
        %v832 = vadd.f32 %v599, %v831
        %s833 = sld [smem:[#allocation4 + $0x7]]
        %v834 = vstv %s833
        %v835 = vmul.f32 %v752, %v834
        %v836 = vadd.f32 %v602, %v835
        %s837 = sld [smem:[#allocation4 + $0x8]]
        %v838 = vstv %s837
        %v839 = vmul.f32 %v752, %v838
        %v840 = vadd.f32 %v605, %v839
        %s841 = sld [smem:[#allocation4 + $0x9]]
        %v842 = vstv %s841
        %v843 = vmul.f32 %v752, %v842
        %v844 = vadd.f32 %v608, %v843
        %s845 = sld [smem:[#allocation4 + $0xa]]
        %v846 = vstv %s845
        %v847 = vmul.f32 %v752, %v846
        %v848 = vadd.f32 %v611, %v847
        %s849 = sld [smem:[#allocation4 + $0xb]]
        %v850 = vstv %s849
        %v851 = vmul.f32 %v752, %v850
        %v852 = vadd.f32 %v614, %v851
        %s853 = sld [smem:[#allocation4 + $0xc]]
        %v854 = vstv %s853
        %v855 = vmul.f32 %v752, %v854
        %v856 = vadd.f32 %v617, %v855
        %s857 = sld [smem:[#allocation4 + $0xd]]
        %v858 = vstv %s857
        %v859 = vmul.f32 %v752, %v858
        %v860 = vadd.f32 %v620, %v859
        %s861 = sld [smem:[#allocation4 + $0xe]]
        %v862 = vstv %s861
        %v863 = vmul.f32 %v752, %v862
        %v864 = vadd.f32 %v623, %v863
        %s865 = sld [smem:[#allocation4 + $0xf]]
        %v866 = vstv %s865
        %v867 = vmul.f32 %v752, %v866
        %v868 = vadd.f32 %v626, %v867
        %s869 = sld [smem:[#allocation2 + $0x80]]
        %v870 = vstv %s869
        %v871 = vmul.f32 %v548, %v870
        %s872 = sld [smem:[#allocation2 + $0x81]]
        %v873 = vstv %s872
        %v874 = vmul.f32 %v550, %v873
        %v875 = vadd.f32 %v871, %v874
        %s876 = sld [smem:[#allocation2 + $0x82]]
        %v877 = vstv %s876
        %v878 = vmul.f32 %v552, %v877
        %v879 = vadd.f32 %v875, %v878
        %s880 = sld [smem:[#allocation2 + $0x83]]
        %v881 = vstv %s880
        %v882 = vmul.f32 %v554, %v881
        %v883 = vadd.f32 %v879, %v882
        %s884 = sld [smem:[#allocation2 + $0x84]]
        %v885 = vstv %s884
        %v886 = vmul.f32 %v556, %v885
        %v887 = vadd.f32 %v883, %v886
        %s888 = sld [smem:[#allocation2 + $0x85]]
        %v889 = vstv %s888
        %v890 = vmul.f32 %v558, %v889
        %v891 = vadd.f32 %v887, %v890
        %s892 = sld [smem:[#allocation2 + $0x86]]
        %v893 = vstv %s892
        %v894 = vmul.f32 %v560, %v893
        %v895 = vadd.f32 %v891, %v894
        %s896 = sld [smem:[#allocation2 + $0x87]]
        %v897 = vstv %s896
        %v898 = vmul.f32 %v562, %v897
        %v899 = vadd.f32 %v895, %v898
        %s900 = sld [smem:[#allocation2 + $0x88]]
        %v901 = vstv %s900
        %v902 = vmul.f32 %v564, %v901
        %v903 = vadd.f32 %v899, %v902
        %s904 = sld [smem:[#allocation2 + $0x89]]
        %v905 = vstv %s904
        %v906 = vmul.f32 %v566, %v905
        %v907 = vadd.f32 %v903, %v906
        %s908 = sld [smem:[#allocation2 + $0x8a]]
        %v909 = vstv %s908
        %v910 = vmul.f32 %v568, %v909
        %v911 = vadd.f32 %v907, %v910
        %s912 = sld [smem:[#allocation2 + $0x8b]]
        %v913 = vstv %s912
        %v914 = vmul.f32 %v570, %v913
        %v915 = vadd.f32 %v911, %v914
        %s916 = sld [smem:[#allocation2 + $0x8c]]
        %v917 = vstv %s916
        %v918 = vmul.f32 %v572, %v917
        %v919 = vadd.f32 %v915, %v918
        %s920 = sld [smem:[#allocation2 + $0x8d]]
        %v921 = vstv %s920
        %v922 = vmul.f32 %v574, %v921
        %v923 = vadd.f32 %v919, %v922
        %s924 = sld [smem:[#allocation2 + $0x8e]]
        %v925 = vstv %s924
        %v926 = vmul.f32 %v576, %v925
        %v927 = vadd.f32 %v923, %v926
        %s928 = sld [smem:[#allocation2 + $0x8f]]
        %v929 = vstv %s928
        %v930 = vmul.f32 %v578, %v929
        %v931 = vadd.f32 %v927, %v930
        %s932 = scalar_lea.vmem %s512, 4
        %v933 = vld [vmem:[%s932] sm:$0xf]
        %s934 = scalar_lea.vmem %s517, 4
        %v935 = vld [vmem:[%s934] sm:$0xf]
        %v937 = vsel %vm692, %v933, 0
        %v940 = vsel %vm692, %v935, 0
        %942 = vmatprep.subr.bf16.mxu0 0
        %943 = vmatpush1.bf16.xpose.msra.mxu0 0
        %944 = vmatprep.subr.bf16.mxu0 0
        %945 = vmatpush1.bf16.xpose.msra.mxu0 0
        %946 = vmatprep.subr.bf16.mxu0 0
        %947 = vmatpush1.bf16.xpose.msra.mxu0 0
        %948 = vmatprep.subr.bf16.mxu0 0
        %949 = vmatpush1.bf16.xpose.msra.mxu0 0
        %950 = vmatprep.subr.bf16.mxu0 0
        %951 = vmatpush1.bf16.xpose.msra.mxu0 0
        %952 = vmatprep.subr.bf16.mxu0 0
        %953 = vmatpush1.bf16.xpose.msra.mxu0 0
        %954 = vmatprep.subr.bf16.mxu0 0
        %955 = vmatpush1.bf16.xpose.msra.mxu0 0
        %956 = vmatprep.subr.bf16.mxu0 0
        %957 = vmatpush1.bf16.xpose.msra.mxu0 %v940
        %958 = vmatprep.subr.bf16.mxu0 0
        %959 = vmatpush2.bf16.xpose.msra.mxu0 0
        %960 = vmatprep.subr.bf16.mxu0 0
        %961 = vmatpush2.bf16.xpose.msra.mxu0 0
        %962 = vmatprep.subr.bf16.mxu0 0
        %963 = vmatpush2.bf16.xpose.msra.mxu0 0
        %964 = vmatprep.subr.bf16.mxu0 0
        %965 = vmatpush2.bf16.xpose.msra.mxu0 0
        %966 = vmatprep.subr.bf16.mxu0 0
        %967 = vmatpush2.bf16.xpose.msra.mxu0 0
        %968 = vmatprep.subr.bf16.mxu0 0
        %969 = vmatpush2.bf16.xpose.msra.mxu0 0
        %970 = vmatprep.subr.bf16.mxu0 0
        %971 = vmatpush2.bf16.xpose.msra.mxu0 0
        %972 = vmatprep.subr.bf16.mxu0 0
        %973 = vmatpush2.bf16.xpose.msra.mxu0 0
        %974 = vmatprep.mubr.bf16.mxu0 0
        %975 = vmatmul.mubr.bf16.gmra.mxu0 %v937
        %v976 = vpop.f32.mrf.mxu0
        %v977 = vadd.f32 0.0, %v976
        %v978 = vpop.f32.mrf.mxu0
        %v979 = vpop.f32.mrf.mxu0
        %v980 = vpop.f32.mrf.mxu0
        %981 = vdwg.mxu0
        %v982 = vmul.f32 %v977, 0.28867513
        %v983 = vadd.f32 %v982, %v931
        %v984 = vsel %vm741, %v983, -inf
        %985 = vmax.xlane.f32.xlu0 %v984
        %v986 = vpop.xlane.xlu0 %985
        %v987 = vsub.f32 %v983, %v986
        %v988 = vmul.f32 %v987, 1.442695
        %v989 = vpow.pop %v988
        %v990 = vsel %vm741, %v989, 0.0
        %991 = vadd.xlane.f32.xlu0 %v990
        %v992 = vpop.xlane.xlu0 %991
        %v993 = vrcp.pop %v992
        %v994 = vmul.f32 %v989, %v993
        %v995 = vpack.c.bf16 %v994, %v994
        %s996 = scalar_lea.vmem %s522, 4
        %v997 = vld [vmem:[%s996] sm:$0xf]
        %v999 = vsel %vm741, %v995, 0
        %v1002 = vsel %vm758, %v997, 0
        %1004 = vmatprep.subr.bf16.mxu0 0
        %1005 = vmatpush1.bf16.msra.mxu0 0
        %1006 = vmatprep.subr.bf16.mxu0 0
        %1007 = vmatpush1.bf16.msra.mxu0 0
        %1008 = vmatprep.subr.bf16.mxu0 0
        %1009 = vmatpush1.bf16.msra.mxu0 0
        %1010 = vmatprep.subr.bf16.mxu0 0
        %1011 = vmatpush1.bf16.msra.mxu0 0
        %1012 = vmatprep.subr.bf16.mxu0 0
        %1013 = vmatpush1.bf16.msra.mxu0 0
        %1014 = vmatprep.subr.bf16.mxu0 0
        %1015 = vmatpush1.bf16.msra.mxu0 0
        %1016 = vmatprep.subr.bf16.mxu0 0
        %1017 = vmatpush1.bf16.msra.mxu0 0
        %1018 = vmatprep.subr.bf16.mxu0 0
        %1019 = vmatpush1.bf16.msra.mxu0 %v1002
        %1020 = vmatprep.subr.bf16.mxu0 0
        %1021 = vmatpush2.bf16.msra.mxu0 0
        %1022 = vmatprep.subr.bf16.mxu0 0
        %1023 = vmatpush2.bf16.msra.mxu0 0
        %1024 = vmatprep.subr.bf16.mxu0 0
        %1025 = vmatpush2.bf16.msra.mxu0 0
        %1026 = vmatprep.subr.bf16.mxu0 0
        %1027 = vmatpush2.bf16.msra.mxu0 0
        %1028 = vmatprep.subr.bf16.mxu0 0
        %1029 = vmatpush2.bf16.msra.mxu0 0
        %1030 = vmatprep.subr.bf16.mxu0 0
        %1031 = vmatpush2.bf16.msra.mxu0 0
        %1032 = vmatprep.subr.bf16.mxu0 0
        %1033 = vmatpush2.bf16.msra.mxu0 0
        %1034 = vmatprep.subr.bf16.mxu0 0
        %1035 = vmatpush2.bf16.msra.mxu0 0
        %1036 = vmatprep.mubr.bf16.mxu0 0
        %1037 = vmatmul.mubr.bf16.gmra.mxu0 %v999
        %v1038 = vpop.f32.mrf.mxu0
        %v1039 = vadd.f32 0.0, %v1038
        %v1040 = vpop.f32.mrf.mxu0
        %v1041 = vpop.f32.mrf.mxu0
        %v1042 = vpop.f32.mrf.mxu0
        %1043 = vdwg.mxu0
        %v1044 = vpack.c.bf16 %v1039, %v1039
        %s1045 = scalar_lea.vmem %s538, 4
        %1046 = vst.msk [vmem:[%s1045] sm:$0xf] %vm803, %v1044
        %s1047 = sld [smem:[#allocation4 + $0x80]]
        %v1048 = vstv %s1047
        %v1049 = vmul.f32 %v994, %v1048
        %v1050 = vadd.f32 %v808, %v1049
        %s1051 = sld [smem:[#allocation4 + $0x81]]
        %v1052 = vstv %s1051
        %v1053 = vmul.f32 %v994, %v1052
        %v1054 = vadd.f32 %v812, %v1053
        %s1055 = sld [smem:[#allocation4 + $0x82]]
        %v1056 = vstv %s1055
        %v1057 = vmul.f32 %v994, %v1056
        %v1058 = vadd.f32 %v816, %v1057
        %s1059 = sld [smem:[#allocation4 + $0x83]]
        %v1060 = vstv %s1059
        %v1061 = vmul.f32 %v994, %v1060
        %v1062 = vadd.f32 %v820, %v1061
        %s1063 = sld [smem:[#allocation4 + $0x84]]
        %v1064 = vstv %s1063
        %v1065 = vmul.f32 %v994, %v1064
        %v1066 = vadd.f32 %v824, %v1065
        %s1067 = sld [smem:[#allocation4 + $0x85]]
        %v1068 = vstv %s1067
        %v1069 = vmul.f32 %v994, %v1068
        %v1070 = vadd.f32 %v828, %v1069
        %s1071 = sld [smem:[#allocation4 + $0x86]]
        %v1072 = vstv %s1071
        %v1073 = vmul.f32 %v994, %v1072
        %v1074 = vadd.f32 %v832, %v1073
        %s1075 = sld [smem:[#allocation4 + $0x87]]
        %v1076 = vstv %s1075
        %v1077 = vmul.f32 %v994, %v1076
        %v1078 = vadd.f32 %v836, %v1077
        %s1079 = sld [smem:[#allocation4 + $0x88]]
        %v1080 = vstv %s1079
        %v1081 = vmul.f32 %v994, %v1080
        %v1082 = vadd.f32 %v840, %v1081
        %s1083 = sld [smem:[#allocation4 + $0x89]]
        %v1084 = vstv %s1083
        %v1085 = vmul.f32 %v994, %v1084
        %v1086 = vadd.f32 %v844, %v1085
        %s1087 = sld [smem:[#allocation4 + $0x8a]]
        %v1088 = vstv %s1087
        %v1089 = vmul.f32 %v994, %v1088
        %v1090 = vadd.f32 %v848, %v1089
        %s1091 = sld [smem:[#allocation4 + $0x8b]]
        %v1092 = vstv %s1091
        %v1093 = vmul.f32 %v994, %v1092
        %v1094 = vadd.f32 %v852, %v1093
        %s1095 = sld [smem:[#allocation4 + $0x8c]]
        %v1096 = vstv %s1095
        %v1097 = vmul.f32 %v994, %v1096
        %v1098 = vadd.f32 %v856, %v1097
        %s1099 = sld [smem:[#allocation4 + $0x8d]]
        %v1100 = vstv %s1099
        %v1101 = vmul.f32 %v994, %v1100
        %v1102 = vadd.f32 %v860, %v1101
        %s1103 = sld [smem:[#allocation4 + $0x8e]]
        %v1104 = vstv %s1103
        %v1105 = vmul.f32 %v994, %v1104
        %v1106 = vadd.f32 %v864, %v1105
        %s1107 = sld [smem:[#allocation4 + $0x8f]]
        %v1108 = vstv %s1107
        %v1109 = vmul.f32 %v994, %v1108
        %v1110 = vadd.f32 %v868, %v1109
        %s1111 = sld [smem:[#allocation2 + $0x100]]
        %v1112 = vstv %s1111
        %v1113 = vmul.f32 %v548, %v1112
        %s1114 = sld [smem:[#allocation2 + $0x101]]
        %v1115 = vstv %s1114
        %v1116 = vmul.f32 %v550, %v1115
        %v1117 = vadd.f32 %v1113, %v1116
        %s1118 = sld [smem:[#allocation2 + $0x102]]
        %v1119 = vstv %s1118
        %v1120 = vmul.f32 %v552, %v1119
        %v1121 = vadd.f32 %v1117, %v1120
        %s1122 = sld [smem:[#allocation2 + $0x103]]
        %v1123 = vstv %s1122
        %v1124 = vmul.f32 %v554, %v1123
        %v1125 = vadd.f32 %v1121, %v1124
        %s1126 = sld [smem:[#allocation2 + $0x104]]
        %v1127 = vstv %s1126
        %v1128 = vmul.f32 %v556, %v1127
        %v1129 = vadd.f32 %v1125, %v1128
        %s1130 = sld [smem:[#allocation2 + $0x105]]
        %v1131 = vstv %s1130
        %v1132 = vmul.f32 %v558, %v1131
        %v1133 = vadd.f32 %v1129, %v1132
        %s1134 = sld [smem:[#allocation2 + $0x106]]
        %v1135 = vstv %s1134
        %v1136 = vmul.f32 %v560, %v1135
        %v1137 = vadd.f32 %v1133, %v1136
        %s1138 = sld [smem:[#allocation2 + $0x107]]
        %v1139 = vstv %s1138
        %v1140 = vmul.f32 %v562, %v1139
        %v1141 = vadd.f32 %v1137, %v1140
        %s1142 = sld [smem:[#allocation2 + $0x108]]
        %v1143 = vstv %s1142
        %v1144 = vmul.f32 %v564, %v1143
        %v1145 = vadd.f32 %v1141, %v1144
        %s1146 = sld [smem:[#allocation2 + $0x109]]
        %v1147 = vstv %s1146
        %v1148 = vmul.f32 %v566, %v1147
        %v1149 = vadd.f32 %v1145, %v1148
        %s1150 = sld [smem:[#allocation2 + $0x10a]]
        %v1151 = vstv %s1150
        %v1152 = vmul.f32 %v568, %v1151
        %v1153 = vadd.f32 %v1149, %v1152
        %s1154 = sld [smem:[#allocation2 + $0x10b]]
        %v1155 = vstv %s1154
        %v1156 = vmul.f32 %v570, %v1155
        %v1157 = vadd.f32 %v1153, %v1156
        %s1158 = sld [smem:[#allocation2 + $0x10c]]
        %v1159 = vstv %s1158
        %v1160 = vmul.f32 %v572, %v1159
        %v1161 = vadd.f32 %v1157, %v1160
        %s1162 = sld [smem:[#allocation2 + $0x10d]]
        %v1163 = vstv %s1162
        %v1164 = vmul.f32 %v574, %v1163
        %v1165 = vadd.f32 %v1161, %v1164
        %s1166 = sld [smem:[#allocation2 + $0x10e]]
        %v1167 = vstv %s1166
        %v1168 = vmul.f32 %v576, %v1167
        %v1169 = vadd.f32 %v1165, %v1168
        %s1170 = sld [smem:[#allocation2 + $0x10f]]
        %v1171 = vstv %s1170
        %v1172 = vmul.f32 %v578, %v1171
        %v1173 = vadd.f32 %v1169, %v1172
        %s1174 = scalar_lea.vmem %s512, 8
        %v1175 = vld [vmem:[%s1174] sm:$0xf]
        %s1176 = scalar_lea.vmem %s517, 8
        %v1177 = vld [vmem:[%s1176] sm:$0xf]
        %v1179 = vsel %vm692, %v1175, 0
        %v1182 = vsel %vm692, %v1177, 0
        %1184 = vmatprep.subr.bf16.mxu0 0
        %1185 = vmatpush1.bf16.xpose.msra.mxu0 0
        %1186 = vmatprep.subr.bf16.mxu0 0
        %1187 = vmatpush1.bf16.xpose.msra.mxu0 0
        %1188 = vmatprep.subr.bf16.mxu0 0
        %1189 = vmatpush1.bf16.xpose.msra.mxu0 0
        %1190 = vmatprep.subr.bf16.mxu0 0
        %1191 = vmatpush1.bf16.xpose.msra.mxu0 0
        %1192 = vmatprep.subr.bf16.mxu0 0
        %1193 = vmatpush1.bf16.xpose.msra.mxu0 0
        %1194 = vmatprep.subr.bf16.mxu0 0
        %1195 = vmatpush1.bf16.xpose.msra.mxu0 0
        %1196 = vmatprep.subr.bf16.mxu0 0
        %1197 = vmatpush1.bf16.xpose.msra.mxu0 0
        %1198 = vmatprep.subr.bf16.mxu0 0
        %1199 = vmatpush1.bf16.xpose.msra.mxu0 %v1182
        %1200 = vmatprep.subr.bf16.mxu0 0
        %1201 = vmatpush2.bf16.xpose.msra.mxu0 0
        %1202 = vmatprep.subr.bf16.mxu0 0
        %1203 = vmatpush2.bf16.xpose.msra.mxu0 0
        %1204 = vmatprep.subr.bf16.mxu0 0
        %1205 = vmatpush2.bf16.xpose.msra.mxu0 0
        %1206 = vmatprep.subr.bf16.mxu0 0
        %1207 = vmatpush2.bf16.xpose.msra.mxu0 0
        %1208 = vmatprep.subr.bf16.mxu0 0
        %1209 = vmatpush2.bf16.xpose.msra.mxu0 0
        %1210 = vmatprep.subr.bf16.mxu0 0
        %1211 = vmatpush2.bf16.xpose.msra.mxu0 0
        %1212 = vmatprep.subr.bf16.mxu0 0
        %1213 = vmatpush2.bf16.xpose.msra.mxu0 0
        %1214 = vmatprep.subr.bf16.mxu0 0
        %1215 = vmatpush2.bf16.xpose.msra.mxu0 0
        %1216 = vmatprep.mubr.bf16.mxu0 0
        %1217 = vmatmul.mubr.bf16.gmra.mxu0 %v1179
        %v1218 = vpop.f32.mrf.mxu0
        %v1219 = vadd.f32 0.0, %v1218
        %v1220 = vpop.f32.mrf.mxu0
        %v1221 = vpop.f32.mrf.mxu0
        %v1222 = vpop.f32.mrf.mxu0
        %1223 = vdwg.mxu0
        %v1224 = vmul.f32 %v1219, 0.28867513
        %v1225 = vadd.f32 %v1224, %v1173
        %v1226 = vsel %vm741, %v1225, -inf
        %1227 = vmax.xlane.f32.xlu0 %v1226
        %v1228 = vpop.xlane.xlu0 %1227
        %v1229 = vsub.f32 %v1225, %v1228
        %v1230 = vmul.f32 %v1229, 1.442695
        %v1231 = vpow.pop %v1230
        %v1232 = vsel %vm741, %v1231, 0.0
        %1233 = vadd.xlane.f32.xlu0 %v1232
        %v1234 = vpop.xlane.xlu0 %1233
        %v1235 = vrcp.pop %v1234
        %v1236 = vmul.f32 %v1231, %v1235
        %v1237 = vpack.c.bf16 %v1236, %v1236
        %s1238 = scalar_lea.vmem %s522, 8
        %v1239 = vld [vmem:[%s1238] sm:$0xf]
        %v1241 = vsel %vm741, %v1237, 0
        %v1244 = vsel %vm758, %v1239, 0
        %1246 = vmatprep.subr.bf16.mxu0 0
        %1247 = vmatpush1.bf16.msra.mxu0 0
        %1248 = vmatprep.subr.bf16.mxu0 0
        %1249 = vmatpush1.bf16.msra.mxu0 0
        %1250 = vmatprep.subr.bf16.mxu0 0
        %1251 = vmatpush1.bf16.msra.mxu0 0
        %1252 = vmatprep.subr.bf16.mxu0 0
        %1253 = vmatpush1.bf16.msra.mxu0 0
        %1254 = vmatprep.subr.bf16.mxu0 0
        %1255 = vmatpush1.bf16.msra.mxu0 0
        %1256 = vmatprep.subr.bf16.mxu0 0
        %1257 = vmatpush1.bf16.msra.mxu0 0
        %1258 = vmatprep.subr.bf16.mxu0 0
        %1259 = vmatpush1.bf16.msra.mxu0 0
        %1260 = vmatprep.subr.bf16.mxu0 0
        %1261 = vmatpush1.bf16.msra.mxu0 %v1244
        %1262 = vmatprep.subr.bf16.mxu0 0
        %1263 = vmatpush2.bf16.msra.mxu0 0
        %1264 = vmatprep.subr.bf16.mxu0 0
        %1265 = vmatpush2.bf16.msra.mxu0 0
        %1266 = vmatprep.subr.bf16.mxu0 0
        %1267 = vmatpush2.bf16.msra.mxu0 0
        %1268 = vmatprep.subr.bf16.mxu0 0
        %1269 = vmatpush2.bf16.msra.mxu0 0
        %1270 = vmatprep.subr.bf16.mxu0 0
        %1271 = vmatpush2.bf16.msra.mxu0 0
        %1272 = vmatprep.subr.bf16.mxu0 0
        %1273 = vmatpush2.bf16.msra.mxu0 0
        %1274 = vmatprep.subr.bf16.mxu0 0
        %1275 = vmatpush2.bf16.msra.mxu0 0
        %1276 = vmatprep.subr.bf16.mxu0 0
        %1277 = vmatpush2.bf16.msra.mxu0 0
        %1278 = vmatprep.mubr.bf16.mxu0 0
        %1279 = vmatmul.mubr.bf16.gmra.mxu0 %v1241
        %v1280 = vpop.f32.mrf.mxu0
        %v1281 = vadd.f32 0.0, %v1280
        %v1282 = vpop.f32.mrf.mxu0
        %v1283 = vpop.f32.mrf.mxu0
        %v1284 = vpop.f32.mrf.mxu0
        %1285 = vdwg.mxu0
        %v1286 = vpack.c.bf16 %v1281, %v1281
        %s1287 = scalar_lea.vmem %s538, 8
        %1288 = vst.msk [vmem:[%s1287] sm:$0xf] %vm803, %v1286
        %s1289 = sld [smem:[#allocation4 + $0x100]]
        %v1290 = vstv %s1289
        %v1291 = vmul.f32 %v1236, %v1290
        %v1292 = vadd.f32 %v1050, %v1291
        %s1293 = sld [smem:[#allocation4 + $0x101]]
        %v1294 = vstv %s1293
        %v1295 = vmul.f32 %v1236, %v1294
        %v1296 = vadd.f32 %v1054, %v1295
        %s1297 = sld [smem:[#allocation4 + $0x102]]
        %v1298 = vstv %s1297
        %v1299 = vmul.f32 %v1236, %v1298
        %v1300 = vadd.f32 %v1058, %v1299
        %s1301 = sld [smem:[#allocation4 + $0x103]]
        %v1302 = vstv %s1301
        %v1303 = vmul.f32 %v1236, %v1302
        %v1304 = vadd.f32 %v1062, %v1303
        %s1305 = sld [smem:[#allocation4 + $0x104]]
        %v1306 = vstv %s1305
        %v1307 = vmul.f32 %v1236, %v1306
        %v1308 = vadd.f32 %v1066, %v1307
        %s1309 = sld [smem:[#allocation4 + $0x105]]
        %v1310 = vstv %s1309
        %v1311 = vmul.f32 %v1236, %v1310
        %v1312 = vadd.f32 %v1070, %v1311
        %s1313 = sld [smem:[#allocation4 + $0x106]]
        %v1314 = vstv %s1313
        %v1315 = vmul.f32 %v1236, %v1314
        %v1316 = vadd.f32 %v1074, %v1315
        %s1317 = sld [smem:[#allocation4 + $0x107]]
        %v1318 = vstv %s1317
        %v1319 = vmul.f32 %v1236, %v1318
        %v1320 = vadd.f32 %v1078, %v1319
        %s1321 = sld [smem:[#allocation4 + $0x108]]
        %v1322 = vstv %s1321
        %v1323 = vmul.f32 %v1236, %v1322
        %v1324 = vadd.f32 %v1082, %v1323
        %s1325 = sld [smem:[#allocation4 + $0x109]]
        %v1326 = vstv %s1325
        %v1327 = vmul.f32 %v1236, %v1326
        %v1328 = vadd.f32 %v1086, %v1327
        %s1329 = sld [smem:[#allocation4 + $0x10a]]
        %v1330 = vstv %s1329
        %v1331 = vmul.f32 %v1236, %v1330
        %v1332 = vadd.f32 %v1090, %v1331
        %s1333 = sld [smem:[#allocation4 + $0x10b]]
        %v1334 = vstv %s1333
        %v1335 = vmul.f32 %v1236, %v1334
        %v1336 = vadd.f32 %v1094, %v1335
        %s1337 = sld [smem:[#allocation4 + $0x10c]]
        %v1338 = vstv %s1337
        %v1339 = vmul.f32 %v1236, %v1338
        %v1340 = vadd.f32 %v1098, %v1339
        %s1341 = sld [smem:[#allocation4 + $0x10d]]
        %v1342 = vstv %s1341
        %v1343 = vmul.f32 %v1236, %v1342
        %v1344 = vadd.f32 %v1102, %v1343
        %s1345 = sld [smem:[#allocation4 + $0x10e]]
        %v1346 = vstv %s1345
        %v1347 = vmul.f32 %v1236, %v1346
        %v1348 = vadd.f32 %v1106, %v1347
        %s1349 = sld [smem:[#allocation4 + $0x10f]]
        %v1350 = vstv %s1349
        %v1351 = vmul.f32 %v1236, %v1350
        %v1352 = vadd.f32 %v1110, %v1351
        %s1353 = sld [smem:[#allocation2 + $0x180]]
        %v1354 = vstv %s1353
        %v1355 = vmul.f32 %v548, %v1354
        %s1356 = sld [smem:[#allocation2 + $0x181]]
        %v1357 = vstv %s1356
        %v1358 = vmul.f32 %v550, %v1357
        %v1359 = vadd.f32 %v1355, %v1358
        %s1360 = sld [smem:[#allocation2 + $0x182]]
        %v1361 = vstv %s1360
        %v1362 = vmul.f32 %v552, %v1361
        %v1363 = vadd.f32 %v1359, %v1362
        %s1364 = sld [smem:[#allocation2 + $0x183]]
        %v1365 = vstv %s1364
        %v1366 = vmul.f32 %v554, %v1365
        %v1367 = vadd.f32 %v1363, %v1366
        %s1368 = sld [smem:[#allocation2 + $0x184]]
        %v1369 = vstv %s1368
        %v1370 = vmul.f32 %v556, %v1369
        %v1371 = vadd.f32 %v1367, %v1370
        %s1372 = sld [smem:[#allocation2 + $0x185]]
        %v1373 = vstv %s1372
        %v1374 = vmul.f32 %v558, %v1373
        %v1375 = vadd.f32 %v1371, %v1374
        %s1376 = sld [smem:[#allocation2 + $0x186]]
        %v1377 = vstv %s1376
        %v1378 = vmul.f32 %v560, %v1377
        %v1379 = vadd.f32 %v1375, %v1378
        %s1380 = sld [smem:[#allocation2 + $0x187]]
        %v1381 = vstv %s1380
        %v1382 = vmul.f32 %v562, %v1381
        %v1383 = vadd.f32 %v1379, %v1382
        %s1384 = sld [smem:[#allocation2 + $0x188]]
        %v1385 = vstv %s1384
        %v1386 = vmul.f32 %v564, %v1385
        %v1387 = vadd.f32 %v1383, %v1386
        %s1388 = sld [smem:[#allocation2 + $0x189]]
        %v1389 = vstv %s1388
        %v1390 = vmul.f32 %v566, %v1389
        %v1391 = vadd.f32 %v1387, %v1390
        %s1392 = sld [smem:[#allocation2 + $0x18a]]
        %v1393 = vstv %s1392
        %v1394 = vmul.f32 %v568, %v1393
        %v1395 = vadd.f32 %v1391, %v1394
        %s1396 = sld [smem:[#allocation2 + $0x18b]]
        %v1397 = vstv %s1396
        %v1398 = vmul.f32 %v570, %v1397
        %v1399 = vadd.f32 %v1395, %v1398
        %s1400 = sld [smem:[#allocation2 + $0x18c]]
        %v1401 = vstv %s1400
        %v1402 = vmul.f32 %v572, %v1401
        %v1403 = vadd.f32 %v1399, %v1402
        %s1404 = sld [smem:[#allocation2 + $0x18d]]
        %v1405 = vstv %s1404
        %v1406 = vmul.f32 %v574, %v1405
        %v1407 = vadd.f32 %v1403, %v1406
        %s1408 = sld [smem:[#allocation2 + $0x18e]]
        %v1409 = vstv %s1408
        %v1410 = vmul.f32 %v576, %v1409
        %v1411 = vadd.f32 %v1407, %v1410
        %s1412 = sld [smem:[#allocation2 + $0x18f]]
        %v1413 = vstv %s1412
        %v1414 = vmul.f32 %v578, %v1413
        %v1415 = vadd.f32 %v1411, %v1414
        %s1416 = scalar_lea.vmem %s512, 12
        %v1417 = vld [vmem:[%s1416] sm:$0xf]
        %s1418 = scalar_lea.vmem %s517, 12
        %v1419 = vld [vmem:[%s1418] sm:$0xf]
        %v1421 = vsel %vm692, %v1417, 0
        %v1424 = vsel %vm692, %v1419, 0
        %1426 = vmatprep.subr.bf16.mxu0 0
        %1427 = vmatpush1.bf16.xpose.msra.mxu0 0
        %1428 = vmatprep.subr.bf16.mxu0 0
        %1429 = vmatpush1.bf16.xpose.msra.mxu0 0
        %1430 = vmatprep.subr.bf16.mxu0 0
        %1431 = vmatpush1.bf16.xpose.msra.mxu0 0
        %1432 = vmatprep.subr.bf16.mxu0 0
        %1433 = vmatpush1.bf16.xpose.msra.mxu0 0
        %1434 = vmatprep.subr.bf16.mxu0 0
        %1435 = vmatpush1.bf16.xpose.msra.mxu0 0
        %1436 = vmatprep.subr.bf16.mxu0 0
        %1437 = vmatpush1.bf16.xpose.msra.mxu0 0
        %1438 = vmatprep.subr.bf16.mxu0 0
        %1439 = vmatpush1.bf16.xpose.msra.mxu0 0
        %1440 = vmatprep.subr.bf16.mxu0 0
        %1441 = vmatpush1.bf16.xpose.msra.mxu0 %v1424
        %1442 = vmatprep.subr.bf16.mxu0 0
        %1443 = vmatpush2.bf16.xpose.msra.mxu0 0
        %1444 = vmatprep.subr.bf16.mxu0 0
        %1445 = vmatpush2.bf16.xpose.msra.mxu0 0
        %1446 = vmatprep.subr.bf16.mxu0 0
        %1447 = vmatpush2.bf16.xpose.msra.mxu0 0
        %1448 = vmatprep.subr.bf16.mxu0 0
        %1449 = vmatpush2.bf16.xpose.msra.mxu0 0
        %1450 = vmatprep.subr.bf16.mxu0 0
        %1451 = vmatpush2.bf16.xpose.msra.mxu0 0
        %1452 = vmatprep.subr.bf16.mxu0 0
        %1453 = vmatpush2.bf16.xpose.msra.mxu0 0
        %1454 = vmatprep.subr.bf16.mxu0 0
        %1455 = vmatpush2.bf16.xpose.msra.mxu0 0
        %1456 = vmatprep.subr.bf16.mxu0 0
        %1457 = vmatpush2.bf16.xpose.msra.mxu0 0
        %1458 = vmatprep.mubr.bf16.mxu0 0
        %1459 = vmatmul.mubr.bf16.gmra.mxu0 %v1421
        %v1460 = vpop.f32.mrf.mxu0
        %v1461 = vadd.f32 0.0, %v1460
        %v1462 = vpop.f32.mrf.mxu0
        %v1463 = vpop.f32.mrf.mxu0
        %v1464 = vpop.f32.mrf.mxu0
        %1465 = vdwg.mxu0
        %v1466 = vmul.f32 %v1461, 0.28867513
        %v1467 = vadd.f32 %v1466, %v1415
        %v1468 = vsel %vm741, %v1467, -inf
        %1469 = vmax.xlane.f32.xlu0 %v1468
        %v1470 = vpop.xlane.xlu0 %1469
        %v1471 = vsub.f32 %v1467, %v1470
        %v1472 = vmul.f32 %v1471, 1.442695
        %v1473 = vpow.pop %v1472
        %v1474 = vsel %vm741, %v1473, 0.0
        %1475 = vadd.xlane.f32.xlu0 %v1474
        %v1476 = vpop.xlane.xlu0 %1475
        %v1477 = vrcp.pop %v1476
        %v1478 = vmul.f32 %v1473, %v1477
        %v1479 = vpack.c.bf16 %v1478, %v1478
        %s1480 = scalar_lea.vmem %s522, 12
        %v1481 = vld [vmem:[%s1480] sm:$0xf]
        %v1483 = vsel %vm741, %v1479, 0
        %v1486 = vsel %vm758, %v1481, 0
        %1488 = vmatprep.subr.bf16.mxu0 0
        %1489 = vmatpush1.bf16.msra.mxu0 0
        %1490 = vmatprep.subr.bf16.mxu0 0
        %1491 = vmatpush1.bf16.msra.mxu0 0
        %1492 = vmatprep.subr.bf16.mxu0 0
        %1493 = vmatpush1.bf16.msra.mxu0 0
        %1494 = vmatprep.subr.bf16.mxu0 0
        %1495 = vmatpush1.bf16.msra.mxu0 0
        %1496 = vmatprep.subr.bf16.mxu0 0
        %1497 = vmatpush1.bf16.msra.mxu0 0
        %1498 = vmatprep.subr.bf16.mxu0 0
        %1499 = vmatpush1.bf16.msra.mxu0 0
        %1500 = vmatprep.subr.bf16.mxu0 0
        %1501 = vmatpush1.bf16.msra.mxu0 0
        %1502 = vmatprep.subr.bf16.mxu0 0
        %1503 = vmatpush1.bf16.msra.mxu0 %v1486
        %1504 = vmatprep.subr.bf16.mxu0 0
        %1505 = vmatpush2.bf16.msra.mxu0 0
        %1506 = vmatprep.subr.bf16.mxu0 0
        %1507 = vmatpush2.bf16.msra.mxu0 0
        %1508 = vmatprep.subr.bf16.mxu0 0
        %1509 = vmatpush2.bf16.msra.mxu0 0
        %1510 = vmatprep.subr.bf16.mxu0 0
        %1511 = vmatpush2.bf16.msra.mxu0 0
        %1512 = vmatprep.subr.bf16.mxu0 0
        %1513 = vmatpush2.bf16.msra.mxu0 0
        %1514 = vmatprep.subr.bf16.mxu0 0
        %1515 = vmatpush2.bf16.msra.mxu0 0
        %1516 = vmatprep.subr.bf16.mxu0 0
        %1517 = vmatpush2.bf16.msra.mxu0 0
        %1518 = vmatprep.subr.bf16.mxu0 0
        %1519 = vmatpush2.bf16.msra.mxu0 0
        %1520 = vmatprep.mubr.bf16.mxu0 0
        %1521 = vmatmul.mubr.bf16.gmra.mxu0 %v1483
        %v1522 = vpop.f32.mrf.mxu0
        %v1523 = vadd.f32 0.0, %v1522
        %v1524 = vpop.f32.mrf.mxu0
        %v1525 = vpop.f32.mrf.mxu0
        %v1526 = vpop.f32.mrf.mxu0
        %1527 = vdwg.mxu0
        %v1528 = vpack.c.bf16 %v1523, %v1523
        %s1529 = scalar_lea.vmem %s538, 12
        %1530 = vst.msk [vmem:[%s1529] sm:$0xf] %vm803, %v1528
        %s1531 = sld [smem:[#allocation4 + $0x180]]
        %v1532 = vstv %s1531
        %v1533 = vmul.f32 %v1478, %v1532
        %v1534 = vadd.f32 %v1292, %v1533
        %s1535 = sld [smem:[#allocation4 + $0x181]]
        %v1536 = vstv %s1535
        %v1537 = vmul.f32 %v1478, %v1536
        %v1538 = vadd.f32 %v1296, %v1537
        %s1539 = sld [smem:[#allocation4 + $0x182]]
        %v1540 = vstv %s1539
        %v1541 = vmul.f32 %v1478, %v1540
        %v1542 = vadd.f32 %v1300, %v1541
        %s1543 = sld [smem:[#allocation4 + $0x183]]
        %v1544 = vstv %s1543
        %v1545 = vmul.f32 %v1478, %v1544
        %v1546 = vadd.f32 %v1304, %v1545
        %s1547 = sld [smem:[#allocation4 + $0x184]]
        %v1548 = vstv %s1547
        %v1549 = vmul.f32 %v1478, %v1548
        %v1550 = vadd.f32 %v1308, %v1549
        %s1551 = sld [smem:[#allocation4 + $0x185]]
        %v1552 = vstv %s1551
        %v1553 = vmul.f32 %v1478, %v1552
        %v1554 = vadd.f32 %v1312, %v1553
        %s1555 = sld [smem:[#allocation4 + $0x186]]
        %v1556 = vstv %s1555
        %v1557 = vmul.f32 %v1478, %v1556
        %v1558 = vadd.f32 %v1316, %v1557
        %s1559 = sld [smem:[#allocation4 + $0x187]]
        %v1560 = vstv %s1559
        %v1561 = vmul.f32 %v1478, %v1560
        %v1562 = vadd.f32 %v1320, %v1561
        %s1563 = sld [smem:[#allocation4 + $0x188]]
        %v1564 = vstv %s1563
        %v1565 = vmul.f32 %v1478, %v1564
        %v1566 = vadd.f32 %v1324, %v1565
        %s1567 = sld [smem:[#allocation4 + $0x189]]
        %v1568 = vstv %s1567
        %v1569 = vmul.f32 %v1478, %v1568
        %v1570 = vadd.f32 %v1328, %v1569
        %s1571 = sld [smem:[#allocation4 + $0x18a]]
        %v1572 = vstv %s1571
        %v1573 = vmul.f32 %v1478, %v1572
        %v1574 = vadd.f32 %v1332, %v1573
        %s1575 = sld [smem:[#allocation4 + $0x18b]]
        %v1576 = vstv %s1575
        %v1577 = vmul.f32 %v1478, %v1576
        %v1578 = vadd.f32 %v1336, %v1577
        %s1579 = sld [smem:[#allocation4 + $0x18c]]
        %v1580 = vstv %s1579
        %v1581 = vmul.f32 %v1478, %v1580
        %v1582 = vadd.f32 %v1340, %v1581
        %s1583 = sld [smem:[#allocation4 + $0x18d]]
        %v1584 = vstv %s1583
        %v1585 = vmul.f32 %v1478, %v1584
        %v1586 = vadd.f32 %v1344, %v1585
        %s1587 = sld [smem:[#allocation4 + $0x18e]]
        %v1588 = vstv %s1587
        %v1589 = vmul.f32 %v1478, %v1588
        %v1590 = vadd.f32 %v1348, %v1589
        %s1591 = sld [smem:[#allocation4 + $0x18f]]
        %v1592 = vstv %s1591
        %v1593 = vmul.f32 %v1478, %v1592
        %v1594 = vadd.f32 %v1352, %v1593
        %v1595 = vadd.f32 %v1534, %v1538
        %v1596 = vadd.f32 %v1595, %v1542
        %v1597 = vadd.f32 %v1596, %v1546
        %v1598 = vadd.f32 %v1597, %v1550
        %v1599 = vadd.f32 %v1598, %v1554
        %v1600 = vadd.f32 %v1599, %v1558
        %v1601 = vadd.f32 %v1600, %v1562
        %v1602 = vadd.f32 %v1601, %v1566
        %v1603 = vadd.f32 %v1602, %v1570
        %v1604 = vadd.f32 %v1603, %v1574
        %v1605 = vadd.f32 %v1604, %v1578
        %v1606 = vadd.f32 %v1605, %v1582
        %v1607 = vadd.f32 %v1606, %v1586
        %v1608 = vadd.f32 %v1607, %v1590
        %v1609 = vadd.f32 %v1608, %v1594
        %v1610 = vmul.f32 %v1609, 0.0625
        %v1611 = vsub.f32 %v1534, %v1610
        %v1612 = vmul.f32 %v1611, %v1611
        %v1613 = vsub.f32 %v1538, %v1610
        %v1614 = vmul.f32 %v1613, %v1613
        %v1615 = vadd.f32 %v1612, %v1614
        %v1616 = vsub.f32 %v1542, %v1610
        %v1617 = vmul.f32 %v1616, %v1616
        %v1618 = vadd.f32 %v1615, %v1617
        %v1619 = vsub.f32 %v1546, %v1610
        %v1620 = vmul.f32 %v1619, %v1619
        %v1621 = vadd.f32 %v1618, %v1620
        %v1622 = vsub.f32 %v1550, %v1610
        %v1623 = vmul.f32 %v1622, %v1622
        %v1624 = vadd.f32 %v1621, %v1623
        %v1625 = vsub.f32 %v1554, %v1610
        %v1626 = vmul.f32 %v1625, %v1625
        %v1627 = vadd.f32 %v1624, %v1626
        %v1628 = vsub.f32 %v1558, %v1610
        %v1629 = vmul.f32 %v1628, %v1628
        %v1630 = vadd.f32 %v1627, %v1629
        %v1631 = vsub.f32 %v1562, %v1610
        %v1632 = vmul.f32 %v1631, %v1631
        %v1633 = vadd.f32 %v1630, %v1632
        %v1634 = vsub.f32 %v1566, %v1610
        %v1635 = vmul.f32 %v1634, %v1634
        %v1636 = vadd.f32 %v1633, %v1635
        %v1637 = vsub.f32 %v1570, %v1610
        %v1638 = vmul.f32 %v1637, %v1637
        %v1639 = vadd.f32 %v1636, %v1638
        %v1640 = vsub.f32 %v1574, %v1610
        %v1641 = vmul.f32 %v1640, %v1640
        %v1642 = vadd.f32 %v1639, %v1641
        %v1643 = vsub.f32 %v1578, %v1610
        %v1644 = vmul.f32 %v1643, %v1643
        %v1645 = vadd.f32 %v1642, %v1644
        %v1646 = vsub.f32 %v1582, %v1610
        %v1647 = vmul.f32 %v1646, %v1646
        %v1648 = vadd.f32 %v1645, %v1647
        %v1649 = vsub.f32 %v1586, %v1610
        %v1650 = vmul.f32 %v1649, %v1649
        %v1651 = vadd.f32 %v1648, %v1650
        %v1652 = vsub.f32 %v1590, %v1610
        %v1653 = vmul.f32 %v1652, %v1652
        %v1654 = vadd.f32 %v1651, %v1653
        %v1655 = vsub.f32 %v1594, %v1610
        %v1656 = vmul.f32 %v1655, %v1655
        %v1657 = vadd.f32 %v1654, %v1656
        %v1658 = vmul.f32 %v1657, 0.0625
        %v1659 = vadd.f32 %v1658, 1e-05
        %v1660 = vrsqrt.pop %v1659
        %v1661 = vmul.f32 %v1611, %v1660
        %s1662 = sld [smem:[#allocation7]]
        %v1663 = vstv %s1662
        %v1664 = vmul.f32 %v1661, %v1663
        %s1665 = sld [smem:[#allocation9]]
        %v1666 = vstv %s1665
        %v1667 = vadd.f32 %v1664, %v1666
        %v1668 = vadd.f32 %v1534, %v1667
        %1669 = vst.msk [vmem:[%s546] sm:$0xff] %vm741, %v1668
        %v1670 = vmul.f32 %v1613, %v1660
        %s1671 = sld [smem:[#allocation7 + $0x1]]
        %v1672 = vstv %s1671
        %v1673 = vmul.f32 %v1670, %v1672
        %s1674 = sld [smem:[#allocation9 + $0x1]]
        %v1675 = vstv %s1674
        %v1676 = vadd.f32 %v1673, %v1675
        %v1677 = vadd.f32 %v1538, %v1676
        %s1678 = scalar_lea.vmem %s546, 8
        %1679 = vst.msk [vmem:[%s1678] sm:$0xff] %vm741, %v1677
        %v1680 = vmul.f32 %v1616, %v1660
        %s1681 = sld [smem:[#allocation7 + $0x2]]
        %v1682 = vstv %s1681
        %v1683 = vmul.f32 %v1680, %v1682
        %s1684 = sld [smem:[#allocation9 + $0x2]]
        %v1685 = vstv %s1684
        %v1686 = vadd.f32 %v1683, %v1685
        %v1687 = vadd.f32 %v1542, %v1686
        %s1688 = scalar_lea.vmem %s546, 16
        %1689 = vst.msk [vmem:[%s1688] sm:$0xff] %vm741, %v1687
        %v1690 = vmul.f32 %v1619, %v1660
        %s1691 = sld [smem:[#allocation7 + $0x3]]
        %v1692 = vstv %s1691
        %v1693 = vmul.f32 %v1690, %v1692
        %s1694 = sld [smem:[#allocation9 + $0x3]]
        %v1695 = vstv %s1694
        %v1696 = vadd.f32 %v1693, %v1695
        %v1697 = vadd.f32 %v1546, %v1696
        %s1698 = scalar_lea.vmem %s546, 24
        %1699 = vst.msk [vmem:[%s1698] sm:$0xff] %vm741, %v1697
        %v1700 = vmul.f32 %v1622, %v1660
        %s1701 = sld [smem:[#allocation7 + $0x4]]
        %v1702 = vstv %s1701
        %v1703 = vmul.f32 %v1700, %v1702
        %s1704 = sld [smem:[#allocation9 + $0x4]]
        %v1705 = vstv %s1704
        %v1706 = vadd.f32 %v1703, %v1705
        %v1707 = vadd.f32 %v1550, %v1706
        %s1708 = scalar_lea.vmem %s546, 32
        %1709 = vst.msk [vmem:[%s1708] sm:$0xff] %vm741, %v1707
        %v1710 = vmul.f32 %v1625, %v1660
        %s1711 = sld [smem:[#allocation7 + $0x5]]
        %v1712 = vstv %s1711
        %v1713 = vmul.f32 %v1710, %v1712
        %s1714 = sld [smem:[#allocation9 + $0x5]]
        %v1715 = vstv %s1714
        %v1716 = vadd.f32 %v1713, %v1715
        %v1717 = vadd.f32 %v1554, %v1716
        %s1718 = scalar_lea.vmem %s546, 40
        %1719 = vst.msk [vmem:[%s1718] sm:$0xff] %vm741, %v1717
        %v1720 = vmul.f32 %v1628, %v1660
        %s1721 = sld [smem:[#allocation7 + $0x6]]
        %v1722 = vstv %s1721
        %v1723 = vmul.f32 %v1720, %v1722
        %s1724 = sld [smem:[#allocation9 + $0x6]]
        %v1725 = vstv %s1724
        %v1726 = vadd.f32 %v1723, %v1725
        %v1727 = vadd.f32 %v1558, %v1726
        %s1728 = scalar_lea.vmem %s546, 48
        %1729 = vst.msk [vmem:[%s1728] sm:$0xff] %vm741, %v1727
        %v1730 = vmul.f32 %v1631, %v1660
        %s1731 = sld [smem:[#allocation7 + $0x7]]
        %v1732 = vstv %s1731
        %v1733 = vmul.f32 %v1730, %v1732
        %s1734 = sld [smem:[#allocation9 + $0x7]]
        %v1735 = vstv %s1734
        %v1736 = vadd.f32 %v1733, %v1735
        %v1737 = vadd.f32 %v1562, %v1736
        %s1738 = scalar_lea.vmem %s546, 56
        %1739 = vst.msk [vmem:[%s1738] sm:$0xff] %vm741, %v1737
        %v1740 = vmul.f32 %v1634, %v1660
        %s1741 = sld [smem:[#allocation7 + $0x8]]
        %v1742 = vstv %s1741
        %v1743 = vmul.f32 %v1740, %v1742
        %s1744 = sld [smem:[#allocation9 + $0x8]]
        %v1745 = vstv %s1744
        %v1746 = vadd.f32 %v1743, %v1745
        %v1747 = vadd.f32 %v1566, %v1746
        %s1748 = scalar_lea.vmem %s546, 64
        %1749 = vst.msk [vmem:[%s1748] sm:$0xff] %vm741, %v1747
        %v1750 = vmul.f32 %v1637, %v1660
        %s1751 = sld [smem:[#allocation7 + $0x9]]
        %v1752 = vstv %s1751
        %v1753 = vmul.f32 %v1750, %v1752
        %s1754 = sld [smem:[#allocation9 + $0x9]]
        %v1755 = vstv %s1754
        %v1756 = vadd.f32 %v1753, %v1755
        %v1757 = vadd.f32 %v1570, %v1756
        %s1758 = scalar_lea.vmem %s546, 72
        %1759 = vst.msk [vmem:[%s1758] sm:$0xff] %vm741, %v1757
        %v1760 = vmul.f32 %v1640, %v1660
        %s1761 = sld [smem:[#allocation7 + $0xa]]
        %v1762 = vstv %s1761
        %v1763 = vmul.f32 %v1760, %v1762
        %s1764 = sld [smem:[#allocation9 + $0xa]]
        %v1765 = vstv %s1764
        %v1766 = vadd.f32 %v1763, %v1765
        %v1767 = vadd.f32 %v1574, %v1766
        %s1768 = scalar_lea.vmem %s546, 80
        %1769 = vst.msk [vmem:[%s1768] sm:$0xff] %vm741, %v1767
        %v1770 = vmul.f32 %v1643, %v1660
        %s1771 = sld [smem:[#allocation7 + $0xb]]
        %v1772 = vstv %s1771
        %v1773 = vmul.f32 %v1770, %v1772
        %s1774 = sld [smem:[#allocation9 + $0xb]]
        %v1775 = vstv %s1774
        %v1776 = vadd.f32 %v1773, %v1775
        %v1777 = vadd.f32 %v1578, %v1776
        %s1778 = scalar_lea.vmem %s546, 88
        %1779 = vst.msk [vmem:[%s1778] sm:$0xff] %vm741, %v1777
        %v1780 = vmul.f32 %v1646, %v1660
        %s1781 = sld [smem:[#allocation7 + $0xc]]
        %v1782 = vstv %s1781
        %v1783 = vmul.f32 %v1780, %v1782
        %s1784 = sld [smem:[#allocation9 + $0xc]]
        %v1785 = vstv %s1784
        %v1786 = vadd.f32 %v1783, %v1785
        %v1787 = vadd.f32 %v1582, %v1786
        %s1788 = scalar_lea.vmem %s546, 96
        %1789 = vst.msk [vmem:[%s1788] sm:$0xff] %vm741, %v1787
        %v1790 = vmul.f32 %v1649, %v1660
        %s1791 = sld [smem:[#allocation7 + $0xd]]
        %v1792 = vstv %s1791
        %v1793 = vmul.f32 %v1790, %v1792
        %s1794 = sld [smem:[#allocation9 + $0xd]]
        %v1795 = vstv %s1794
        %v1796 = vadd.f32 %v1793, %v1795
        %v1797 = vadd.f32 %v1586, %v1796
        %s1798 = scalar_lea.vmem %s546, 104
        %1799 = vst.msk [vmem:[%s1798] sm:$0xff] %vm741, %v1797
        %v1800 = vmul.f32 %v1652, %v1660
        %s1801 = sld [smem:[#allocation7 + $0xe]]
        %v1802 = vstv %s1801
        %v1803 = vmul.f32 %v1800, %v1802
        %s1804 = sld [smem:[#allocation9 + $0xe]]
        %v1805 = vstv %s1804
        %v1806 = vadd.f32 %v1803, %v1805
        %v1807 = vadd.f32 %v1590, %v1806
        %s1808 = scalar_lea.vmem %s546, 112
        %1809 = vst.msk [vmem:[%s1808] sm:$0xff] %vm741, %v1807
        %v1810 = vmul.f32 %v1655, %v1660
        %s1811 = sld [smem:[#allocation7 + $0xf]]
        %v1812 = vstv %s1811
        %v1813 = vmul.f32 %v1810, %v1812
        %s1814 = sld [smem:[#allocation9 + $0xf]]
        %v1815 = vstv %s1814
        %v1816 = vadd.f32 %v1813, %v1815
        %v1817 = vadd.f32 %v1594, %v1816
        %s1818 = scalar_lea.vmem %s546, 120
        %1819 = vst.msk [vmem:[%s1818] sm:$0xff] %vm741, %v1817
        %p1820 = scmp.lt.s32.totalorder %s29, 1
        %s1821 = scalar_select %p1820, %s29, 1
        %p1822 = scmp.lt.s32.totalorder %s30, 0
        %s1823 = scalar_select %p1822, %s30, 0
        %s1824 = smul.addr %s1821, 4
        %s1825 = sadd.s32 %s1823, %s1824
        %s1826 = smul.addr %s1825, 4
        %s1827 = scalar_lea.vmem %s9, %s1826
        %p1828 = scmp.lt.s32.totalorder %s29, 1
        %s1829 = scalar_select %p1828, %s29, 1
        %p1830 = scmp.lt.s32.totalorder %s30, 0
        %s1831 = scalar_select %p1830, %s30, 0
        %s1832 = smul.addr %s1829, 16
        %s1833 = sadd.s32 %s1831, %s1832
        %s1834 = smul.addr %s1833, 8
        %s1835 = scalar_lea.vmem %s10, %s1834
        // Predicated region
        $region77: #{cformer_forward.18} parent=55 // pred_check
          %p1836 = pneg %p270
        $region78: #{cformer_forward.18} parent=55 // pred_check_branch
          %1838 = sbr.rel (%p1836) target = $region80
        $region79: #{cformer_forward.18} parent=55 // pred_region
          _
        $region80: #{cformer_forward.18} parent=55 // pred_fallthru
          _
        // Predicated region
        $region81: #{cformer_forward.18} parent=55 // pred_check
          %p1839 = pneg %p298
        $region82: #{cformer_forward.18} parent=55 // pred_check_branch
          %1841 = sbr.rel (%p1839) target = $region84
        $region83: #{cformer_forward.18} parent=55 // pred_region
          _
        $region84: #{cformer_forward.18} parent=55 // pred_fallthru
          _
      $region56: #{cformer_forward.18} parent=5 // pred_fallthru
        _
      %p1842 = scmp.le.s32.totalorder 2, %s20
      // Predicated region
      $region85: #{cformer_forward.18} parent=5 // pred_check
        %p1843 = pneg %p1842
      $region86: #{cformer_forward.18} parent=5 // pred_check_branch
        %1845 = sbr.rel (%p1843) target = $region88
      $region87: #{cformer_forward.18} parent=5 // pred_region
        %s1846 = ssub.s32 %s20, 2
        // Predicated region
        $region89: #{cformer_forward.18} parent=87 // pred_check
          %p1847 = pneg %p276
        $region90: #{cformer_forward.18} parent=87 // pred_check_branch
          %1849 = sbr.rel (%p1847) target = $region92
        $region91: #{cformer_forward.18} parent=87 // pred_region
          %p1850 = scmp.lt.s32.totalorder %s31, 1
          %s1851 = scalar_select %p1850, %s31, 1
          %p1852 = scmp.lt.s32.totalorder %s32, 0
          %s1853 = scalar_select %p1852, %s32, 0
          %s1854 = smul.addr %s1851, 4
          %s1855 = sadd.s32 %s1853, %s1854
          %s1856 = smul.addr %s1855, 4
          %s1857 = scalar_lea.vmem %s9, %s1856
        $region92: #{cformer_forward.18} parent=87 // pred_fallthru
          _
        // Predicated region
        $region93: #{cformer_forward.18} parent=87 // pred_check
          %p1858 = pneg %p304
        $region94: #{cformer_forward.18} parent=87 // pred_check_branch
          %1860 = sbr.rel (%p1858) target = $region96
        $region95: #{cformer_forward.18} parent=87 // pred_region
          %p1861 = scmp.lt.s32.totalorder %s31, 1
          %s1862 = scalar_select %p1861, %s31, 1
          %p1863 = scmp.lt.s32.totalorder %s32, 0
          %s1864 = scalar_select %p1863, %s32, 0
          %s1865 = smul.addr %s1862, 16
          %s1866 = sadd.s32 %s1864, %s1865
          %s1867 = smul.addr %s1866, 8
          %s1868 = scalar_lea.vmem %s10, %s1867
        $region96: #{cformer_forward.18} parent=87 // pred_fallthru
          _
      $region88: #{cformer_forward.18} parent=5 // pred_fallthru
        _
    $region6: #{cformer_forward.18} parent=1 // loop_footer
      %s24 = sadd.s32 1, %s20
    $region7: #{cformer_forward.18} parent=1 // loop_footer_branch
      %19 = sbr.rel target = $region3
    $region8: #{cformer_forward.18} parent=1 // loop_exit
      _
    %1869 = vsyncpa [#allocation3], 1
    %s1870 = scalar_lea.sflag [#allocation3], 1
    %1871 = vsyncpa %s1870, 1
    %1872 = vsyncpa [#allocation5], 1
    %1873 = vsyncpa [#allocation8], 1

</llo_original>
